<compile_context>
chip_gen: v7x
topology: tpu7x:2x2x1
jax: 0.10.0
libtpu: 0.0.40
codegen_flags: <defaults>
</compile_context>

<pallas_src>
import functools

import numpy as np

import jax
import jax.numpy as jnp
from jax import lax
from jax.experimental import pallas as pl
from jax.experimental.pallas import tpu as pltpu


# ----------------------------------------------------------------- model dims
K = 5                                # conv kernel size
C1, C2 = 10, 20                      # conv output channels
H0 = W0 = 28                         # input spatial
P1 = 12                              # spatial after conv1 + pool1
P2 = 4                               # spatial after conv2 + pool2
FC_IN, FC_HID, FC_OUT = 320, 50, 10
OUT_PAD = 128                        # lane-dense output width (slice to 10 outside)

BT = 32                              # batch tile (samples per grid step), multiple of 8

# parity-major ordering of the 12 pooled-1 rows: (h%2, h//2)
_P1_ORDER = np.array([0, 2, 4, 6, 8, 10, 1, 3, 5, 7, 9, 11], np.int32)


# ----------------------------------------------------------------- fused kernel
def mnist_net_kernel(x_ref, t1e_ref, t1o_ref, b1_ref,
                     t2e_ref, t2o_ref, b2_ref,
                     fw1_ref, fb1_ref, fw2_ref, fb2_ref,
                     out_ref, *, bt):
    f32 = jnp.float32

    def mxu(a, b):
        return jnp.dot(a, b, preferred_element_type=f32)

    # x rows: (conv-row h-parity, pooled-row p1 parity-major, b); lanes: (kh, j)
    x = x_ref[...]                                   # (2*12*bt, 140) bf16
    r1h = P1 * bt

    # ---- conv1 fused with 2x2 max-pool: w-parity folded into the two banded
    #      weights, h-parity carried by the row stacking done in the wrapper.
    re = mxu(x, t1e_ref[...])                        # (24*bt, 120) f32, lanes (wp1, c1)
    ro = mxu(x, t1o_ref[...])
    pooled1 = jnp.maximum(jnp.maximum(re[:r1h, :], re[r1h:, :]),
                          jnp.maximum(ro[:r1h, :], ro[r1h:, :]))
    # rows of y1: (p1 % 2, p1 // 2, b); lanes: (wp1, c1)
    y1 = jnp.maximum(pooled1 + b1_ref[...], 0.0).astype(jnp.bfloat16)   # (12*bt, 120)

    # ---- conv2 fused with 2x2 max-pool: h-shifts are static contiguous row
    #      slices of the parity-major y1; w-parity folded into the banded weights.
    r2 = P2 * bt
    nq = P1 // 2                                     # 6 row-blocks per h-parity

    def y1_rows(s):                                  # rows with p1 = 2*p2 + s, p2 = 0..3
        start = ((s % 2) * nq + s // 2) * bt
        return y1[start:start + r2, :]               # (4*bt, 120)

    acc = [[None, None], [None, None]]               # [h-parity][w-parity]
    for kh in range(K):
        te = t2e_ref[kh * (P1 * C1):(kh + 1) * (P1 * C1), :]
        to = t2o_ref[kh * (P1 * C1):(kh + 1) * (P1 * C1), :]
        for hp in range(2):
            ys = y1_rows(hp + kh)
            pe = mxu(ys, te)
            po = mxu(ys, to)
            if acc[hp][0] is None:
                acc[hp][0], acc[hp][1] = pe, po
            else:
                acc[hp][0] = acc[hp][0] + pe
                acc[hp][1] = acc[hp][1] + po
    pooled2 = jnp.maximum(jnp.maximum(acc[0][0], acc[0][1]),
                          jnp.maximum(acc[1][0], acc[1][1]))             # (4*bt, 80)
    # rows of y2: (p2, b); lanes: (wp2, c2)
    y2 = jnp.maximum(pooled2 + b2_ref[...], 0.0)

    # ---- fc1 (320->50): PyTorch NCHW flatten folded into fw1 row order; the 4
    #      spatial rows are static bt-row slices.
    z = None
    for p2 in range(P2):
        term = mxu(y2[p2 * bt:(p2 + 1) * bt, :],
                   fw1_ref[p2 * (P2 * C2):(p2 + 1) * (P2 * C2), :])
        z = term if z is None else z + term
    h1 = jnp.maximum(z + fb1_ref[...], 0.0)          # (bt, 50)

    # ---- fc2 (50->10, padded to 128 lanes; pad lanes pinned to -1e30 via fb2)
    #      + log_softmax (lane reductions)
    logits = mxu(h1, fw2_ref[...]) + fb2_ref[...]    # (bt, 128)
    m = jnp.max(logits, axis=-1, keepdims=True)
    s = logits - m
    lse = jnp.log(jnp.sum(jnp.exp(s), axis=-1, keepdims=True))
    out_ref[...] = s - lse


# ----------------------------------------------------------------- weight prep
def _conv1_band_parity(w1, wpar):
    # w1: (10,1,5,5) OIHW -> banded (K*28, 12*10); output column w = 2*wp + wpar
    w1 = np.asarray(w1, np.float32)
    t = np.zeros((K, W0, P1 * C1), np.float32)
    for kh in range(K):
        for wp in range(P1):
            for kw in range(K):
                j = 2 * wp + wpar + kw
                t[kh, j, wp * C1:(wp + 1) * C1] = w1[:, 0, kh, kw]
    return t.reshape(K * W0, P1 * C1)


def _conv2_band_parity(w2, wpar):
    # w2: (20,10,5,5) OIHW -> banded (K*120, 4*20); output column w2 = 2*wp2 + wpar
    w2 = np.asarray(w2, np.float32)
    t = np.zeros((K, P1 * C1, P2 * C2), np.float32)
    for kh in range(K):
        for wp2 in range(P2):
            for kw in range(K):
                w_in = 2 * wp2 + wpar + kw
                for ci in range(C1):
                    t[kh, w_in * C1 + ci, wp2 * C2:(wp2 + 1) * C2] = w2[:, ci, kh, kw]
    return t.reshape(K * P1 * C1, P2 * C2)


def _fc1_perm(fc1_w):
    # fc1_w: (50, 320) torch layout; rows ordered (p2, wp2, c2) to match y2 layout
    fc1_w = np.asarray(fc1_w, np.float32)
    out = np.zeros((P2 * P2 * C2, FC_HID), np.float32)
    for p2 in range(P2):
        for wp2 in range(P2):
            for c2 in range(C2):
                out[p2 * (P2 * C2) + wp2 * C2 + c2, :] = \
                    fc1_w[:, c2 * (P2 * P2) + p2 * P2 + wp2]
    return out


def _fc2_pad(fc2_w, fc2_b):
    w = np.zeros((FC_HID, OUT_PAD), np.float32)
    w[:, :FC_OUT] = np.asarray(fc2_w, np.float32).T
    b = np.full((1, OUT_PAD), -1e30, np.float32)     # pad lanes -> -inf-ish logits
    b[0, :FC_OUT] = np.asarray(fc2_b, np.float32)
    return w, b


CONST_KEYS = ("t1e", "t1o", "b1t", "t2e", "t2o", "b2t", "fw1", "fb1", "fw2", "fb2")
_BF16_KEYS = ("t1e", "t1o", "t2e", "t2o")


def prepare_params(params):
    """One-time host-side preparation of kernel constants."""
    fw2, fb2 = _fc2_pad(params["fc2_w"], params["fc2_b"])
    c = {
        "t1e": _conv1_band_parity(params["conv1_w"], 0),
        "t1o": _conv1_band_parity(params["conv1_w"], 1),
        "b1t": np.tile(np.asarray(params["conv1_b"], np.float32), P1)[None, :],
        "t2e": _conv2_band_parity(params["conv2_w"], 0),
        "t2o": _conv2_band_parity(params["conv2_w"], 1),
        "b2t": np.tile(np.asarray(params["conv2_b"], np.float32), P2)[None, :],
        "fw1": _fc1_perm(params["fc1_w"]),
        "fb1": np.asarray(params["fc1_b"], np.float32)[None, :],
        "fw2": fw2,
        "fb2": fb2,
    }
    return {k: jnp.asarray(v, jnp.bfloat16 if k in _BF16_KEYS else jnp.float32)
            for k, v in c.items()}


# ----------------------------------------------------------------- forward pass
def _build_conv1_rows(x_img, bt):
    """(n_pad,28,28) f32 -> (n_tiles*2*12*bt, 140) bf16 stacked conv1 input.

    Row layout per tile: (conv-row h-parity, pooled row p1 parity-major, b);
    lane layout: (kh, j)."""
    n_pad = x_img.shape[0]
    nt = n_pad // bt
    shifts = [x_img[:, o:o + 2 * P1:2, :] for o in range(K + 1)]   # (n,12,28) each
    xe = jnp.stack(shifts[:K], axis=2)                             # even conv rows
    xo = jnp.stack(shifts[1:K + 1], axis=2)                        # odd conv rows
    xeo = jnp.stack([xe, xo], axis=1)                              # (n,2,12,5,28)
    xeo = xeo[:, :, _P1_ORDER, :, :]                               # parity-major p1
    xeo = xeo.reshape(nt, bt, 2, P1, K * W0)
    xeo = xeo.transpose(0, 2, 3, 1, 4)                             # (nt,2,12,bt,140)
    return xeo.reshape(nt * 2 * P1 * bt, K * W0).astype(jnp.bfloat16)


@jax.jit
def net_forward(x_nchw, prep):
    n = x_nchw.shape[0]
    x = x_nchw.reshape(n, H0, W0)                    # Cin == 1
    n_pad = ((n + BT - 1) // BT) * BT
    if n_pad != n:
        x = jnp.pad(x, ((0, n_pad - n), (0, 0), (0, 0)))
    nt = n_pad // BT
    x_rows = _build_conv1_rows(x, BT)                # (nt*24*BT, 140) bf16

    consts = [prep[k] for k in CONST_KEYS]
    in_specs = [pl.BlockSpec((2 * P1 * BT, K * W0), lambda i: (i, 0))]
    in_specs += [pl.BlockSpec(c.shape, lambda i: (0, 0)) for c in consts]

    out = pl.pallas_call(
        functools.partial(mnist_net_kernel, bt=BT),
        out_shape=jax.ShapeDtypeStruct((n_pad, OUT_PAD), jnp.float32),
        grid=(nt,),
        in_specs=in_specs,
        out_specs=pl.BlockSpec((BT, OUT_PAD), lambda i: (i, 0)),
        compiler_params=pltpu.CompilerParams(
            dimension_semantics=("parallel",),
            vmem_limit_bytes=32 * 1024 * 1024,
        ),
    )(x_rows, *consts)
    return out[:n, :FC_OUT]


# ----------------------------------------------------------------- params / ref
def init_params(key):
    ks = jax.random.split(key, 8)
    return {
        "conv1_w": 0.1 * jax.random.normal(ks[0], (10, 1, 5, 5), jnp.float32),
        "conv1_b": 0.1 * jax.random.normal(ks[1], (10,), jnp.float32),
        "conv2_w": 0.1 * jax.random.normal(ks[2], (20, 10, 5, 5), jnp.float32),
        "conv2_b": 0.1 * jax.random.normal(ks[3], (20,), jnp.float32),
        "fc1_w": 0.05 * jax.random.normal(ks[4], (50, 320), jnp.float32),
        "fc1_b": 0.05 * jax.random.normal(ks[5], (50,), jnp.float32),
        "fc2_w": 0.1 * jax.random.normal(ks[6], (10, 50), jnp.float32),
        "fc2_b": 0.1 * jax.random.normal(ks[7], (10,), jnp.float32),
    }


def reference_forward(x_nchw, params):
    hi = lax.Precision.HIGHEST
    y = lax.conv_general_dilated(x_nchw, params["conv1_w"], (1, 1), "VALID",
                                 dimension_numbers=("NCHW", "OIHW", "NCHW"),
                                 precision=hi)
    y = y + params["conv1_b"][None, :, None, None]
    y = lax.reduce_window(y, -jnp.inf, lax.max, (1, 1, 2, 2), (1, 1, 2, 2), "VALID")
    y = jnp.maximum(y, 0.0)
    y = lax.conv_general_dilated(y, params["conv2_w"], (1, 1), "VALID",
                                 dimension_numbers=("NCHW", "OIHW", "NCHW"),
                                 precision=hi)
    y = y + params["conv2_b"][None, :, None, None]
    y = lax.reduce_window(y, -jnp.inf, lax.max, (1, 1, 2, 2), (1, 1, 2, 2), "VALID")
    y = jnp.maximum(y, 0.0)
    flat = y.reshape(y.shape[0], FC_IN)
    h = jnp.maximum(jnp.dot(flat, params["fc1_w"].T, precision=hi) + params["fc1_b"], 0.0)
    o = jnp.dot(h, params["fc2_w"].T, precision=hi) + params["fc2_b"]
    return jax.nn.log_softmax(o, axis=-1)


# ----------------------------------------------------------------- demo / check
if __name__ == "__main__":
    key = jax.random.PRNGKey(0)
    kx, kp = jax.random.split(key)
    x = jax.random.normal(kx, (40, 1, 28, 28), jnp.float32)   # MNIST-shaped input
    params = init_params(kp)
    prep = prepare_params(params)

    out = net_forward(x, prep)
    out = jax.block_until_ready(out)
    assert out.shape == (40, 10)
    assert bool(jnp.all(jnp.isfinite(out)))

    ref = jax.block_until_ready(reference_forward(x, params))
    err = float(jnp.max(jnp.abs(out - ref)))
    assert err < 3e-2, f"max abs diff vs reference: {err}"

    print("KERNEL_OK")
</pallas_src>

<mosaic_0001>
module attributes {stable_mosaic.version = 11 : i64} {
  func.func @mnist_net_kernel(%arg0: i32, %arg1: memref<768x140xbf16, #tpu.memory_space<vmem>>, %arg2: memref<140x120xbf16, #tpu.memory_space<vmem>>, %arg3: memref<140x120xbf16, #tpu.memory_space<vmem>>, %arg4: memref<1x120xf32, #tpu.memory_space<vmem>>, %arg5: memref<600x80xbf16, #tpu.memory_space<vmem>>, %arg6: memref<600x80xbf16, #tpu.memory_space<vmem>>, %arg7: memref<1x80xf32, #tpu.memory_space<vmem>>, %arg8: memref<320x50xf32, #tpu.memory_space<vmem>>, %arg9: memref<1x50xf32, #tpu.memory_space<vmem>>, %arg10: memref<50x128xf32, #tpu.memory_space<vmem>>, %arg11: memref<1x128xf32, #tpu.memory_space<vmem>>, %arg12: memref<32x128xf32, #tpu.memory_space<vmem>>) attributes {dimension_semantics = [#tpu.dimension_semantics<parallel>], iteration_bounds = array<i64: 2>, scalar_prefetch = 0 : i64, scratch_operands = 0 : i64, tpu.core_type = #tpu.core_type<tc>, window_params = [{transform_indices = @transform_0, window_bounds = array<i64: 768, 140>}, {pipeline_mode = #tpu.pipeline_mode<synchronous>, transform_indices = @transform_1, window_bounds = array<i64: 140, 120>}, {pipeline_mode = #tpu.pipeline_mode<synchronous>, transform_indices = @transform_2, window_bounds = array<i64: 140, 120>}, {pipeline_mode = #tpu.pipeline_mode<synchronous>, transform_indices = @transform_3, window_bounds = array<i64: 1, 120>}, {pipeline_mode = #tpu.pipeline_mode<synchronous>, transform_indices = @transform_4, window_bounds = array<i64: 600, 80>}, {pipeline_mode = #tpu.pipeline_mode<synchronous>, transform_indices = @transform_5, window_bounds = array<i64: 600, 80>}, {pipeline_mode = #tpu.pipeline_mode<synchronous>, transform_indices = @transform_6, window_bounds = array<i64: 1, 80>}, {pipeline_mode = #tpu.pipeline_mode<synchronous>, transform_indices = @transform_7, window_bounds = array<i64: 320, 50>}, {pipeline_mode = #tpu.pipeline_mode<synchronous>, transform_indices = @transform_8, window_bounds = array<i64: 1, 50>}, {pipeline_mode = #tpu.pipeline_mode<synchronous>, transform_indices = @transform_9, window_bounds = array<i64: 50, 128>}, {pipeline_mode = #tpu.pipeline_mode<synchronous>, transform_indices = @transform_10, window_bounds = array<i64: 1, 128>}, {transform_indices = @transform_11, window_bounds = array<i64: 32, 128>}]} {
    %c0 = arith.constant 0 : index
    %c0_0 = arith.constant 0 : index
    %0 = vector.load %arg1[%c0, %c0_0] : memref<768x140xbf16, #tpu.memory_space<vmem>>, vector<768x140xbf16>
    %c0_1 = arith.constant 0 : index
    %c0_2 = arith.constant 0 : index
    %1 = vector.load %arg2[%c0_1, %c0_2] : memref<140x120xbf16, #tpu.memory_space<vmem>>, vector<140x120xbf16>
    %cst = arith.constant dense<0.000000e+00> : vector<768x120xf32>
    %2 = tpu.matmul %0, %1, %cst {dimension_numbers = #tpu.dot_dimension_numbers<[1], [0], [0], [1], [0, 0, 1, 1], [], []>} : vector<768x140xbf16>, vector<140x120xbf16>, vector<768x120xf32> -> vector<768x120xf32>
    %c0_3 = arith.constant 0 : index
    %c0_4 = arith.constant 0 : index
    %3 = vector.load %arg3[%c0_3, %c0_4] : memref<140x120xbf16, #tpu.memory_space<vmem>>, vector<140x120xbf16>
    %cst_5 = arith.constant dense<0.000000e+00> : vector<768x120xf32>
    %4 = tpu.matmul %0, %3, %cst_5 {dimension_numbers = #tpu.dot_dimension_numbers<[1], [0], [0], [1], [0, 0, 1, 1], [], []>} : vector<768x140xbf16>, vector<140x120xbf16>, vector<768x120xf32> -> vector<768x120xf32>
    %5 = vector.extract_strided_slice %2 {offsets = [0, 0], sizes = [384, 120], strides = [1, 1]} : vector<768x120xf32> to vector<384x120xf32>
    %6 = vector.extract_strided_slice %2 {offsets = [384, 0], sizes = [384, 120], strides = [1, 1]} : vector<768x120xf32> to vector<384x120xf32>
    %7 = arith.maximumf %5, %6 : vector<384x120xf32>
    %8 = vector.extract_strided_slice %4 {offsets = [0, 0], sizes = [384, 120], strides = [1, 1]} : vector<768x120xf32> to vector<384x120xf32>
    %9 = vector.extract_strided_slice %4 {offsets = [384, 0], sizes = [384, 120], strides = [1, 1]} : vector<768x120xf32> to vector<384x120xf32>
    %10 = arith.maximumf %8, %9 : vector<384x120xf32>
    %11 = arith.maximumf %7, %10 : vector<384x120xf32>
    %c0_6 = arith.constant 0 : index
    %c0_7 = arith.constant 0 : index
    %12 = vector.load %arg4[%c0_6, %c0_7] : memref<1x120xf32, #tpu.memory_space<vmem>>, vector<1x120xf32>
    %13 = vector.broadcast %12 : vector<1x120xf32> to vector<384x120xf32>
    %14 = arith.addf %11, %13 : vector<384x120xf32>
    %cst_8 = arith.constant 0.000000e+00 : f32
    %15 = vector.broadcast %cst_8 : f32 to vector<384x120xf32>
    %16 = arith.maximumf %14, %15 : vector<384x120xf32>
    %17 = arith.truncf %16 : vector<384x120xf32> to vector<384x120xbf16>
    %c0_9 = arith.constant 0 : index
    %c0_10 = arith.constant 0 : index
    %18 = vector.load %arg5[%c0_9, %c0_10] : memref<600x80xbf16, #tpu.memory_space<vmem>>, vector<120x80xbf16>
    %c0_11 = arith.constant 0 : index
    %c0_12 = arith.constant 0 : index
    %19 = vector.load %arg6[%c0_11, %c0_12] : memref<600x80xbf16, #tpu.memory_space<vmem>>, vector<120x80xbf16>
    %20 = vector.extract_strided_slice %17 {offsets = [0, 0], sizes = [128, 120], strides = [1, 1]} : vector<384x120xbf16> to vector<128x120xbf16>
    %cst_13 = arith.constant dense<0.000000e+00> : vector<128x80xf32>
    %21 = tpu.matmul %20, %18, %cst_13 {dimension_numbers = #tpu.dot_dimension_numbers<[1], [0], [0], [1], [0, 0, 1, 1], [], []>} : vector<128x120xbf16>, vector<120x80xbf16>, vector<128x80xf32> -> vector<128x80xf32>
    %cst_14 = arith.constant dense<0.000000e+00> : vector<128x80xf32>
    %22 = tpu.matmul %20, %19, %cst_14 {dimension_numbers = #tpu.dot_dimension_numbers<[1], [0], [0], [1], [0, 0, 1, 1], [], []>} : vector<128x120xbf16>, vector<120x80xbf16>, vector<128x80xf32> -> vector<128x80xf32>
    %23 = vector.extract_strided_slice %17 {offsets = [192, 0], sizes = [128, 120], strides = [1, 1]} : vector<384x120xbf16> to vector<128x120xbf16>
    %cst_15 = arith.constant dense<0.000000e+00> : vector<128x80xf32>
    %24 = tpu.matmul %23, %18, %cst_15 {dimension_numbers = #tpu.dot_dimension_numbers<[1], [0], [0], [1], [0, 0, 1, 1], [], []>} : vector<128x120xbf16>, vector<120x80xbf16>, vector<128x80xf32> -> vector<128x80xf32>
    %cst_16 = arith.constant dense<0.000000e+00> : vector<128x80xf32>
    %25 = tpu.matmul %23, %19, %cst_16 {dimension_numbers = #tpu.dot_dimension_numbers<[1], [0], [0], [1], [0, 0, 1, 1], [], []>} : vector<128x120xbf16>, vector<120x80xbf16>, vector<128x80xf32> -> vector<128x80xf32>
    %c120 = arith.constant 120 : index
    %c0_17 = arith.constant 0 : index
    %26 = vector.load %arg5[%c120, %c0_17] : memref<600x80xbf16, #tpu.memory_space<vmem>>, vector<120x80xbf16>
    %c120_18 = arith.constant 120 : index
    %c0_19 = arith.constant 0 : index
    %27 = vector.load %arg6[%c120_18, %c0_19] : memref<600x80xbf16, #tpu.memory_space<vmem>>, vector<120x80xbf16>
    %28 = vector.extract_strided_slice %17 {offsets = [192, 0], sizes = [128, 120], strides = [1, 1]} : vector<384x120xbf16> to vector<128x120xbf16>
    %cst_20 = arith.constant dense<0.000000e+00> : vector<128x80xf32>
    %29 = tpu.matmul %28, %26, %cst_20 {dimension_numbers = #tpu.dot_dimension_numbers<[1], [0], [0], [1], [0, 0, 1, 1], [], []>} : vector<128x120xbf16>, vector<120x80xbf16>, vector<128x80xf32> -> vector<128x80xf32>
    %cst_21 = arith.constant dense<0.000000e+00> : vector<128x80xf32>
    %30 = tpu.matmul %28, %27, %cst_21 {dimension_numbers = #tpu.dot_dimension_numbers<[1], [0], [0], [1], [0, 0, 1, 1], [], []>} : vector<128x120xbf16>, vector<120x80xbf16>, vector<128x80xf32> -> vector<128x80xf32>
    %31 = arith.addf %21, %29 : vector<128x80xf32>
    %32 = arith.addf %22, %30 : vector<128x80xf32>
    %33 = vector.extract_strided_slice %17 {offsets = [32, 0], sizes = [128, 120], strides = [1, 1]} : vector<384x120xbf16> to vector<128x120xbf16>
    %cst_22 = arith.constant dense<0.000000e+00> : vector<128x80xf32>
    %34 = tpu.matmul %33, %26, %cst_22 {dimension_numbers = #tpu.dot_dimension_numbers<[1], [0], [0], [1], [0, 0, 1, 1], [], []>} : vector<128x120xbf16>, vector<120x80xbf16>, vector<128x80xf32> -> vector<128x80xf32>
    %cst_23 = arith.constant dense<0.000000e+00> : vector<128x80xf32>
    %35 = tpu.matmul %33, %27, %cst_23 {dimension_numbers = #tpu.dot_dimension_numbers<[1], [0], [0], [1], [0, 0, 1, 1], [], []>} : vector<128x120xbf16>, vector<120x80xbf16>, vector<128x80xf32> -> vector<128x80xf32>
    %36 = arith.addf %24, %34 : vector<128x80xf32>
    %37 = arith.addf %25, %35 : vector<128x80xf32>
    %c240 = arith.constant 240 : index
    %c0_24 = arith.constant 0 : index
    %38 = vector.load %arg5[%c240, %c0_24] : memref<600x80xbf16, #tpu.memory_space<vmem>>, vector<120x80xbf16>
    %c240_25 = arith.constant 240 : index
    %c0_26 = arith.constant 0 : index
    %39 = vector.load %arg6[%c240_25, %c0_26] : memref<600x80xbf16, #tpu.memory_space<vmem>>, vector<120x80xbf16>
    %40 = vector.extract_strided_slice %17 {offsets = [32, 0], sizes = [128, 120], strides = [1, 1]} : vector<384x120xbf16> to vector<128x120xbf16>
    %cst_27 = arith.constant dense<0.000000e+00> : vector<128x80xf32>
    %41 = tpu.matmul %40, %38, %cst_27 {dimension_numbers = #tpu.dot_dimension_numbers<[1], [0], [0], [1], [0, 0, 1, 1], [], []>} : vector<128x120xbf16>, vector<120x80xbf16>, vector<128x80xf32> -> vector<128x80xf32>
    %cst_28 = arith.constant dense<0.000000e+00> : vector<128x80xf32>
    %42 = tpu.matmul %40, %39, %cst_28 {dimension_numbers = #tpu.dot_dimension_numbers<[1], [0], [0], [1], [0, 0, 1, 1], [], []>} : vector<128x120xbf16>, vector<120x80xbf16>, vector<128x80xf32> -> vector<128x80xf32>
    %43 = arith.addf %31, %41 : vector<128x80xf32>
    %44 = arith.addf %32, %42 : vector<128x80xf32>
    %45 = vector.extract_strided_slice %17 {offsets = [224, 0], sizes = [128, 120], strides = [1, 1]} : vector<384x120xbf16> to vector<128x120xbf16>
    %cst_29 = arith.constant dense<0.000000e+00> : vector<128x80xf32>
    %46 = tpu.matmul %45, %38, %cst_29 {dimension_numbers = #tpu.dot_dimension_numbers<[1], [0], [0], [1], [0, 0, 1, 1], [], []>} : vector<128x120xbf16>, vector<120x80xbf16>, vector<128x80xf32> -> vector<128x80xf32>
    %cst_30 = arith.constant dense<0.000000e+00> : vector<128x80xf32>
    %47 = tpu.matmul %45, %39, %cst_30 {dimension_numbers = #tpu.dot_dimension_numbers<[1], [0], [0], [1], [0, 0, 1, 1], [], []>} : vector<128x120xbf16>, vector<120x80xbf16>, vector<128x80xf32> -> vector<128x80xf32>
    %48 = arith.addf %36, %46 : vector<128x80xf32>
    %49 = arith.addf %37, %47 : vector<128x80xf32>
    %c360 = arith.constant 360 : index
    %c0_31 = arith.constant 0 : index
    %50 = vector.load %arg5[%c360, %c0_31] : memref<600x80xbf16, #tpu.memory_space<vmem>>, vector<120x80xbf16>
    %c360_32 = arith.constant 360 : index
    %c0_33 = arith.constant 0 : index
    %51 = vector.load %arg6[%c360_32, %c0_33] : memref<600x80xbf16, #tpu.memory_space<vmem>>, vector<120x80xbf16>
    %52 = vector.extract_strided_slice %17 {offsets = [224, 0], sizes = [128, 120], strides = [1, 1]} : vector<384x120xbf16> to vector<128x120xbf16>
    %cst_34 = arith.constant dense<0.000000e+00> : vector<128x80xf32>
    %53 = tpu.matmul %52, %50, %cst_34 {dimension_numbers = #tpu.dot_dimension_numbers<[1], [0], [0], [1], [0, 0, 1, 1], [], []>} : vector<128x120xbf16>, vector<120x80xbf16>, vector<128x80xf32> -> vector<128x80xf32>
    %cst_35 = arith.constant dense<0.000000e+00> : vector<128x80xf32>
    %54 = tpu.matmul %52, %51, %cst_35 {dimension_numbers = #tpu.dot_dimension_numbers<[1], [0], [0], [1], [0, 0, 1, 1], [], []>} : vector<128x120xbf16>, vector<120x80xbf16>, vector<128x80xf32> -> vector<128x80xf32>
    %55 = arith.addf %43, %53 : vector<128x80xf32>
    %56 = arith.addf %44, %54 : vector<128x80xf32>
    %57 = vector.extract_strided_slice %17 {offsets = [64, 0], sizes = [128, 120], strides = [1, 1]} : vector<384x120xbf16> to vector<128x120xbf16>
    %cst_36 = arith.constant dense<0.000000e+00> : vector<128x80xf32>
    %58 = tpu.matmul %57, %50, %cst_36 {dimension_numbers = #tpu.dot_dimension_numbers<[1], [0], [0], [1], [0, 0, 1, 1], [], []>} : vector<128x120xbf16>, vector<120x80xbf16>, vector<128x80xf32> -> vector<128x80xf32>
    %cst_37 = arith.constant dense<0.000000e+00> : vector<128x80xf32>
    %59 = tpu.matmul %57, %51, %cst_37 {dimension_numbers = #tpu.dot_dimension_numbers<[1], [0], [0], [1], [0, 0, 1, 1], [], []>} : vector<128x120xbf16>, vector<120x80xbf16>, vector<128x80xf32> -> vector<128x80xf32>
    %60 = arith.addf %48, %58 : vector<128x80xf32>
    %61 = arith.addf %49, %59 : vector<128x80xf32>
    %c480 = arith.constant 480 : index
    %c0_38 = arith.constant 0 : index
    %62 = vector.load %arg5[%c480, %c0_38] : memref<600x80xbf16, #tpu.memory_space<vmem>>, vector<120x80xbf16>
    %c480_39 = arith.constant 480 : index
    %c0_40 = arith.constant 0 : index
    %63 = vector.load %arg6[%c480_39, %c0_40] : memref<600x80xbf16, #tpu.memory_space<vmem>>, vector<120x80xbf16>
    %64 = vector.extract_strided_slice %17 {offsets = [64, 0], sizes = [128, 120], strides = [1, 1]} : vector<384x120xbf16> to vector<128x120xbf16>
    %cst_41 = arith.constant dense<0.000000e+00> : vector<128x80xf32>
    %65 = tpu.matmul %64, %62, %cst_41 {dimension_numbers = #tpu.dot_dimension_numbers<[1], [0], [0], [1], [0, 0, 1, 1], [], []>} : vector<128x120xbf16>, vector<120x80xbf16>, vector<128x80xf32> -> vector<128x80xf32>
    %cst_42 = arith.constant dense<0.000000e+00> : vector<128x80xf32>
    %66 = tpu.matmul %64, %63, %cst_42 {dimension_numbers = #tpu.dot_dimension_numbers<[1], [0], [0], [1], [0, 0, 1, 1], [], []>} : vector<128x120xbf16>, vector<120x80xbf16>, vector<128x80xf32> -> vector<128x80xf32>
    %67 = arith.addf %55, %65 : vector<128x80xf32>
    %68 = arith.addf %56, %66 : vector<128x80xf32>
    %69 = vector.extract_strided_slice %17 {offsets = [256, 0], sizes = [128, 120], strides = [1, 1]} : vector<384x120xbf16> to vector<128x120xbf16>
    %cst_43 = arith.constant dense<0.000000e+00> : vector<128x80xf32>
    %70 = tpu.matmul %69, %62, %cst_43 {dimension_numbers = #tpu.dot_dimension_numbers<[1], [0], [0], [1], [0, 0, 1, 1], [], []>} : vector<128x120xbf16>, vector<120x80xbf16>, vector<128x80xf32> -> vector<128x80xf32>
    %cst_44 = arith.constant dense<0.000000e+00> : vector<128x80xf32>
    %71 = tpu.matmul %69, %63, %cst_44 {dimension_numbers = #tpu.dot_dimension_numbers<[1], [0], [0], [1], [0, 0, 1, 1], [], []>} : vector<128x120xbf16>, vector<120x80xbf16>, vector<128x80xf32> -> vector<128x80xf32>
    %72 = arith.addf %60, %70 : vector<128x80xf32>
    %73 = arith.addf %61, %71 : vector<128x80xf32>
    %74 = arith.maximumf %67, %68 : vector<128x80xf32>
    %75 = arith.maximumf %72, %73 : vector<128x80xf32>
    %76 = arith.maximumf %74, %75 : vector<128x80xf32>
    %c0_45 = arith.constant 0 : index
    %c0_46 = arith.constant 0 : index
    %77 = vector.load %arg7[%c0_45, %c0_46] : memref<1x80xf32, #tpu.memory_space<vmem>>, vector<1x80xf32>
    %78 = vector.broadcast %77 : vector<1x80xf32> to vector<128x80xf32>
    %79 = arith.addf %76, %78 : vector<128x80xf32>
    %cst_47 = arith.constant 0.000000e+00 : f32
    %80 = vector.broadcast %cst_47 : f32 to vector<128x80xf32>
    %81 = arith.maximumf %79, %80 : vector<128x80xf32>
    %82 = vector.extract_strided_slice %81 {offsets = [0, 0], sizes = [32, 80], strides = [1, 1]} : vector<128x80xf32> to vector<32x80xf32>
    %c0_48 = arith.constant 0 : index
    %c0_49 = arith.constant 0 : index
    %83 = vector.load %arg8[%c0_48, %c0_49] : memref<320x50xf32, #tpu.memory_space<vmem>>, vector<80x50xf32>
    %cst_50 = arith.constant dense<0.000000e+00> : vector<32x50xf32>
    %84 = tpu.matmul %82, %83, %cst_50 {dimension_numbers = #tpu.dot_dimension_numbers<[1], [0], [0], [1], [0, 0, 1, 1], [], []>} : vector<32x80xf32>, vector<80x50xf32>, vector<32x50xf32> -> vector<32x50xf32>
    %85 = vector.extract_strided_slice %81 {offsets = [32, 0], sizes = [32, 80], strides = [1, 1]} : vector<128x80xf32> to vector<32x80xf32>
    %c80 = arith.constant 80 : index
    %c0_51 = arith.constant 0 : index
    %86 = vector.load %arg8[%c80, %c0_51] : memref<320x50xf32, #tpu.memory_space<vmem>>, vector<80x50xf32>
    %cst_52 = arith.constant dense<0.000000e+00> : vector<32x50xf32>
    %87 = tpu.matmul %85, %86, %cst_52 {dimension_numbers = #tpu.dot_dimension_numbers<[1], [0], [0], [1], [0, 0, 1, 1], [], []>} : vector<32x80xf32>, vector<80x50xf32>, vector<32x50xf32> -> vector<32x50xf32>
    %88 = arith.addf %84, %87 : vector<32x50xf32>
    %89 = vector.extract_strided_slice %81 {offsets = [64, 0], sizes = [32, 80], strides = [1, 1]} : vector<128x80xf32> to vector<32x80xf32>
    %c160 = arith.constant 160 : index
    %c0_53 = arith.constant 0 : index
    %90 = vector.load %arg8[%c160, %c0_53] : memref<320x50xf32, #tpu.memory_space<vmem>>, vector<80x50xf32>
    %cst_54 = arith.constant dense<0.000000e+00> : vector<32x50xf32>
    %91 = tpu.matmul %89, %90, %cst_54 {dimension_numbers = #tpu.dot_dimension_numbers<[1], [0], [0], [1], [0, 0, 1, 1], [], []>} : vector<32x80xf32>, vector<80x50xf32>, vector<32x50xf32> -> vector<32x50xf32>
    %92 = arith.addf %88, %91 : vector<32x50xf32>
    %93 = vector.extract_strided_slice %81 {offsets = [96, 0], sizes = [32, 80], strides = [1, 1]} : vector<128x80xf32> to vector<32x80xf32>
    %c240_55 = arith.constant 240 : index
    %c0_56 = arith.constant 0 : index
    %94 = vector.load %arg8[%c240_55, %c0_56] : memref<320x50xf32, #tpu.memory_space<vmem>>, vector<80x50xf32>
    %cst_57 = arith.constant dense<0.000000e+00> : vector<32x50xf32>
    %95 = tpu.matmul %93, %94, %cst_57 {dimension_numbers = #tpu.dot_dimension_numbers<[1], [0], [0], [1], [0, 0, 1, 1], [], []>} : vector<32x80xf32>, vector<80x50xf32>, vector<32x50xf32> -> vector<32x50xf32>
    %96 = arith.addf %92, %95 : vector<32x50xf32>
    %c0_58 = arith.constant 0 : index
    %c0_59 = arith.constant 0 : index
    %97 = vector.load %arg9[%c0_58, %c0_59] : memref<1x50xf32, #tpu.memory_space<vmem>>, vector<1x50xf32>
    %98 = vector.broadcast %97 : vector<1x50xf32> to vector<32x50xf32>
    %99 = arith.addf %96, %98 : vector<32x50xf32>
    %cst_60 = arith.constant 0.000000e+00 : f32
    %100 = vector.broadcast %cst_60 : f32 to vector<32x50xf32>
    %101 = arith.maximumf %99, %100 : vector<32x50xf32>
    %c0_61 = arith.constant 0 : index
    %c0_62 = arith.constant 0 : index
    %102 = vector.load %arg10[%c0_61, %c0_62] : memref<50x128xf32, #tpu.memory_space<vmem>>, vector<50x128xf32>
    %cst_63 = arith.constant dense<0.000000e+00> : vector<32x128xf32>
    %103 = tpu.matmul %101, %102, %cst_63 {dimension_numbers = #tpu.dot_dimension_numbers<[1], [0], [0], [1], [0, 0, 1, 1], [], []>} : vector<32x50xf32>, vector<50x128xf32>, vector<32x128xf32> -> vector<32x128xf32>
    %c0_64 = arith.constant 0 : index
    %c0_65 = arith.constant 0 : index
    %104 = vector.load %arg11[%c0_64, %c0_65] : memref<1x128xf32, #tpu.memory_space<vmem>>, vector<1x128xf32>
    %105 = vector.broadcast %104 : vector<1x128xf32> to vector<32x128xf32>
    %106 = arith.addf %103, %105 : vector<32x128xf32>
    %cst_66 = arith.constant dense<0xFF800000> : vector<32xf32>
    %107 = vector.multi_reduction <maximumf>, %106, %cst_66 [1] : vector<32x128xf32> to vector<32xf32>
    %108 = vector.shape_cast %107 : vector<32xf32> to vector<32x1xf32>
    %109 = vector.broadcast %108 : vector<32x1xf32> to vector<32x128xf32>
    %110 = arith.subf %106, %109 : vector<32x128xf32>
    %111 = math.exp %110 : vector<32x128xf32>
    %cst_67 = arith.constant dense<0.000000e+00> : vector<32xf32>
    %112 = vector.multi_reduction <add>, %111, %cst_67 [1] : vector<32x128xf32> to vector<32xf32>
    %113 = vector.shape_cast %112 : vector<32xf32> to vector<32x1xf32>
    %114 = math.log %113 : vector<32x1xf32>
    %115 = vector.broadcast %114 : vector<32x1xf32> to vector<32x128xf32>
    %116 = arith.subf %110, %115 : vector<32x128xf32>
    %c0_68 = arith.constant 0 : index
    %c0_69 = arith.constant 0 : index
    %117 = vector.load %arg12[%c0_68, %c0_69] : memref<32x128xf32, #tpu.memory_space<vmem>>, vector<32x128xf32>
    tpu.vector_store %arg12[%c0_68, %c0_69], %116 {strides = array<i32>} : memref<32x128xf32, #tpu.memory_space<vmem>>, vector<32x128xf32>,
    return
  }
  func.func @transform_0(%arg0: i32) -> (i32, i32) {
    %c0_i32 = arith.constant 0 : i32
    %c0_i32_0 = arith.constant 0 : i32
    return %arg0, %c0_i32 : i32, i32
  }
  func.func @transform_1(%arg0: i32) -> (i32, i32) {
    %c0_i32 = arith.constant 0 : i32
    %c0_i32_0 = arith.constant 0 : i32
    %c0_i32_1 = arith.constant 0 : i32
    return %c0_i32, %c0_i32_0 : i32, i32
  }
  func.func @transform_2(%arg0: i32) -> (i32, i32) {
    %c0_i32 = arith.constant 0 : i32
    %c0_i32_0 = arith.constant 0 : i32
    %c0_i32_1 = arith.constant 0 : i32
    return %c0_i32, %c0_i32_0 : i32, i32
  }
  func.func @transform_3(%arg0: i32) -> (i32, i32) {
    %c0_i32 = arith.constant 0 : i32
    %c0_i32_0 = arith.constant 0 : i32
    %c0_i32_1 = arith.constant 0 : i32
    return %c0_i32, %c0_i32_0 : i32, i32
  }
  func.func @transform_4(%arg0: i32) -> (i32, i32) {
    %c0_i32 = arith.constant 0 : i32
    %c0_i32_0 = arith.constant 0 : i32
    %c0_i32_1 = arith.constant 0 : i32
    return %c0_i32, %c0_i32_0 : i32, i32
  }
  func.func @transform_5(%arg0: i32) -> (i32, i32) {
    %c0_i32 = arith.constant 0 : i32
    %c0_i32_0 = arith.constant 0 : i32
    %c0_i32_1 = arith.constant 0 : i32
    return %c0_i32, %c0_i32_0 : i32, i32
  }
  func.func @transform_6(%arg0: i32) -> (i32, i32) {
    %c0_i32 = arith.constant 0 : i32
    %c0_i32_0 = arith.constant 0 : i32
    %c0_i32_1 = arith.constant 0 : i32
    return %c0_i32, %c0_i32_0 : i32, i32
  }
  func.func @transform_7(%arg0: i32) -> (i32, i32) {
    %c0_i32 = arith.constant 0 : i32
    %c0_i32_0 = arith.constant 0 : i32
    %c0_i32_1 = arith.constant 0 : i32
    return %c0_i32, %c0_i32_0 : i32, i32
  }
  func.func @transform_8(%arg0: i32) -> (i32, i32) {
    %c0_i32 = arith.constant 0 : i32
    %c0_i32_0 = arith.constant 0 : i32
    %c0_i32_1 = arith.constant 0 : i32
    return %c0_i32, %c0_i32_0 : i32, i32
  }
  func.func @transform_9(%arg0: i32) -> (i32, i32) {
    %c0_i32 = arith.constant 0 : i32
    %c0_i32_0 = arith.constant 0 : i32
    %c0_i32_1 = arith.constant 0 : i32
    return %c0_i32, %c0_i32_0 : i32, i32
  }
  func.func @transform_10(%arg0: i32) -> (i32, i32) {
    %c0_i32 = arith.constant 0 : i32
    %c0_i32_0 = arith.constant 0 : i32
    %c0_i32_1 = arith.constant 0 : i32
    return %c0_i32, %c0_i32_0 : i32, i32
  }
  func.func @transform_11(%arg0: i32) -> (i32, i32) {
    %c0_i32 = arith.constant 0 : i32
    %c0_i32_0 = arith.constant 0 : i32
    return %arg0, %c0_i32 : i32, i32
  }
}

</mosaic_0001>

<llo_original>
// kernel: net_forward.1
$region0: #{net_forward.1}
  #allocation0 [shape = 'u32[]', space=smem, size = 0x4, offset = 0x4, fixed_abs, tag = 'smem constant byte address 0x4 - core index']
  #allocation1 [shape = 'u32[144,128]{1,0:T(1,128)}', space=vmem, size = 0x12000, scoped, tag = 'internal scratch']
  %s0 = inlined_call_operand.vmem [shape: bf16[1536,140], index: 0, kind: input, shape index: {}]
  %s1 = inlined_call_operand.vmem [shape: bf16[140,120], index: 1, kind: input, shape index: {}]
  %s2 = inlined_call_operand.vmem [shape: bf16[140,120], index: 2, kind: input, shape index: {}]
  %s3 = inlined_call_operand.vmem [shape: f32[1,120], index: 3, kind: input, shape index: {}]
  %s4 = inlined_call_operand.vmem [shape: bf16[600,80], index: 4, kind: input, shape index: {}]
  %s5 = inlined_call_operand.vmem [shape: bf16[600,80], index: 5, kind: input, shape index: {}]
  %s6 = inlined_call_operand.vmem [shape: f32[1,80], index: 6, kind: input, shape index: {}]
  %s7 = inlined_call_operand.vmem [shape: f32[320,50], index: 7, kind: input, shape index: {}]
  %s8 = inlined_call_operand.vmem [shape: f32[1,50], index: 8, kind: input, shape index: {}]
  %s9 = inlined_call_operand.vmem [shape: f32[50,128], index: 9, kind: input, shape index: {}]
  %s10 = inlined_call_operand.vmem [shape: f32[1,128], index: 10, kind: input, shape index: {}]
  %s11 = inlined_call_operand.vmem [shape: f32[64,128], index: 11, kind: output, shape index: {}]
  %s12 = sld [smem:[#allocation0]]
  $region77: #{net_forward.1} parent=0
    _
  %s14 = ssub.s32 1, %s12
  %s15 = scalar_select 0, %s14, %s12
  loop: start=0, step=1, limit=4
  $region2: #{net_forward.1} parent=0 // loop_pre_header
    _
  $region3: #{net_forward.1} parent=0 // loop_header
    %s17 = sphi 0, %s21
    %p18 = scmp.ge.s32.totalorder %s17, 4
    %s27 = sphi 0, %s29
    %s30 = sphi 0, %s27
    %s31 = sphi 0, %s30
    %s47 = sphi 0, %s31
    %s51 = sphi 0, %s51
    %s53 = sphi 0, %s51
    %s54 = sphi 0, %s53
    %s68 = sphi 0, %s54
    %s72 = sphi 0, %s72
    %s74 = sphi 0, %s72
    %s75 = sphi 0, %s74
    %s89 = sphi 0, %s75
    %s93 = sphi 0, %s93
    %s95 = sphi 0, %s93
    %s96 = sphi 0, %s95
    %s110 = sphi 0, %s96
    %s114 = sphi 0, %s114
    %s116 = sphi 0, %s114
    %s117 = sphi 0, %s116
    %s131 = sphi 0, %s117
    %s135 = sphi 0, %s135
    %s137 = sphi 0, %s135
    %s138 = sphi 0, %s137
    %s152 = sphi 0, %s138
    %s156 = sphi 0, %s156
    %s158 = sphi 0, %s156
    %s159 = sphi 0, %s158
    %s173 = sphi 0, %s159
    %s177 = sphi 0, %s177
    %s179 = sphi 0, %s177
    %s180 = sphi 0, %s179
    %s194 = sphi 0, %s180
    %s198 = sphi 0, %s198
    %s200 = sphi 0, %s198
    %s201 = sphi 0, %s200
    %s215 = sphi 0, %s201
    %s219 = sphi 0, %s219
    %s221 = sphi 0, %s219
    %s222 = sphi 0, %s221
    %s236 = sphi 0, %s222
    %s240 = sphi 0, %s240
    %s242 = sphi 0, %s240
    %s243 = sphi 0, %s242
    %s257 = sphi 0, %s243
    %s263 = sphi 0, %s265
    %s266 = sphi 0, %s263
    %s267 = sphi 0, %s266
    %s283 = sphi 0, %s267
  $region4: #{net_forward.1} parent=0 // loop_header_branch
    %20 = sbr.rel (%p18) target = $region8
  $region5: #{net_forward.1} parent=0 // loop_body
    %s22 = ssub.s32 %s17, 1
    %s23 = ssub.s32 %s17, 2
    %s24 = sadd.s32 %s17, 1
    %s25 = ssub.s32 %s17, %s24
    %p26 = scmp.eq.s32.totalorder %s25, 0
    %s28 = sadd.s32 %s27, 1
    %s29 = scalar_select %p26, %s27, %s28
    %p32 = pneg %p26
    %p33 = scmp.eq.s32.totalorder %s17, 1
    %p34 = por %p32, %p33
    %p35 = scmp.ne.s32.totalorder %s27, %s30
    %p36 = scmp.eq.s32.totalorder %s17, 0
    %p37 = por %p35, %p36
    %p38 = scmp.ne.s32.totalorder %s27, %s30
    %p39 = scmp.eq.s32.totalorder %s22, 1
    %p40 = por %p38, %p39
    %p41 = scmp.ne.s32.totalorder %s30, %s31
    %p42 = scmp.eq.s32.totalorder %s22, 0
    %p43 = por %p41, %p42
    %p44 = scmp.ne.s32.totalorder %s30, %s31
    %p45 = scmp.eq.s32.totalorder %s23, 1
    %p46 = por %p44, %p45
    %p48 = scmp.ne.s32.totalorder %s31, %s47
    %p49 = scmp.eq.s32.totalorder %s23, 0
    %p50 = por %p48, %p49
    %s52 = sadd.s32 %s51, 1
    %p55 = scmp.eq.s32.totalorder %s17, 1
    %p56 = scmp.ne.s32.totalorder %s51, %s53
    %p57 = scmp.eq.s32.totalorder %s17, 0
    %p58 = por %p56, %p57
    %p59 = scmp.ne.s32.totalorder %s51, %s53
    %p60 = scmp.eq.s32.totalorder %s22, 1
    %p61 = por %p59, %p60
    %p62 = scmp.ne.s32.totalorder %s53, %s54
    %p63 = scmp.eq.s32.totalorder %s22, 0
    %p64 = por %p62, %p63
    %p65 = scmp.ne.s32.totalorder %s53, %s54
    %p66 = scmp.eq.s32.totalorder %s23, 1
    %p67 = por %p65, %p66
    %p69 = scmp.ne.s32.totalorder %s54, %s68
    %p70 = scmp.eq.s32.totalorder %s23, 0
    %p71 = por %p69, %p70
    %s73 = sadd.s32 %s72, 1
    %p76 = scmp.eq.s32.totalorder %s17, 1
    %p77 = scmp.ne.s32.totalorder %s72, %s74
    %p78 = scmp.eq.s32.totalorder %s17, 0
    %p79 = por %p77, %p78
    %p80 = scmp.ne.s32.totalorder %s72, %s74
    %p81 = scmp.eq.s32.totalorder %s22, 1
    %p82 = por %p80, %p81
    %p83 = scmp.ne.s32.totalorder %s74, %s75
    %p84 = scmp.eq.s32.totalorder %s22, 0
    %p85 = por %p83, %p84
    %p86 = scmp.ne.s32.totalorder %s74, %s75
    %p87 = scmp.eq.s32.totalorder %s23, 1
    %p88 = por %p86, %p87
    %p90 = scmp.ne.s32.totalorder %s75, %s89
    %p91 = scmp.eq.s32.totalorder %s23, 0
    %p92 = por %p90, %p91
    %s94 = sadd.s32 %s93, 1
    %p97 = scmp.eq.s32.totalorder %s17, 1
    %p98 = scmp.ne.s32.totalorder %s93, %s95
    %p99 = scmp.eq.s32.totalorder %s17, 0
    %p100 = por %p98, %p99
    %p101 = scmp.ne.s32.totalorder %s93, %s95
    %p102 = scmp.eq.s32.totalorder %s22, 1
    %p103 = por %p101, %p102
    %p104 = scmp.ne.s32.totalorder %s95, %s96
    %p105 = scmp.eq.s32.totalorder %s22, 0
    %p106 = por %p104, %p105
    %p107 = scmp.ne.s32.totalorder %s95, %s96
    %p108 = scmp.eq.s32.totalorder %s23, 1
    %p109 = por %p107, %p108
    %p111 = scmp.ne.s32.totalorder %s96, %s110
    %p112 = scmp.eq.s32.totalorder %s23, 0
    %p113 = por %p111, %p112
    %s115 = sadd.s32 %s114, 1
    %p118 = scmp.eq.s32.totalorder %s17, 1
    %p119 = scmp.ne.s32.totalorder %s114, %s116
    %p120 = scmp.eq.s32.totalorder %s17, 0
    %p121 = por %p119, %p120
    %p122 = scmp.ne.s32.totalorder %s114, %s116
    %p123 = scmp.eq.s32.totalorder %s22, 1
    %p124 = por %p122, %p123
    %p125 = scmp.ne.s32.totalorder %s116, %s117
    %p126 = scmp.eq.s32.totalorder %s22, 0
    %p127 = por %p125, %p126
    %p128 = scmp.ne.s32.totalorder %s116, %s117
    %p129 = scmp.eq.s32.totalorder %s23, 1
    %p130 = por %p128, %p129
    %p132 = scmp.ne.s32.totalorder %s117, %s131
    %p133 = scmp.eq.s32.totalorder %s23, 0
    %p134 = por %p132, %p133
    %s136 = sadd.s32 %s135, 1
    %p139 = scmp.eq.s32.totalorder %s17, 1
    %p140 = scmp.ne.s32.totalorder %s135, %s137
    %p141 = scmp.eq.s32.totalorder %s17, 0
    %p142 = por %p140, %p141
    %p143 = scmp.ne.s32.totalorder %s135, %s137
    %p144 = scmp.eq.s32.totalorder %s22, 1
    %p145 = por %p143, %p144
    %p146 = scmp.ne.s32.totalorder %s137, %s138
    %p147 = scmp.eq.s32.totalorder %s22, 0
    %p148 = por %p146, %p147
    %p149 = scmp.ne.s32.totalorder %s137, %s138
    %p150 = scmp.eq.s32.totalorder %s23, 1
    %p151 = por %p149, %p150
    %p153 = scmp.ne.s32.totalorder %s138, %s152
    %p154 = scmp.eq.s32.totalorder %s23, 0
    %p155 = por %p153, %p154
    %s157 = sadd.s32 %s156, 1
    %p160 = scmp.eq.s32.totalorder %s17, 1
    %p161 = scmp.ne.s32.totalorder %s156, %s158
    %p162 = scmp.eq.s32.totalorder %s17, 0
    %p163 = por %p161, %p162
    %p164 = scmp.ne.s32.totalorder %s156, %s158
    %p165 = scmp.eq.s32.totalorder %s22, 1
    %p166 = por %p164, %p165
    %p167 = scmp.ne.s32.totalorder %s158, %s159
    %p168 = scmp.eq.s32.totalorder %s22, 0
    %p169 = por %p167, %p168
    %p170 = scmp.ne.s32.totalorder %s158, %s159
    %p171 = scmp.eq.s32.totalorder %s23, 1
    %p172 = por %p170, %p171
    %p174 = scmp.ne.s32.totalorder %s159, %s173
    %p175 = scmp.eq.s32.totalorder %s23, 0
    %p176 = por %p174, %p175
    %s178 = sadd.s32 %s177, 1
    %p181 = scmp.eq.s32.totalorder %s17, 1
    %p182 = scmp.ne.s32.totalorder %s177, %s179
    %p183 = scmp.eq.s32.totalorder %s17, 0
    %p184 = por %p182, %p183
    %p185 = scmp.ne.s32.totalorder %s177, %s179
    %p186 = scmp.eq.s32.totalorder %s22, 1
    %p187 = por %p185, %p186
    %p188 = scmp.ne.s32.totalorder %s179, %s180
    %p189 = scmp.eq.s32.totalorder %s22, 0
    %p190 = por %p188, %p189
    %p191 = scmp.ne.s32.totalorder %s179, %s180
    %p192 = scmp.eq.s32.totalorder %s23, 1
    %p193 = por %p191, %p192
    %p195 = scmp.ne.s32.totalorder %s180, %s194
    %p196 = scmp.eq.s32.totalorder %s23, 0
    %p197 = por %p195, %p196
    %s199 = sadd.s32 %s198, 1
    %p202 = scmp.eq.s32.totalorder %s17, 1
    %p203 = scmp.ne.s32.totalorder %s198, %s200
    %p204 = scmp.eq.s32.totalorder %s17, 0
    %p205 = por %p203, %p204
    %p206 = scmp.ne.s32.totalorder %s198, %s200
    %p207 = scmp.eq.s32.totalorder %s22, 1
    %p208 = por %p206, %p207
    %p209 = scmp.ne.s32.totalorder %s200, %s201
    %p210 = scmp.eq.s32.totalorder %s22, 0
    %p211 = por %p209, %p210
    %p212 = scmp.ne.s32.totalorder %s200, %s201
    %p213 = scmp.eq.s32.totalorder %s23, 1
    %p214 = por %p212, %p213
    %p216 = scmp.ne.s32.totalorder %s201, %s215
    %p217 = scmp.eq.s32.totalorder %s23, 0
    %p218 = por %p216, %p217
    %s220 = sadd.s32 %s219, 1
    %p223 = scmp.eq.s32.totalorder %s17, 1
    %p224 = scmp.ne.s32.totalorder %s219, %s221
    %p225 = scmp.eq.s32.totalorder %s17, 0
    %p226 = por %p224, %p225
    %p227 = scmp.ne.s32.totalorder %s219, %s221
    %p228 = scmp.eq.s32.totalorder %s22, 1
    %p229 = por %p227, %p228
    %p230 = scmp.ne.s32.totalorder %s221, %s222
    %p231 = scmp.eq.s32.totalorder %s22, 0
    %p232 = por %p230, %p231
    %p233 = scmp.ne.s32.totalorder %s221, %s222
    %p234 = scmp.eq.s32.totalorder %s23, 1
    %p235 = por %p233, %p234
    %p237 = scmp.ne.s32.totalorder %s222, %s236
    %p238 = scmp.eq.s32.totalorder %s23, 0
    %p239 = por %p237, %p238
    %s241 = sadd.s32 %s240, 1
    %p244 = scmp.eq.s32.totalorder %s17, 1
    %p245 = scmp.ne.s32.totalorder %s240, %s242
    %p246 = scmp.eq.s32.totalorder %s17, 0
    %p247 = por %p245, %p246
    %p248 = scmp.ne.s32.totalorder %s240, %s242
    %p249 = scmp.eq.s32.totalorder %s22, 1
    %p250 = por %p248, %p249
    %p251 = scmp.ne.s32.totalorder %s242, %s243
    %p252 = scmp.eq.s32.totalorder %s22, 0
    %p253 = por %p251, %p252
    %p254 = scmp.ne.s32.totalorder %s242, %s243
    %p255 = scmp.eq.s32.totalorder %s23, 1
    %p256 = por %p254, %p255
    %p258 = scmp.ne.s32.totalorder %s243, %s257
    %p259 = scmp.eq.s32.totalorder %s23, 0
    %p260 = por %p258, %p259
    %s261 = ssub.s32 %s17, %s24
    %p262 = scmp.eq.s32.totalorder %s261, 0
    %s264 = sadd.s32 %s263, 1
    %s265 = scalar_select %p262, %s263, %s264
    %p268 = pneg %p262
    %p269 = scmp.eq.s32.totalorder %s17, 1
    %p270 = por %p268, %p269
    %p271 = scmp.ne.s32.totalorder %s263, %s266
    %p272 = scmp.eq.s32.totalorder %s17, 0
    %p273 = por %p271, %p272
    %p274 = scmp.ne.s32.totalorder %s263, %s266
    %p275 = scmp.eq.s32.totalorder %s22, 1
    %p276 = por %p274, %p275
    %p277 = scmp.ne.s32.totalorder %s266, %s267
    %p278 = scmp.eq.s32.totalorder %s22, 0
    %p279 = por %p277, %p278
    %p280 = scmp.ne.s32.totalorder %s266, %s267
    %p281 = scmp.eq.s32.totalorder %s23, 1
    %p282 = por %p280, %p281
    %p284 = scmp.ne.s32.totalorder %s267, %s283
    %p285 = scmp.eq.s32.totalorder %s23, 0
    %p286 = por %p284, %p285
    %p287 = scmp.le.s32.totalorder 1, %s17
    %p288 = scmp.lt.s32.totalorder %s17, 3
    %p289 = pnand %p287, %p288
    %p290 = pneg %p289
    // Predicated region
    $region9: #{net_forward.1} parent=5 // pred_check
      _
    $region10: #{net_forward.1} parent=5 // pred_check_branch
      %292 = sbr.rel (%p289) target = $region12
    $region11: #{net_forward.1} parent=5 // pred_region
      %s293 = ssub.s32 %s17, 1
      // Predicated region
      $region13: #{net_forward.1} parent=11 // pred_check
        %p294 = pneg %p64
      $region14: #{net_forward.1} parent=11 // pred_check_branch
        %296 = sbr.rel (%p294) target = $region16
      $region15: #{net_forward.1} parent=11 // pred_region
        _
      $region16: #{net_forward.1} parent=11 // pred_fallthru
        _
      // Predicated region
      $region17: #{net_forward.1} parent=11 // pred_check
        %p297 = pneg %p85
      $region18: #{net_forward.1} parent=11 // pred_check_branch
        %299 = sbr.rel (%p297) target = $region20
      $region19: #{net_forward.1} parent=11 // pred_region
        _
      $region20: #{net_forward.1} parent=11 // pred_fallthru
        _
      // Predicated region
      $region21: #{net_forward.1} parent=11 // pred_check
        %p300 = pneg %p106
      $region22: #{net_forward.1} parent=11 // pred_check_branch
        %302 = sbr.rel (%p300) target = $region24
      $region23: #{net_forward.1} parent=11 // pred_region
        _
      $region24: #{net_forward.1} parent=11 // pred_fallthru
        _
      // Predicated region
      $region25: #{net_forward.1} parent=11 // pred_check
        %p303 = pneg %p127
      $region26: #{net_forward.1} parent=11 // pred_check_branch
        %305 = sbr.rel (%p303) target = $region28
      $region27: #{net_forward.1} parent=11 // pred_region
        _
      $region28: #{net_forward.1} parent=11 // pred_fallthru
        _
      // Predicated region
      $region29: #{net_forward.1} parent=11 // pred_check
        %p306 = pneg %p148
      $region30: #{net_forward.1} parent=11 // pred_check_branch
        %308 = sbr.rel (%p306) target = $region32
      $region31: #{net_forward.1} parent=11 // pred_region
        _
      $region32: #{net_forward.1} parent=11 // pred_fallthru
        _
      // Predicated region
      $region33: #{net_forward.1} parent=11 // pred_check
        %p309 = pneg %p169
      $region34: #{net_forward.1} parent=11 // pred_check_branch
        %311 = sbr.rel (%p309) target = $region36
      $region35: #{net_forward.1} parent=11 // pred_region
        _
      $region36: #{net_forward.1} parent=11 // pred_fallthru
        _
      // Predicated region
      $region37: #{net_forward.1} parent=11 // pred_check
        %p312 = pneg %p190
      $region38: #{net_forward.1} parent=11 // pred_check_branch
        %314 = sbr.rel (%p312) target = $region40
      $region39: #{net_forward.1} parent=11 // pred_region
        _
      $region40: #{net_forward.1} parent=11 // pred_fallthru
        _
      // Predicated region
      $region41: #{net_forward.1} parent=11 // pred_check
        %p315 = pneg %p211
      $region42: #{net_forward.1} parent=11 // pred_check_branch
        %317 = sbr.rel (%p315) target = $region44
      $region43: #{net_forward.1} parent=11 // pred_region
        _
      $region44: #{net_forward.1} parent=11 // pred_fallthru
        _
      // Predicated region
      $region45: #{net_forward.1} parent=11 // pred_check
        %p318 = pneg %p232
      $region46: #{net_forward.1} parent=11 // pred_check_branch
        %320 = sbr.rel (%p318) target = $region48
      $region47: #{net_forward.1} parent=11 // pred_region
        _
      $region48: #{net_forward.1} parent=11 // pred_fallthru
        _
      // Predicated region
      $region49: #{net_forward.1} parent=11 // pred_check
        %p321 = pneg %p253
      $region50: #{net_forward.1} parent=11 // pred_check_branch
        %323 = sbr.rel (%p321) target = $region52
      $region51: #{net_forward.1} parent=11 // pred_region
        _
      $region52: #{net_forward.1} parent=11 // pred_fallthru
        _
    $region12: #{net_forward.1} parent=5 // pred_fallthru
      _
    %p324 = scmp.lt.s32.totalorder %s17, 2
    // Predicated region
    $region53: #{net_forward.1} parent=5 // pred_check
      %p325 = pneg %p324
    $region54: #{net_forward.1} parent=5 // pred_check_branch
      %327 = sbr.rel (%p325) target = $region56
    $region55: #{net_forward.1} parent=5 // pred_region
      // Predicated region
      $region57: #{net_forward.1} parent=55 // pred_check
        %p328 = pneg %p37
      $region58: #{net_forward.1} parent=55 // pred_check_branch
        %330 = sbr.rel (%p328) target = $region60
      $region59: #{net_forward.1} parent=55 // pred_region
        %s331 = smul.u32 96, %s17
        %p332 = scmp.lt.s32.totalorder %s331, 191
        %s333 = scalar_select %p332, %s331, 191
        %s334 = smul.addr %s333, 2
        %s335 = smul.addr %s334, 4
        %s336 = scalar_lea.vmem %s0, %s335
        %s337 = smul.u32 96, %s17
      $region60: #{net_forward.1} parent=55 // pred_fallthru
        _
    $region56: #{net_forward.1} parent=5 // pred_fallthru
      _
    %p338 = scmp.le.s32.totalorder 1, %s17
    %p339 = scmp.lt.s32.totalorder %s17, 3
    %p340 = pnand %p338, %p339
    %p341 = pneg %p340
    // Predicated region
    $region61: #{net_forward.1} parent=5 // pred_check
      _
    $region62: #{net_forward.1} parent=5 // pred_check_branch
      %343 = sbr.rel (%p340) target = $region64
    $region63: #{net_forward.1} parent=5 // pred_region
      %s344 = ssub.s32 %s17, 1
      %s345 = smul.u32 96, %s22
      %p346 = scmp.lt.s32.totalorder %s345, 191
      %s347 = scalar_select %p346, %s345, 191
      %s348 = smul.addr %s347, 2
      %s349 = smul.addr %s348, 4
      %s350 = scalar_lea.vmem %s0, %s349
      %p351 = pneg %p43
      %p352 = pneg %p40
      %p353 = pneg %p64
      %p354 = pneg %p61
      %p355 = pneg %p85
      %p356 = pneg %p82
      %p357 = pneg %p106
      %p358 = pneg %p103
      %p359 = pneg %p127
      %p360 = pneg %p124
      %p361 = pneg %p148
      %p362 = pneg %p145
      %p363 = pneg %p169
      %p364 = pneg %p166
      %p365 = pneg %p190
      %p366 = pneg %p187
      %p367 = pneg %p211
      %p368 = pneg %p208
      %p369 = pneg %p232
      %p370 = pneg %p229
      %p371 = pneg %p253
      %p372 = pneg %p250
      %p373 = pneg %p279
      %p374 = pneg %p276
      %s375 = smul.u32 4, %s22
      %p376 = scmp.lt.s32.totalorder %s375, 7
      %s377 = scalar_select %p376, %s375, 7
      %s378 = smul.addr %s377, 8
      %s379 = scalar_lea.vmem %s11, %s378
      %s380 = smul.u32 96, %s22
      %p381 = scmp.lt.s32.totalorder %s380, 191
      %s382 = scalar_select %p381, %s380, 191
      %s383 = smul.addr %s382, 2
      %s384 = smul.addr %s383, 4
      %s385 = scalar_lea.vmem %s0, %s384
      %s386 = smul.u32 96, %s22
      %s387 = smul.u32 4, %s22
      %p388 = scmp.lt.s32.totalorder %s387, 7
      %s389 = scalar_select %p388, %s387, 7
      %s390 = smul.addr %s389, 8
      %s391 = scalar_lea.vmem %s11, %s390
      %s392 = smul.u32 4, %s22
      %v394 = vld [vmem:[%s385] sm:$0xff]
      %v395 = vld [vmem:[%s385 + $0x8] sm:$0xff]
      %v396 = vld [vmem:[%s385 + $0x10] sm:$0xff]
      %v397 = vld [vmem:[%s385 + $0x18] sm:$0xff]
      %v398 = vld [vmem:[%s385 + $0x20] sm:$0xff]
      %v399 = vld [vmem:[%s385 + $0x28] sm:$0xff]
      %v400 = vld [vmem:[%s385 + $0x30] sm:$0xff]
      %v401 = vld [vmem:[%s385 + $0x38] sm:$0xff]
      %v402 = vld [vmem:[%s385 + $0x40] sm:$0xff]
      %v403 = vld [vmem:[%s385 + $0x48] sm:$0xff]
      %v404 = vld [vmem:[%s385 + $0x50] sm:$0xff]
      %v405 = vld [vmem:[%s385 + $0x58] sm:$0xff]
      %v406 = vld [vmem:[%s385 + $0x60] sm:$0xff]
      %v407 = vld [vmem:[%s385 + $0x68] sm:$0xff]
      %v408 = vld [vmem:[%s385 + $0x70] sm:$0xff]
      %v409 = vld [vmem:[%s385 + $0x78] sm:$0xff]
      %v410 = vld [vmem:[%s385 + $0x80] sm:$0xff]
      %v411 = vld [vmem:[%s385 + $0x88] sm:$0xff]
      %v412 = vld [vmem:[%s385 + $0x90] sm:$0xff]
      %v413 = vld [vmem:[%s385 + $0x98] sm:$0xff]
      %v414 = vld [vmem:[%s385 + $0xa0] sm:$0xff]
      %v415 = vld [vmem:[%s385 + $0xa8] sm:$0xff]
      %v416 = vld [vmem:[%s385 + $0xb0] sm:$0xff]
      %v417 = vld [vmem:[%s385 + $0xb8] sm:$0xff]
      %v418 = vld [vmem:[%s385 + $0xc0] sm:$0xff]
      %v419 = vld [vmem:[%s385 + $0xc8] sm:$0xff]
      %v420 = vld [vmem:[%s385 + $0xd0] sm:$0xff]
      %v421 = vld [vmem:[%s385 + $0xd8] sm:$0xff]
      %v422 = vld [vmem:[%s385 + $0xe0] sm:$0xff]
      %v423 = vld [vmem:[%s385 + $0xe8] sm:$0xff]
      %v424 = vld [vmem:[%s385 + $0xf0] sm:$0xff]
      %v425 = vld [vmem:[%s385 + $0xf8] sm:$0xff]
      %v426 = vld [vmem:[%s385 + $0x100] sm:$0xff]
      %v427 = vld [vmem:[%s385 + $0x108] sm:$0xff]
      %v428 = vld [vmem:[%s385 + $0x110] sm:$0xff]
      %v429 = vld [vmem:[%s385 + $0x118] sm:$0xff]
      %v430 = vld [vmem:[%s385 + $0x120] sm:$0xff]
      %v431 = vld [vmem:[%s385 + $0x128] sm:$0xff]
      %v432 = vld [vmem:[%s385 + $0x130] sm:$0xff]
      %v433 = vld [vmem:[%s385 + $0x138] sm:$0xff]
      %v434 = vld [vmem:[%s385 + $0x140] sm:$0xff]
      %v435 = vld [vmem:[%s385 + $0x148] sm:$0xff]
      %v436 = vld [vmem:[%s385 + $0x150] sm:$0xff]
      %v437 = vld [vmem:[%s385 + $0x158] sm:$0xff]
      %v438 = vld [vmem:[%s385 + $0x160] sm:$0xff]
      %v439 = vld [vmem:[%s385 + $0x168] sm:$0xff]
      %v440 = vld [vmem:[%s385 + $0x170] sm:$0xff]
      %v441 = vld [vmem:[%s385 + $0x178] sm:$0xff]
      %v442 = vld [vmem:[%s385 + $0x180] sm:$0xff]
      %v443 = vld [vmem:[%s385 + $0x188] sm:$0xff]
      %v444 = vld [vmem:[%s385 + $0x190] sm:$0xff]
      %v445 = vld [vmem:[%s385 + $0x198] sm:$0xff]
      %v446 = vld [vmem:[%s385 + $0x1a0] sm:$0xff]
      %v447 = vld [vmem:[%s385 + $0x1a8] sm:$0xff]
      %v448 = vld [vmem:[%s385 + $0x1b0] sm:$0xff]
      %v449 = vld [vmem:[%s385 + $0x1b8] sm:$0xff]
      %v450 = vld [vmem:[%s385 + $0x1c0] sm:$0xff]
      %v451 = vld [vmem:[%s385 + $0x1c8] sm:$0xff]
      %v452 = vld [vmem:[%s385 + $0x1d0] sm:$0xff]
      %v453 = vld [vmem:[%s385 + $0x1d8] sm:$0xff]
      %v454 = vld [vmem:[%s385 + $0x1e0] sm:$0xff]
      %v455 = vld [vmem:[%s385 + $0x1e8] sm:$0xff]
      %v456 = vld [vmem:[%s385 + $0x1f0] sm:$0xff]
      %v457 = vld [vmem:[%s385 + $0x1f8] sm:$0xff]
      %v458 = vld [vmem:[%s385 + $0x200] sm:$0xff]
      %v459 = vld [vmem:[%s385 + $0x208] sm:$0xff]
      %v460 = vld [vmem:[%s385 + $0x210] sm:$0xff]
      %v461 = vld [vmem:[%s385 + $0x218] sm:$0xff]
      %v462 = vld [vmem:[%s385 + $0x220] sm:$0xff]
      %v463 = vld [vmem:[%s385 + $0x228] sm:$0xff]
      %v464 = vld [vmem:[%s385 + $0x230] sm:$0xff]
      %v465 = vld [vmem:[%s385 + $0x238] sm:$0xff]
      %v466 = vld [vmem:[%s385 + $0x240] sm:$0xff]
      %v467 = vld [vmem:[%s385 + $0x248] sm:$0xff]
      %v468 = vld [vmem:[%s385 + $0x250] sm:$0xff]
      %v469 = vld [vmem:[%s385 + $0x258] sm:$0xff]
      %v470 = vld [vmem:[%s385 + $0x260] sm:$0xff]
      %v471 = vld [vmem:[%s385 + $0x268] sm:$0xff]
      %v472 = vld [vmem:[%s385 + $0x270] sm:$0xff]
      %v473 = vld [vmem:[%s385 + $0x278] sm:$0xff]
      %v474 = vld [vmem:[%s385 + $0x280] sm:$0xff]
      %v475 = vld [vmem:[%s385 + $0x288] sm:$0xff]
      %v476 = vld [vmem:[%s385 + $0x290] sm:$0xff]
      %v477 = vld [vmem:[%s385 + $0x298] sm:$0xff]
      %v478 = vld [vmem:[%s385 + $0x2a0] sm:$0xff]
      %v479 = vld [vmem:[%s385 + $0x2a8] sm:$0xff]
      %v480 = vld [vmem:[%s385 + $0x2b0] sm:$0xff]
      %v481 = vld [vmem:[%s385 + $0x2b8] sm:$0xff]
      %v482 = vld [vmem:[%s385 + $0x2c0] sm:$0xff]
      %v483 = vld [vmem:[%s385 + $0x2c8] sm:$0xff]
      %v484 = vld [vmem:[%s385 + $0x2d0] sm:$0xff]
      %v485 = vld [vmem:[%s385 + $0x2d8] sm:$0xff]
      %v486 = vld [vmem:[%s385 + $0x2e0] sm:$0xff]
      %v487 = vld [vmem:[%s385 + $0x2e8] sm:$0xff]
      %v488 = vld [vmem:[%s385 + $0x2f0] sm:$0xff]
      %v489 = vld [vmem:[%s385 + $0x2f8] sm:$0xff]
      %v490 = vld [vmem:[%s1] sm:$0xf]
      %v491 = vld [vmem:[%s1 + $0x4] sm:$0xf]
      %v492 = vld [vmem:[%s1 + $0x8] sm:$0xf]
      %v493 = vld [vmem:[%s1 + $0xc] sm:$0xf]
      %v494 = vld [vmem:[%s1 + $0x10] sm:$0xf]
      %v495 = vld [vmem:[%s1 + $0x14] sm:$0xf]
      %v496 = vld [vmem:[%s1 + $0x18] sm:$0xf]
      %v497 = vld [vmem:[%s1 + $0x1c] sm:$0xf]
      %v498 = vld [vmem:[%s1 + $0x20] sm:$0xf]
      %v499 = vld [vmem:[%s1 + $0x24] sm:$0xf]
      %v500 = vld [vmem:[%s1 + $0x28] sm:$0xf]
      %v501 = vld [vmem:[%s1 + $0x2c] sm:$0xf]
      %v502 = vld [vmem:[%s1 + $0x30] sm:$0xf]
      %v503 = vld [vmem:[%s1 + $0x34] sm:$0xf]
      %v504 = vld [vmem:[%s1 + $0x38] sm:$0xf]
      %v505 = vld [vmem:[%s1 + $0x3c] sm:$0xf]
      %v506 = vld [vmem:[%s1 + $0x40] sm:$0xf]
      %v507 = vld [vmem:[%s1 + $0x44] sm:$0x3]
      %v604 = vunpack.c.l.b16 %v394
      %v605 = vunpack.c.h.b16 %v394
      %v606 = vunpack.c.l.b16 %v395
      %v607 = vunpack.c.h.b16 %v395
      %v608 = vunpack.c.l.b16 %v396
      %v609 = vunpack.c.h.b16 %v396
      %v610 = vunpack.c.l.b16 %v397
      %v611 = vunpack.c.h.b16 %v397
      %v612 = vunpack.c.l.b16 %v398
      %v613 = vunpack.c.h.b16 %v398
      %v614 = vunpack.c.l.b16 %v399
      %v615 = vunpack.c.h.b16 %v399
      %v616 = vunpack.c.l.b16 %v400
      %v617 = vunpack.c.h.b16 %v400
      %v618 = vunpack.c.l.b16 %v401
      %v619 = vunpack.c.h.b16 %v401
      %v620 = vunpack.c.l.b16 %v402
      %v621 = vunpack.c.h.b16 %v402
      %v622 = vunpack.c.l.b16 %v403
      %v623 = vunpack.c.h.b16 %v403
      %v624 = vunpack.c.l.b16 %v404
      %v625 = vunpack.c.h.b16 %v404
      %v626 = vunpack.c.l.b16 %v405
      %v627 = vunpack.c.h.b16 %v405
      %v628 = vunpack.c.l.b16 %v406
      %v629 = vunpack.c.h.b16 %v406
      %v630 = vunpack.c.l.b16 %v407
      %v631 = vunpack.c.h.b16 %v407
      %v632 = vunpack.c.l.b16 %v408
      %v633 = vunpack.c.h.b16 %v408
      %v634 = vunpack.c.l.b16 %v409
      %v635 = vunpack.c.h.b16 %v409
      %v636 = vunpack.c.l.b16 %v410
      %v637 = vunpack.c.h.b16 %v410
      %v638 = vunpack.c.l.b16 %v411
      %v639 = vunpack.c.h.b16 %v411
      %v640 = vunpack.c.l.b16 %v412
      %v641 = vunpack.c.h.b16 %v412
      %v642 = vunpack.c.l.b16 %v413
      %v643 = vunpack.c.h.b16 %v413
      %v644 = vunpack.c.l.b16 %v414
      %v645 = vunpack.c.h.b16 %v414
      %v646 = vunpack.c.l.b16 %v415
      %v647 = vunpack.c.h.b16 %v415
      %v648 = vunpack.c.l.b16 %v416
      %v649 = vunpack.c.h.b16 %v416
      %v650 = vunpack.c.l.b16 %v417
      %v651 = vunpack.c.h.b16 %v417
      %v652 = vunpack.c.l.b16 %v418
      %v653 = vunpack.c.h.b16 %v418
      %v654 = vunpack.c.l.b16 %v419
      %v655 = vunpack.c.h.b16 %v419
      %v656 = vunpack.c.l.b16 %v420
      %v657 = vunpack.c.h.b16 %v420
      %v658 = vunpack.c.l.b16 %v421
      %v659 = vunpack.c.h.b16 %v421
      %v660 = vunpack.c.l.b16 %v422
      %v661 = vunpack.c.h.b16 %v422
      %v662 = vunpack.c.l.b16 %v423
      %v663 = vunpack.c.h.b16 %v423
      %v664 = vunpack.c.l.b16 %v424
      %v665 = vunpack.c.h.b16 %v424
      %v666 = vunpack.c.l.b16 %v425
      %v667 = vunpack.c.h.b16 %v425
      %v668 = vunpack.c.l.b16 %v426
      %v669 = vunpack.c.h.b16 %v426
      %v670 = vunpack.c.l.b16 %v427
      %v671 = vunpack.c.h.b16 %v427
      %v672 = vunpack.c.l.b16 %v428
      %v673 = vunpack.c.h.b16 %v428
      %v674 = vunpack.c.l.b16 %v429
      %v675 = vunpack.c.h.b16 %v429
      %v676 = vunpack.c.l.b16 %v430
      %v677 = vunpack.c.h.b16 %v430
      %v678 = vunpack.c.l.b16 %v431
      %v679 = vunpack.c.h.b16 %v431
      %v680 = vunpack.c.l.b16 %v432
      %v681 = vunpack.c.h.b16 %v432
      %v682 = vunpack.c.l.b16 %v433
      %v683 = vunpack.c.h.b16 %v433
      %v684 = vunpack.c.l.b16 %v434
      %v685 = vunpack.c.h.b16 %v434
      %v686 = vunpack.c.l.b16 %v435
      %v687 = vunpack.c.h.b16 %v435
      %v688 = vunpack.c.l.b16 %v436
      %v689 = vunpack.c.h.b16 %v436
      %v690 = vunpack.c.l.b16 %v437
      %v691 = vunpack.c.h.b16 %v437
      %v692 = vunpack.c.l.b16 %v438
      %v693 = vunpack.c.h.b16 %v438
      %v694 = vunpack.c.l.b16 %v439
      %v695 = vunpack.c.h.b16 %v439
      %v696 = vunpack.c.l.b16 %v440
      %v697 = vunpack.c.h.b16 %v440
      %v698 = vunpack.c.l.b16 %v441
      %v699 = vunpack.c.h.b16 %v441
      %v700 = vunpack.c.l.b16 %v442
      %v701 = vunpack.c.h.b16 %v442
      %v702 = vunpack.c.l.b16 %v443
      %v703 = vunpack.c.h.b16 %v443
      %v704 = vunpack.c.l.b16 %v444
      %v705 = vunpack.c.h.b16 %v444
      %v706 = vunpack.c.l.b16 %v445
      %v707 = vunpack.c.h.b16 %v445
      %v708 = vunpack.c.l.b16 %v446
      %v709 = vunpack.c.h.b16 %v446
      %v710 = vunpack.c.l.b16 %v447
      %v711 = vunpack.c.h.b16 %v447
      %v712 = vunpack.c.l.b16 %v448
      %v713 = vunpack.c.h.b16 %v448
      %v714 = vunpack.c.l.b16 %v449
      %v715 = vunpack.c.h.b16 %v449
      %v716 = vunpack.c.l.b16 %v450
      %v717 = vunpack.c.h.b16 %v450
      %v718 = vunpack.c.l.b16 %v451
      %v719 = vunpack.c.h.b16 %v451
      %v720 = vunpack.c.l.b16 %v452
      %v721 = vunpack.c.h.b16 %v452
      %v722 = vunpack.c.l.b16 %v453
      %v723 = vunpack.c.h.b16 %v453
      %v724 = vunpack.c.l.b16 %v454
      %v725 = vunpack.c.h.b16 %v454
      %v726 = vunpack.c.l.b16 %v455
      %v727 = vunpack.c.h.b16 %v455
      %v728 = vunpack.c.l.b16 %v456
      %v729 = vunpack.c.h.b16 %v456
      %v730 = vunpack.c.l.b16 %v457
      %v731 = vunpack.c.h.b16 %v457
      %v732 = vunpack.c.l.b16 %v458
      %v733 = vunpack.c.h.b16 %v458
      %v734 = vunpack.c.l.b16 %v459
      %v735 = vunpack.c.h.b16 %v459
      %v736 = vunpack.c.l.b16 %v460
      %v737 = vunpack.c.h.b16 %v460
      %v738 = vunpack.c.l.b16 %v461
      %v739 = vunpack.c.h.b16 %v461
      %v740 = vunpack.c.l.b16 %v462
      %v741 = vunpack.c.h.b16 %v462
      %v742 = vunpack.c.l.b16 %v463
      %v743 = vunpack.c.h.b16 %v463
      %v744 = vunpack.c.l.b16 %v464
      %v745 = vunpack.c.h.b16 %v464
      %v746 = vunpack.c.l.b16 %v465
      %v747 = vunpack.c.h.b16 %v465
      %v748 = vunpack.c.l.b16 %v466
      %v749 = vunpack.c.h.b16 %v466
      %v750 = vunpack.c.l.b16 %v467
      %v751 = vunpack.c.h.b16 %v467
      %v752 = vunpack.c.l.b16 %v468
      %v753 = vunpack.c.h.b16 %v468
      %v754 = vunpack.c.l.b16 %v469
      %v755 = vunpack.c.h.b16 %v469
      %v756 = vunpack.c.l.b16 %v470
      %v757 = vunpack.c.h.b16 %v470
      %v758 = vunpack.c.l.b16 %v471
      %v759 = vunpack.c.h.b16 %v471
      %v760 = vunpack.c.l.b16 %v472
      %v761 = vunpack.c.h.b16 %v472
      %v762 = vunpack.c.l.b16 %v473
      %v763 = vunpack.c.h.b16 %v473
      %v764 = vunpack.c.l.b16 %v474
      %v765 = vunpack.c.h.b16 %v474
      %v766 = vunpack.c.l.b16 %v475
      %v767 = vunpack.c.h.b16 %v475
      %v768 = vunpack.c.l.b16 %v476
      %v769 = vunpack.c.h.b16 %v476
      %v770 = vunpack.c.l.b16 %v477
      %v771 = vunpack.c.h.b16 %v477
      %v772 = vunpack.c.l.b16 %v478
      %v773 = vunpack.c.h.b16 %v478
      %v774 = vunpack.c.l.b16 %v479
      %v775 = vunpack.c.h.b16 %v479
      %v776 = vunpack.c.l.b16 %v480
      %v777 = vunpack.c.h.b16 %v480
      %v778 = vunpack.c.l.b16 %v481
      %v779 = vunpack.c.h.b16 %v481
      %v780 = vunpack.c.l.b16 %v482
      %v781 = vunpack.c.h.b16 %v482
      %v782 = vunpack.c.l.b16 %v483
      %v783 = vunpack.c.h.b16 %v483
      %v784 = vunpack.c.l.b16 %v484
      %v785 = vunpack.c.h.b16 %v484
      %v786 = vunpack.c.l.b16 %v485
      %v787 = vunpack.c.h.b16 %v485
      %v788 = vunpack.c.l.b16 %v486
      %v789 = vunpack.c.h.b16 %v486
      %v790 = vunpack.c.l.b16 %v487
      %v791 = vunpack.c.h.b16 %v487
      %v792 = vunpack.c.l.b16 %v488
      %v793 = vunpack.c.h.b16 %v488
      %v794 = vunpack.c.l.b16 %v489
      %v795 = vunpack.c.h.b16 %v489
      %v796 = vpack.c.b16 %v606, %v604
      %v797 = vpack.c.b16 %v607, %v605
      %v798 = vpack.c.b16 %v610, %v608
      %v799 = vpack.c.b16 %v611, %v609
      %v800 = vpack.c.b16 %v614, %v612
      %v801 = vpack.c.b16 %v615, %v613
      %v802 = vpack.c.b16 %v618, %v616
      %v803 = vpack.c.b16 %v619, %v617
      %v804 = vpack.c.b16 %v622, %v620
      %v805 = vpack.c.b16 %v623, %v621
      %v806 = vpack.c.b16 %v626, %v624
      %v807 = vpack.c.b16 %v627, %v625
      %v808 = vpack.c.b16 %v630, %v628
      %v809 = vpack.c.b16 %v631, %v629
      %v810 = vpack.c.b16 %v634, %v632
      %v811 = vpack.c.b16 %v635, %v633
      %v812 = vpack.c.b16 %v638, %v636
      %v813 = vpack.c.b16 %v639, %v637
      %v814 = vpack.c.b16 %v642, %v640
      %v815 = vpack.c.b16 %v643, %v641
      %v816 = vpack.c.b16 %v646, %v644
      %v817 = vpack.c.b16 %v647, %v645
      %v818 = vpack.c.b16 %v650, %v648
      %v819 = vpack.c.b16 %v651, %v649
      %v820 = vpack.c.b16 %v654, %v652
      %v821 = vpack.c.b16 %v655, %v653
      %v822 = vpack.c.b16 %v658, %v656
      %v823 = vpack.c.b16 %v659, %v657
      %v824 = vpack.c.b16 %v662, %v660
      %v825 = vpack.c.b16 %v663, %v661
      %v826 = vpack.c.b16 %v666, %v664
      %v827 = vpack.c.b16 %v667, %v665
      %v828 = vpack.c.b16 %v670, %v668
      %v829 = vpack.c.b16 %v671, %v669
      %v830 = vpack.c.b16 %v674, %v672
      %v831 = vpack.c.b16 %v675, %v673
      %v832 = vpack.c.b16 %v678, %v676
      %v833 = vpack.c.b16 %v679, %v677
      %v834 = vpack.c.b16 %v682, %v680
      %v835 = vpack.c.b16 %v683, %v681
      %v836 = vpack.c.b16 %v686, %v684
      %v837 = vpack.c.b16 %v687, %v685
      %v838 = vpack.c.b16 %v690, %v688
      %v839 = vpack.c.b16 %v691, %v689
      %v840 = vpack.c.b16 %v694, %v692
      %v841 = vpack.c.b16 %v695, %v693
      %v842 = vpack.c.b16 %v698, %v696
      %v843 = vpack.c.b16 %v699, %v697
      %v844 = vpack.c.b16 %v702, %v700
      %v845 = vpack.c.b16 %v703, %v701
      %v846 = vpack.c.b16 %v706, %v704
      %v847 = vpack.c.b16 %v707, %v705
      %v848 = vpack.c.b16 %v710, %v708
      %v849 = vpack.c.b16 %v711, %v709
      %v850 = vpack.c.b16 %v714, %v712
      %v851 = vpack.c.b16 %v715, %v713
      %v852 = vpack.c.b16 %v718, %v716
      %v853 = vpack.c.b16 %v719, %v717
      %v854 = vpack.c.b16 %v722, %v720
      %v855 = vpack.c.b16 %v723, %v721
      %v856 = vpack.c.b16 %v726, %v724
      %v857 = vpack.c.b16 %v727, %v725
      %v858 = vpack.c.b16 %v730, %v728
      %v859 = vpack.c.b16 %v731, %v729
      %v860 = vpack.c.b16 %v734, %v732
      %v861 = vpack.c.b16 %v735, %v733
      %v862 = vpack.c.b16 %v738, %v736
      %v863 = vpack.c.b16 %v739, %v737
      %v864 = vpack.c.b16 %v742, %v740
      %v865 = vpack.c.b16 %v743, %v741
      %v866 = vpack.c.b16 %v746, %v744
      %v867 = vpack.c.b16 %v747, %v745
      %v868 = vpack.c.b16 %v750, %v748
      %v869 = vpack.c.b16 %v751, %v749
      %v870 = vpack.c.b16 %v754, %v752
      %v871 = vpack.c.b16 %v755, %v753
      %v872 = vpack.c.b16 %v758, %v756
      %v873 = vpack.c.b16 %v759, %v757
      %v874 = vpack.c.b16 %v762, %v760
      %v875 = vpack.c.b16 %v763, %v761
      %v876 = vpack.c.b16 %v766, %v764
      %v877 = vpack.c.b16 %v767, %v765
      %v878 = vpack.c.b16 %v770, %v768
      %v879 = vpack.c.b16 %v771, %v769
      %v880 = vpack.c.b16 %v774, %v772
      %v881 = vpack.c.b16 %v775, %v773
      %v882 = vpack.c.b16 %v778, %v776
      %v883 = vpack.c.b16 %v779, %v777
      %v884 = vpack.c.b16 %v782, %v780
      %v885 = vpack.c.b16 %v783, %v781
      %v886 = vpack.c.b16 %v786, %v784
      %v887 = vpack.c.b16 %v787, %v785
      %v888 = vpack.c.b16 %v790, %v788
      %v889 = vpack.c.b16 %v791, %v789
      %v890 = vpack.c.b16 %v794, %v792
      %v891 = vpack.c.b16 %v795, %v793
      %v958 = vunpack.c.l.b16 %v490
      %v959 = vunpack.c.l.b16 %v491
      %v960 = vunpack.c.l.b16 %v492
      %v961 = vunpack.c.l.b16 %v493
      %v962 = vunpack.c.l.b16 %v494
      %v963 = vunpack.c.l.b16 %v495
      %v964 = vunpack.c.l.b16 %v496
      %v965 = vunpack.c.l.b16 %v497
      %v966 = vunpack.c.l.b16 %v498
      %v967 = vunpack.c.l.b16 %v499
      %v968 = vunpack.c.l.b16 %v500
      %v969 = vunpack.c.l.b16 %v501
      %v970 = vunpack.c.l.b16 %v502
      %v971 = vunpack.c.l.b16 %v503
      %v972 = vunpack.c.l.b16 %v504
      %v973 = vunpack.c.l.b16 %v505
      %v974 = vunpack.c.l.b16 %v506
      %v975 = vunpack.c.l.b16 %v507
      %v976 = vpack.c.b16 %v959, %v958
      %v977 = vpack.c.b16 %v961, %v960
      %v978 = vpack.c.b16 %v963, %v962
      %v979 = vpack.c.b16 %v965, %v964
      %v980 = vpack.c.b16 %v967, %v966
      %v981 = vpack.c.b16 %v969, %v968
      %v982 = vpack.c.b16 %v971, %v970
      %v983 = vpack.c.b16 %v973, %v972
      %v984 = vpack.c.b16 %v975, %v974
      %vm993 = vcmask 97280
      %v995 = vsel %vm993, %v797, 0
      %v998 = vsel %vm993, %v799, 0
      %v1001 = vsel %vm993, %v801, 0
      %v1004 = vsel %vm993, %v803, 0
      %v1007 = vsel %vm993, %v805, 0
      %v1010 = vsel %vm993, %v807, 0
      %v1013 = vsel %vm993, %v809, 0
      %v1016 = vsel %vm993, %v811, 0
      %v1019 = vsel %vm993, %v813, 0
      %v1022 = vsel %vm993, %v815, 0
      %v1025 = vsel %vm993, %v817, 0
      %v1028 = vsel %vm993, %v819, 0
      %v1031 = vsel %vm993, %v821, 0
      %v1034 = vsel %vm993, %v823, 0
      %v1037 = vsel %vm993, %v825, 0
      %v1040 = vsel %vm993, %v827, 0
      %v1043 = vsel %vm993, %v829, 0
      %v1046 = vsel %vm993, %v831, 0
      %v1049 = vsel %vm993, %v833, 0
      %v1052 = vsel %vm993, %v835, 0
      %v1055 = vsel %vm993, %v837, 0
      %v1058 = vsel %vm993, %v839, 0
      %v1061 = vsel %vm993, %v841, 0
      %v1064 = vsel %vm993, %v843, 0
      %v1067 = vsel %vm993, %v845, 0
      %v1070 = vsel %vm993, %v847, 0
      %v1073 = vsel %vm993, %v849, 0
      %v1076 = vsel %vm993, %v851, 0
      %v1079 = vsel %vm993, %v853, 0
      %v1082 = vsel %vm993, %v855, 0
      %v1085 = vsel %vm993, %v857, 0
      %v1088 = vsel %vm993, %v859, 0
      %v1091 = vsel %vm993, %v861, 0
      %v1094 = vsel %vm993, %v863, 0
      %v1097 = vsel %vm993, %v865, 0
      %v1100 = vsel %vm993, %v867, 0
      %v1103 = vsel %vm993, %v869, 0
      %v1106 = vsel %vm993, %v871, 0
      %v1109 = vsel %vm993, %v873, 0
      %v1112 = vsel %vm993, %v875, 0
      %v1115 = vsel %vm993, %v877, 0
      %v1118 = vsel %vm993, %v879, 0
      %v1121 = vsel %vm993, %v881, 0
      %v1124 = vsel %vm993, %v883, 0
      %v1127 = vsel %vm993, %v885, 0
      %v1130 = vsel %vm993, %v887, 0
      %v1133 = vsel %vm993, %v889, 0
      %v1136 = vsel %vm993, %v891, 0
      %vm1138 = vcmask 1045504
      %v1140 = vsel %vm1138, %v984, 0
      %1142 = vmatprep.subr.bf16.mxu0 0
      %1143 = vmatpush1.bf16.msra.mxu0 %v976
      %1144 = vmatprep.subr.bf16.mxu0 0
      %1145 = vmatpush1.bf16.msra.mxu0 %v977
      %1146 = vmatprep.subr.bf16.mxu0 0
      %1147 = vmatpush1.bf16.msra.mxu0 %v978
      %1148 = vmatprep.subr.bf16.mxu0 0
      %1149 = vmatpush1.bf16.msra.mxu0 %v979
      %1150 = vmatprep.subr.bf16.mxu0 0
      %1151 = vmatpush1.bf16.msra.mxu0 %v980
      %1152 = vmatprep.subr.bf16.mxu0 0
      %1153 = vmatpush1.bf16.msra.mxu0 %v981
      %1154 = vmatprep.subr.bf16.mxu0 0
      %1155 = vmatpush1.bf16.msra.mxu0 %v982
      %1156 = vmatprep.subr.bf16.mxu0 0
      %1157 = vmatpush1.bf16.msra.mxu0 %v983
      %1158 = vmatprep.subr.bf16.mxu0 0
      %1159 = vmatpush1.bf16.msra.mxu0 %v1140
      %1160 = vmatprep.subr.bf16.mxu0 0
      %1161 = vmatpush1.bf16.msra.mxu0 0
      %1162 = vmatprep.subr.bf16.mxu0 0
      %1163 = vmatpush1.bf16.msra.mxu0 0
      %1164 = vmatprep.subr.bf16.mxu0 0
      %1165 = vmatpush1.bf16.msra.mxu0 0
      %1166 = vmatprep.subr.bf16.mxu0 0
      %1167 = vmatpush1.bf16.msra.mxu0 0
      %1168 = vmatprep.subr.bf16.mxu0 0
      %1169 = vmatpush1.bf16.msra.mxu0 0
      %1170 = vmatprep.subr.bf16.mxu0 0
      %1171 = vmatpush1.bf16.msra.mxu0 0
      %1172 = vmatprep.subr.bf16.mxu0 0
      %1173 = vmatpush1.bf16.msra.mxu0 0
      %1174 = vmatprep.mubr.bf16.mxu0 %v995
      %1175 = vmatmul.mubr.bf16.gmra.mrb[0].mxu0 %v796
      %v1176 = vpop.f32.mrb[0].mxu0
      %v1177 = vadd.f32 0.0, %v1176
      %v1178 = vpop.f32.mrb[0].mxu0
      %v1179 = vpop.f32.mrb[0].mxu0
      %v1180 = vadd.f32 0.0, %v1179
      %v1181 = vpop.f32.mrb[0].mxu0
      %1182 = vmatprep.mubr.bf16.mxu0 %v998
      %1183 = vmatmul.mubr.bf16.gmra.mrb[0].mxu0 %v798
      %v1184 = vpop.f32.mrb[0].mxu0
      %v1185 = vadd.f32 0.0, %v1184
      %v1186 = vpop.f32.mrb[0].mxu0
      %v1187 = vpop.f32.mrb[0].mxu0
      %v1188 = vadd.f32 0.0, %v1187
      %v1189 = vpop.f32.mrb[0].mxu0
      %1190 = vmatprep.mubr.bf16.mxu0 %v1001
      %1191 = vmatmul.mubr.bf16.gmra.mrb[0].mxu0 %v800
      %v1192 = vpop.f32.mrb[0].mxu0
      %v1193 = vadd.f32 0.0, %v1192
      %v1194 = vpop.f32.mrb[0].mxu0
      %v1195 = vpop.f32.mrb[0].mxu0
      %v1196 = vadd.f32 0.0, %v1195
      %v1197 = vpop.f32.mrb[0].mxu0
      %1198 = vmatprep.mubr.bf16.mxu0 %v1004
      %1199 = vmatmul.mubr.bf16.gmra.mrb[0].mxu0 %v802
      %v1200 = vpop.f32.mrb[0].mxu0
      %v1201 = vadd.f32 0.0, %v1200
      %v1202 = vpop.f32.mrb[0].mxu0
      %v1203 = vpop.f32.mrb[0].mxu0
      %v1204 = vadd.f32 0.0, %v1203
      %v1205 = vpop.f32.mrb[0].mxu0
      %1206 = vmatprep.mubr.bf16.mxu0 %v1007
      %1207 = vmatmul.mubr.bf16.gmra.mrb[0].mxu0 %v804
      %v1208 = vpop.f32.mrb[0].mxu0
      %v1209 = vadd.f32 0.0, %v1208
      %v1210 = vpop.f32.mrb[0].mxu0
      %v1211 = vpop.f32.mrb[0].mxu0
      %v1212 = vadd.f32 0.0, %v1211
      %v1213 = vpop.f32.mrb[0].mxu0
      %1214 = vmatprep.mubr.bf16.mxu0 %v1010
      %1215 = vmatmul.mubr.bf16.gmra.mrb[0].mxu0 %v806
      %v1216 = vpop.f32.mrb[0].mxu0
      %v1217 = vadd.f32 0.0, %v1216
      %v1218 = vpop.f32.mrb[0].mxu0
      %v1219 = vpop.f32.mrb[0].mxu0
      %v1220 = vadd.f32 0.0, %v1219
      %v1221 = vpop.f32.mrb[0].mxu0
      %1222 = vmatprep.mubr.bf16.mxu0 %v1013
      %1223 = vmatmul.mubr.bf16.gmra.mrb[0].mxu0 %v808
      %v1224 = vpop.f32.mrb[0].mxu0
      %v1225 = vadd.f32 0.0, %v1224
      %v1226 = vpop.f32.mrb[0].mxu0
      %v1227 = vpop.f32.mrb[0].mxu0
      %v1228 = vadd.f32 0.0, %v1227
      %v1229 = vpop.f32.mrb[0].mxu0
      %1230 = vmatprep.mubr.bf16.mxu0 %v1016
      %1231 = vmatmul.mubr.bf16.gmra.mrb[0].mxu0 %v810
      %v1232 = vpop.f32.mrb[0].mxu0
      %v1233 = vadd.f32 0.0, %v1232
      %v1234 = vpop.f32.mrb[0].mxu0
      %v1235 = vpop.f32.mrb[0].mxu0
      %v1236 = vadd.f32 0.0, %v1235
      %v1237 = vpop.f32.mrb[0].mxu0
      %1238 = vmatprep.mubr.bf16.mxu0 %v1019
      %1239 = vmatmul.mubr.bf16.gmra.mrb[0].mxu0 %v812
      %v1240 = vpop.f32.mrb[0].mxu0
      %v1241 = vadd.f32 0.0, %v1240
      %v1242 = vpop.f32.mrb[0].mxu0
      %v1243 = vpop.f32.mrb[0].mxu0
      %v1244 = vadd.f32 0.0, %v1243
      %v1245 = vpop.f32.mrb[0].mxu0
      %1246 = vmatprep.mubr.bf16.mxu0 %v1022
      %1247 = vmatmul.mubr.bf16.gmra.mrb[0].mxu0 %v814
      %v1248 = vpop.f32.mrb[0].mxu0
      %v1249 = vadd.f32 0.0, %v1248
      %v1250 = vpop.f32.mrb[0].mxu0
      %v1251 = vpop.f32.mrb[0].mxu0
      %v1252 = vadd.f32 0.0, %v1251
      %v1253 = vpop.f32.mrb[0].mxu0
      %1254 = vmatprep.mubr.bf16.mxu0 %v1025
      %1255 = vmatmul.mubr.bf16.gmra.mrb[0].mxu0 %v816
      %v1256 = vpop.f32.mrb[0].mxu0
      %v1257 = vadd.f32 0.0, %v1256
      %v1258 = vpop.f32.mrb[0].mxu0
      %v1259 = vpop.f32.mrb[0].mxu0
      %v1260 = vadd.f32 0.0, %v1259
      %v1261 = vpop.f32.mrb[0].mxu0
      %1262 = vmatprep.mubr.bf16.mxu0 %v1028
      %1263 = vmatmul.mubr.bf16.gmra.mrb[0].mxu0 %v818
      %v1264 = vpop.f32.mrb[0].mxu0
      %v1265 = vadd.f32 0.0, %v1264
      %v1266 = vpop.f32.mrb[0].mxu0
      %v1267 = vpop.f32.mrb[0].mxu0
      %v1268 = vadd.f32 0.0, %v1267
      %v1269 = vpop.f32.mrb[0].mxu0
      %1270 = vmatprep.mubr.bf16.mxu0 %v1031
      %1271 = vmatmul.mubr.bf16.gmra.mrb[0].mxu0 %v820
      %v1272 = vpop.f32.mrb[0].mxu0
      %v1273 = vadd.f32 0.0, %v1272
      %v1274 = vpop.f32.mrb[0].mxu0
      %v1275 = vpop.f32.mrb[0].mxu0
      %v1276 = vadd.f32 0.0, %v1275
      %v1277 = vpop.f32.mrb[0].mxu0
      %1278 = vmatprep.mubr.bf16.mxu0 %v1034
      %1279 = vmatmul.mubr.bf16.gmra.mrb[0].mxu0 %v822
      %v1280 = vpop.f32.mrb[0].mxu0
      %v1281 = vadd.f32 0.0, %v1280
      %v1282 = vpop.f32.mrb[0].mxu0
      %v1283 = vpop.f32.mrb[0].mxu0
      %v1284 = vadd.f32 0.0, %v1283
      %v1285 = vpop.f32.mrb[0].mxu0
      %1286 = vmatprep.mubr.bf16.mxu0 %v1037
      %1287 = vmatmul.mubr.bf16.gmra.mrb[0].mxu0 %v824
      %v1288 = vpop.f32.mrb[0].mxu0
      %v1289 = vadd.f32 0.0, %v1288
      %v1290 = vpop.f32.mrb[0].mxu0
      %v1291 = vpop.f32.mrb[0].mxu0
      %v1292 = vadd.f32 0.0, %v1291
      %v1293 = vpop.f32.mrb[0].mxu0
      %1294 = vmatprep.mubr.bf16.mxu0 %v1040
      %1295 = vmatmul.mubr.bf16.gmra.mrb[0].mxu0 %v826
      %v1296 = vpop.f32.mrb[0].mxu0
      %v1297 = vadd.f32 0.0, %v1296
      %v1298 = vpop.f32.mrb[0].mxu0
      %v1299 = vpop.f32.mrb[0].mxu0
      %v1300 = vadd.f32 0.0, %v1299
      %v1301 = vpop.f32.mrb[0].mxu0
      %1302 = vmatprep.mubr.bf16.mxu0 %v1043
      %1303 = vmatmul.mubr.bf16.gmra.mrb[0].mxu0 %v828
      %v1304 = vpop.f32.mrb[0].mxu0
      %v1305 = vadd.f32 0.0, %v1304
      %v1306 = vpop.f32.mrb[0].mxu0
      %v1307 = vpop.f32.mrb[0].mxu0
      %v1308 = vadd.f32 0.0, %v1307
      %v1309 = vpop.f32.mrb[0].mxu0
      %1310 = vmatprep.mubr.bf16.mxu0 %v1046
      %1311 = vmatmul.mubr.bf16.gmra.mrb[0].mxu0 %v830
      %v1312 = vpop.f32.mrb[0].mxu0
      %v1313 = vadd.f32 0.0, %v1312
      %v1314 = vpop.f32.mrb[0].mxu0
      %v1315 = vpop.f32.mrb[0].mxu0
      %v1316 = vadd.f32 0.0, %v1315
      %v1317 = vpop.f32.mrb[0].mxu0
      %1318 = vmatprep.mubr.bf16.mxu0 %v1049
      %1319 = vmatmul.mubr.bf16.gmra.mrb[0].mxu0 %v832
      %v1320 = vpop.f32.mrb[0].mxu0
      %v1321 = vadd.f32 0.0, %v1320
      %v1322 = vpop.f32.mrb[0].mxu0
      %v1323 = vpop.f32.mrb[0].mxu0
      %v1324 = vadd.f32 0.0, %v1323
      %v1325 = vpop.f32.mrb[0].mxu0
      %1326 = vmatprep.mubr.bf16.mxu0 %v1052
      %1327 = vmatmul.mubr.bf16.gmra.mrb[0].mxu0 %v834
      %v1328 = vpop.f32.mrb[0].mxu0
      %v1329 = vadd.f32 0.0, %v1328
      %v1330 = vpop.f32.mrb[0].mxu0
      %v1331 = vpop.f32.mrb[0].mxu0
      %v1332 = vadd.f32 0.0, %v1331
      %v1333 = vpop.f32.mrb[0].mxu0
      %1334 = vmatprep.mubr.bf16.mxu0 %v1055
      %1335 = vmatmul.mubr.bf16.gmra.mrb[0].mxu0 %v836
      %v1336 = vpop.f32.mrb[0].mxu0
      %v1337 = vadd.f32 0.0, %v1336
      %v1338 = vpop.f32.mrb[0].mxu0
      %v1339 = vpop.f32.mrb[0].mxu0
      %v1340 = vadd.f32 0.0, %v1339
      %v1341 = vpop.f32.mrb[0].mxu0
      %1342 = vmatprep.mubr.bf16.mxu0 %v1058
      %1343 = vmatmul.mubr.bf16.gmra.mrb[0].mxu0 %v838
      %v1344 = vpop.f32.mrb[0].mxu0
      %v1345 = vadd.f32 0.0, %v1344
      %v1346 = vpop.f32.mrb[0].mxu0
      %v1347 = vpop.f32.mrb[0].mxu0
      %v1348 = vadd.f32 0.0, %v1347
      %v1349 = vpop.f32.mrb[0].mxu0
      %1350 = vmatprep.mubr.bf16.mxu0 %v1061
      %1351 = vmatmul.mubr.bf16.gmra.mrb[0].mxu0 %v840
      %v1352 = vpop.f32.mrb[0].mxu0
      %v1353 = vadd.f32 0.0, %v1352
      %v1354 = vpop.f32.mrb[0].mxu0
      %v1355 = vpop.f32.mrb[0].mxu0
      %v1356 = vadd.f32 0.0, %v1355
      %v1357 = vpop.f32.mrb[0].mxu0
      %1358 = vmatprep.mubr.bf16.mxu0 %v1064
      %1359 = vmatmul.mubr.bf16.gmra.mrb[0].mxu0 %v842
      %v1360 = vpop.f32.mrb[0].mxu0
      %v1361 = vadd.f32 0.0, %v1360
      %v1362 = vpop.f32.mrb[0].mxu0
      %v1363 = vpop.f32.mrb[0].mxu0
      %v1364 = vadd.f32 0.0, %v1363
      %v1365 = vpop.f32.mrb[0].mxu0
      %1366 = vmatprep.mubr.bf16.mxu0 %v1067
      %1367 = vmatmul.mubr.bf16.gmra.mrb[0].mxu0 %v844
      %v1368 = vpop.f32.mrb[0].mxu0
      %v1369 = vadd.f32 0.0, %v1368
      %v1370 = vpop.f32.mrb[0].mxu0
      %v1371 = vpop.f32.mrb[0].mxu0
      %v1372 = vadd.f32 0.0, %v1371
      %v1373 = vpop.f32.mrb[0].mxu0
      %1374 = vmatprep.mubr.bf16.mxu0 %v1070
      %1375 = vmatmul.mubr.bf16.gmra.mrb[0].mxu0 %v846
      %v1376 = vpop.f32.mrb[0].mxu0
      %v1377 = vadd.f32 0.0, %v1376
      %v1378 = vpop.f32.mrb[0].mxu0
      %v1379 = vpop.f32.mrb[0].mxu0
      %v1380 = vadd.f32 0.0, %v1379
      %v1381 = vpop.f32.mrb[0].mxu0
      %1382 = vmatprep.mubr.bf16.mxu0 %v1073
      %1383 = vmatmul.mubr.bf16.gmra.mrb[0].mxu0 %v848
      %v1384 = vpop.f32.mrb[0].mxu0
      %v1385 = vadd.f32 0.0, %v1384
      %v1386 = vpop.f32.mrb[0].mxu0
      %v1387 = vpop.f32.mrb[0].mxu0
      %v1388 = vadd.f32 0.0, %v1387
      %v1389 = vpop.f32.mrb[0].mxu0
      %1390 = vmatprep.mubr.bf16.mxu0 %v1076
      %1391 = vmatmul.mubr.bf16.gmra.mrb[0].mxu0 %v850
      %v1392 = vpop.f32.mrb[0].mxu0
      %v1393 = vadd.f32 0.0, %v1392
      %v1394 = vpop.f32.mrb[0].mxu0
      %v1395 = vpop.f32.mrb[0].mxu0
      %v1396 = vadd.f32 0.0, %v1395
      %v1397 = vpop.f32.mrb[0].mxu0
      %1398 = vmatprep.mubr.bf16.mxu0 %v1079
      %1399 = vmatmul.mubr.bf16.gmra.mrb[0].mxu0 %v852
      %v1400 = vpop.f32.mrb[0].mxu0
      %v1401 = vadd.f32 0.0, %v1400
      %v1402 = vpop.f32.mrb[0].mxu0
      %v1403 = vpop.f32.mrb[0].mxu0
      %v1404 = vadd.f32 0.0, %v1403
      %v1405 = vpop.f32.mrb[0].mxu0
      %1406 = vmatprep.mubr.bf16.mxu0 %v1082
      %1407 = vmatmul.mubr.bf16.gmra.mrb[0].mxu0 %v854
      %v1408 = vpop.f32.mrb[0].mxu0
      %v1409 = vadd.f32 0.0, %v1408
      %v1410 = vpop.f32.mrb[0].mxu0
      %v1411 = vpop.f32.mrb[0].mxu0
      %v1412 = vadd.f32 0.0, %v1411
      %v1413 = vpop.f32.mrb[0].mxu0
      %1414 = vmatprep.mubr.bf16.mxu0 %v1085
      %1415 = vmatmul.mubr.bf16.gmra.mrb[0].mxu0 %v856
      %v1416 = vpop.f32.mrb[0].mxu0
      %v1417 = vadd.f32 0.0, %v1416
      %v1418 = vpop.f32.mrb[0].mxu0
      %v1419 = vpop.f32.mrb[0].mxu0
      %v1420 = vadd.f32 0.0, %v1419
      %v1421 = vpop.f32.mrb[0].mxu0
      %1422 = vmatprep.mubr.bf16.mxu0 %v1088
      %1423 = vmatmul.mubr.bf16.gmra.mrb[0].mxu0 %v858
      %v1424 = vpop.f32.mrb[0].mxu0
      %v1425 = vadd.f32 0.0, %v1424
      %v1426 = vpop.f32.mrb[0].mxu0
      %v1427 = vpop.f32.mrb[0].mxu0
      %v1428 = vadd.f32 0.0, %v1427
      %v1429 = vpop.f32.mrb[0].mxu0
      %1430 = vmatprep.mubr.bf16.mxu0 %v1091
      %1431 = vmatmul.mubr.bf16.gmra.mrb[0].mxu0 %v860
      %v1432 = vpop.f32.mrb[0].mxu0
      %v1433 = vadd.f32 0.0, %v1432
      %v1434 = vpop.f32.mrb[0].mxu0
      %v1435 = vpop.f32.mrb[0].mxu0
      %v1436 = vadd.f32 0.0, %v1435
      %v1437 = vpop.f32.mrb[0].mxu0
      %1438 = vmatprep.mubr.bf16.mxu0 %v1094
      %1439 = vmatmul.mubr.bf16.gmra.mrb[0].mxu0 %v862
      %v1440 = vpop.f32.mrb[0].mxu0
      %v1441 = vadd.f32 0.0, %v1440
      %v1442 = vpop.f32.mrb[0].mxu0
      %v1443 = vpop.f32.mrb[0].mxu0
      %v1444 = vadd.f32 0.0, %v1443
      %v1445 = vpop.f32.mrb[0].mxu0
      %1446 = vmatprep.mubr.bf16.mxu0 %v1097
      %1447 = vmatmul.mubr.bf16.gmra.mrb[0].mxu0 %v864
      %v1448 = vpop.f32.mrb[0].mxu0
      %v1449 = vadd.f32 0.0, %v1448
      %v1450 = vpop.f32.mrb[0].mxu0
      %v1451 = vpop.f32.mrb[0].mxu0
      %v1452 = vadd.f32 0.0, %v1451
      %v1453 = vpop.f32.mrb[0].mxu0
      %1454 = vmatprep.mubr.bf16.mxu0 %v1100
      %1455 = vmatmul.mubr.bf16.gmra.mrb[0].mxu0 %v866
      %v1456 = vpop.f32.mrb[0].mxu0
      %v1457 = vadd.f32 0.0, %v1456
      %v1458 = vpop.f32.mrb[0].mxu0
      %v1459 = vpop.f32.mrb[0].mxu0
      %v1460 = vadd.f32 0.0, %v1459
      %v1461 = vpop.f32.mrb[0].mxu0
      %1462 = vmatprep.mubr.bf16.mxu0 %v1103
      %1463 = vmatmul.mubr.bf16.gmra.mrb[0].mxu0 %v868
      %v1464 = vpop.f32.mrb[0].mxu0
      %v1465 = vadd.f32 0.0, %v1464
      %v1466 = vpop.f32.mrb[0].mxu0
      %v1467 = vpop.f32.mrb[0].mxu0
      %v1468 = vadd.f32 0.0, %v1467
      %v1469 = vpop.f32.mrb[0].mxu0
      %1470 = vmatprep.mubr.bf16.mxu0 %v1106
      %1471 = vmatmul.mubr.bf16.gmra.mrb[0].mxu0 %v870
      %v1472 = vpop.f32.mrb[0].mxu0
      %v1473 = vadd.f32 0.0, %v1472
      %v1474 = vpop.f32.mrb[0].mxu0
      %v1475 = vpop.f32.mrb[0].mxu0
      %v1476 = vadd.f32 0.0, %v1475
      %v1477 = vpop.f32.mrb[0].mxu0
      %1478 = vmatprep.mubr.bf16.mxu0 %v1109
      %1479 = vmatmul.mubr.bf16.gmra.mrb[0].mxu0 %v872
      %v1480 = vpop.f32.mrb[0].mxu0
      %v1481 = vadd.f32 0.0, %v1480
      %v1482 = vpop.f32.mrb[0].mxu0
      %v1483 = vpop.f32.mrb[0].mxu0
      %v1484 = vadd.f32 0.0, %v1483
      %v1485 = vpop.f32.mrb[0].mxu0
      %1486 = vmatprep.mubr.bf16.mxu0 %v1112
      %1487 = vmatmul.mubr.bf16.gmra.mrb[0].mxu0 %v874
      %v1488 = vpop.f32.mrb[0].mxu0
      %v1489 = vadd.f32 0.0, %v1488
      %v1490 = vpop.f32.mrb[0].mxu0
      %v1491 = vpop.f32.mrb[0].mxu0
      %v1492 = vadd.f32 0.0, %v1491
      %v1493 = vpop.f32.mrb[0].mxu0
      %1494 = vmatprep.mubr.bf16.mxu0 %v1115
      %1495 = vmatmul.mubr.bf16.gmra.mrb[0].mxu0 %v876
      %v1496 = vpop.f32.mrb[0].mxu0
      %v1497 = vadd.f32 0.0, %v1496
      %v1498 = vpop.f32.mrb[0].mxu0
      %v1499 = vpop.f32.mrb[0].mxu0
      %v1500 = vadd.f32 0.0, %v1499
      %v1501 = vpop.f32.mrb[0].mxu0
      %1502 = vmatprep.mubr.bf16.mxu0 %v1118
      %1503 = vmatmul.mubr.bf16.gmra.mrb[0].mxu0 %v878
      %v1504 = vpop.f32.mrb[0].mxu0
      %v1505 = vadd.f32 0.0, %v1504
      %v1506 = vpop.f32.mrb[0].mxu0
      %v1507 = vpop.f32.mrb[0].mxu0
      %v1508 = vadd.f32 0.0, %v1507
      %v1509 = vpop.f32.mrb[0].mxu0
      %1510 = vmatprep.mubr.bf16.mxu0 %v1121
      %1511 = vmatmul.mubr.bf16.gmra.mrb[0].mxu0 %v880
      %v1512 = vpop.f32.mrb[0].mxu0
      %v1513 = vadd.f32 0.0, %v1512
      %v1514 = vpop.f32.mrb[0].mxu0
      %v1515 = vpop.f32.mrb[0].mxu0
      %v1516 = vadd.f32 0.0, %v1515
      %v1517 = vpop.f32.mrb[0].mxu0
      %1518 = vmatprep.mubr.bf16.mxu0 %v1124
      %1519 = vmatmul.mubr.bf16.gmra.mrb[0].mxu0 %v882
      %v1520 = vpop.f32.mrb[0].mxu0
      %v1521 = vadd.f32 0.0, %v1520
      %v1522 = vpop.f32.mrb[0].mxu0
      %v1523 = vpop.f32.mrb[0].mxu0
      %v1524 = vadd.f32 0.0, %v1523
      %v1525 = vpop.f32.mrb[0].mxu0
      %1526 = vmatprep.mubr.bf16.mxu0 %v1127
      %1527 = vmatmul.mubr.bf16.gmra.mrb[0].mxu0 %v884
      %v1528 = vpop.f32.mrb[0].mxu0
      %v1529 = vadd.f32 0.0, %v1528
      %v1530 = vpop.f32.mrb[0].mxu0
      %v1531 = vpop.f32.mrb[0].mxu0
      %v1532 = vadd.f32 0.0, %v1531
      %v1533 = vpop.f32.mrb[0].mxu0
      %1534 = vmatprep.mubr.bf16.mxu0 %v1130
      %1535 = vmatmul.mubr.bf16.gmra.mrb[0].mxu0 %v886
      %v1536 = vpop.f32.mrb[0].mxu0
      %v1537 = vadd.f32 0.0, %v1536
      %v1538 = vpop.f32.mrb[0].mxu0
      %v1539 = vpop.f32.mrb[0].mxu0
      %v1540 = vadd.f32 0.0, %v1539
      %v1541 = vpop.f32.mrb[0].mxu0
      %1542 = vmatprep.mubr.bf16.mxu0 %v1133
      %1543 = vmatmul.mubr.bf16.gmra.mrb[0].mxu0 %v888
      %v1544 = vpop.f32.mrb[0].mxu0
      %v1545 = vadd.f32 0.0, %v1544
      %v1546 = vpop.f32.mrb[0].mxu0
      %v1547 = vpop.f32.mrb[0].mxu0
      %v1548 = vadd.f32 0.0, %v1547
      %v1549 = vpop.f32.mrb[0].mxu0
      %1550 = vmatprep.mubr.bf16.mxu0 %v1136
      %1551 = vmatmul.mubr.bf16.gmra.mrb[0].mxu0 %v890
      %v1552 = vpop.f32.mrb[0].mxu0
      %v1553 = vadd.f32 0.0, %v1552
      %v1554 = vpop.f32.mrb[0].mxu0
      %v1555 = vpop.f32.mrb[0].mxu0
      %v1556 = vadd.f32 0.0, %v1555
      %v1557 = vpop.f32.mrb[0].mxu0
      %1558 = vdwg.mxu0
      %v1559 = vld [vmem:[%s2] sm:$0xf]
      %v1560 = vld [vmem:[%s2 + $0x4] sm:$0xf]
      %v1561 = vld [vmem:[%s2 + $0x8] sm:$0xf]
      %v1562 = vld [vmem:[%s2 + $0xc] sm:$0xf]
      %v1563 = vld [vmem:[%s2 + $0x10] sm:$0xf]
      %v1564 = vld [vmem:[%s2 + $0x14] sm:$0xf]
      %v1565 = vld [vmem:[%s2 + $0x18] sm:$0xf]
      %v1566 = vld [vmem:[%s2 + $0x1c] sm:$0xf]
      %v1567 = vld [vmem:[%s2 + $0x20] sm:$0xf]
      %v1568 = vld [vmem:[%s2 + $0x24] sm:$0xf]
      %v1569 = vld [vmem:[%s2 + $0x28] sm:$0xf]
      %v1570 = vld [vmem:[%s2 + $0x2c] sm:$0xf]
      %v1571 = vld [vmem:[%s2 + $0x30] sm:$0xf]
      %v1572 = vld [vmem:[%s2 + $0x34] sm:$0xf]
      %v1573 = vld [vmem:[%s2 + $0x38] sm:$0xf]
      %v1574 = vld [vmem:[%s2 + $0x3c] sm:$0xf]
      %v1575 = vld [vmem:[%s2 + $0x40] sm:$0xf]
      %v1576 = vld [vmem:[%s2 + $0x44] sm:$0x3]
      %v1595 = vunpack.c.l.b16 %v1559
      %v1596 = vunpack.c.l.b16 %v1560
      %v1597 = vunpack.c.l.b16 %v1561
      %v1598 = vunpack.c.l.b16 %v1562
      %v1599 = vunpack.c.l.b16 %v1563
      %v1600 = vunpack.c.l.b16 %v1564
      %v1601 = vunpack.c.l.b16 %v1565
      %v1602 = vunpack.c.l.b16 %v1566
      %v1603 = vunpack.c.l.b16 %v1567
      %v1604 = vunpack.c.l.b16 %v1568
      %v1605 = vunpack.c.l.b16 %v1569
      %v1606 = vunpack.c.l.b16 %v1570
      %v1607 = vunpack.c.l.b16 %v1571
      %v1608 = vunpack.c.l.b16 %v1572
      %v1609 = vunpack.c.l.b16 %v1573
      %v1610 = vunpack.c.l.b16 %v1574
      %v1611 = vunpack.c.l.b16 %v1575
      %v1612 = vunpack.c.l.b16 %v1576
      %v1613 = vpack.c.b16 %v1596, %v1595
      %v1614 = vpack.c.b16 %v1598, %v1597
      %v1615 = vpack.c.b16 %v1600, %v1599
      %v1616 = vpack.c.b16 %v1602, %v1601
      %v1617 = vpack.c.b16 %v1604, %v1603
      %v1618 = vpack.c.b16 %v1606, %v1605
      %v1619 = vpack.c.b16 %v1608, %v1607
      %v1620 = vpack.c.b16 %v1610, %v1609
      %v1621 = vpack.c.b16 %v1612, %v1611
      %v1631 = vsel %vm1138, %v1621, 0
      %1633 = vmatprep.subr.bf16.mxu0 0
      %1634 = vmatpush1.bf16.msra.mxu0 %v1613
      %1635 = vmatprep.subr.bf16.mxu0 0
      %1636 = vmatpush1.bf16.msra.mxu0 %v1614
      %1637 = vmatprep.subr.bf16.mxu0 0
      %1638 = vmatpush1.bf16.msra.mxu0 %v1615
      %1639 = vmatprep.subr.bf16.mxu0 0
      %1640 = vmatpush1.bf16.msra.mxu0 %v1616
      %1641 = vmatprep.subr.bf16.mxu0 0
      %1642 = vmatpush1.bf16.msra.mxu0 %v1617
      %1643 = vmatprep.subr.bf16.mxu0 0
      %1644 = vmatpush1.bf16.msra.mxu0 %v1618
      %1645 = vmatprep.subr.bf16.mxu0 0
      %1646 = vmatpush1.bf16.msra.mxu0 %v1619
      %1647 = vmatprep.subr.bf16.mxu0 0
      %1648 = vmatpush1.bf16.msra.mxu0 %v1620
      %1649 = vmatprep.subr.bf16.mxu0 0
      %1650 = vmatpush1.bf16.msra.mxu0 %v1631
      %1651 = vmatprep.subr.bf16.mxu0 0
      %1652 = vmatpush1.bf16.msra.mxu0 0
      %1653 = vmatprep.subr.bf16.mxu0 0
      %1654 = vmatpush1.bf16.msra.mxu0 0
      %1655 = vmatprep.subr.bf16.mxu0 0
      %1656 = vmatpush1.bf16.msra.mxu0 0
      %1657 = vmatprep.subr.bf16.mxu0 0
      %1658 = vmatpush1.bf16.msra.mxu0 0
      %1659 = vmatprep.subr.bf16.mxu0 0
      %1660 = vmatpush1.bf16.msra.mxu0 0
      %1661 = vmatprep.subr.bf16.mxu0 0
      %1662 = vmatpush1.bf16.msra.mxu0 0
      %1663 = vmatprep.subr.bf16.mxu0 0
      %1664 = vmatpush1.bf16.msra.mxu0 0
      %1665 = vmatprep.mubr.bf16.mxu0 %v995
      %1666 = vmatmul.mubr.bf16.gmra.mrb[0].mxu0 %v796
      %v1667 = vpop.f32.mrb[0].mxu0
      %v1668 = vadd.f32 0.0, %v1667
      %v1669 = vpop.f32.mrb[0].mxu0
      %v1670 = vpop.f32.mrb[0].mxu0
      %v1671 = vadd.f32 0.0, %v1670
      %v1672 = vpop.f32.mrb[0].mxu0
      %1673 = vmatprep.mubr.bf16.mxu0 %v998
      %1674 = vmatmul.mubr.bf16.gmra.mrb[0].mxu0 %v798
      %v1675 = vpop.f32.mrb[0].mxu0
      %v1676 = vadd.f32 0.0, %v1675
      %v1677 = vpop.f32.mrb[0].mxu0
      %v1678 = vpop.f32.mrb[0].mxu0
      %v1679 = vadd.f32 0.0, %v1678
      %v1680 = vpop.f32.mrb[0].mxu0
      %1681 = vmatprep.mubr.bf16.mxu0 %v1001
      %1682 = vmatmul.mubr.bf16.gmra.mrb[0].mxu0 %v800
      %v1683 = vpop.f32.mrb[0].mxu0
      %v1684 = vadd.f32 0.0, %v1683
      %v1685 = vpop.f32.mrb[0].mxu0
      %v1686 = vpop.f32.mrb[0].mxu0
      %v1687 = vadd.f32 0.0, %v1686
      %v1688 = vpop.f32.mrb[0].mxu0
      %1689 = vmatprep.mubr.bf16.mxu0 %v1004
      %1690 = vmatmul.mubr.bf16.gmra.mrb[0].mxu0 %v802
      %v1691 = vpop.f32.mrb[0].mxu0
      %v1692 = vadd.f32 0.0, %v1691
      %v1693 = vpop.f32.mrb[0].mxu0
      %v1694 = vpop.f32.mrb[0].mxu0
      %v1695 = vadd.f32 0.0, %v1694
      %v1696 = vpop.f32.mrb[0].mxu0
      %1697 = vmatprep.mubr.bf16.mxu0 %v1007
      %1698 = vmatmul.mubr.bf16.gmra.mrb[0].mxu0 %v804
      %v1699 = vpop.f32.mrb[0].mxu0
      %v1700 = vadd.f32 0.0, %v1699
      %v1701 = vpop.f32.mrb[0].mxu0
      %v1702 = vpop.f32.mrb[0].mxu0
      %v1703 = vadd.f32 0.0, %v1702
      %v1704 = vpop.f32.mrb[0].mxu0
      %1705 = vmatprep.mubr.bf16.mxu0 %v1010
      %1706 = vmatmul.mubr.bf16.gmra.mrb[0].mxu0 %v806
      %v1707 = vpop.f32.mrb[0].mxu0
      %v1708 = vadd.f32 0.0, %v1707
      %v1709 = vpop.f32.mrb[0].mxu0
      %v1710 = vpop.f32.mrb[0].mxu0
      %v1711 = vadd.f32 0.0, %v1710
      %v1712 = vpop.f32.mrb[0].mxu0
      %1713 = vmatprep.mubr.bf16.mxu0 %v1013
      %1714 = vmatmul.mubr.bf16.gmra.mrb[0].mxu0 %v808
      %v1715 = vpop.f32.mrb[0].mxu0
      %v1716 = vadd.f32 0.0, %v1715
      %v1717 = vpop.f32.mrb[0].mxu0
      %v1718 = vpop.f32.mrb[0].mxu0
      %v1719 = vadd.f32 0.0, %v1718
      %v1720 = vpop.f32.mrb[0].mxu0
      %1721 = vmatprep.mubr.bf16.mxu0 %v1016
      %1722 = vmatmul.mubr.bf16.gmra.mrb[0].mxu0 %v810
      %v1723 = vpop.f32.mrb[0].mxu0
      %v1724 = vadd.f32 0.0, %v1723
      %v1725 = vpop.f32.mrb[0].mxu0
      %v1726 = vpop.f32.mrb[0].mxu0
      %v1727 = vadd.f32 0.0, %v1726
      %v1728 = vpop.f32.mrb[0].mxu0
      %1729 = vmatprep.mubr.bf16.mxu0 %v1019
      %1730 = vmatmul.mubr.bf16.gmra.mrb[0].mxu0 %v812
      %v1731 = vpop.f32.mrb[0].mxu0
      %v1732 = vadd.f32 0.0, %v1731
      %v1733 = vpop.f32.mrb[0].mxu0
      %v1734 = vpop.f32.mrb[0].mxu0
      %v1735 = vadd.f32 0.0, %v1734
      %v1736 = vpop.f32.mrb[0].mxu0
      %1737 = vmatprep.mubr.bf16.mxu0 %v1022
      %1738 = vmatmul.mubr.bf16.gmra.mrb[0].mxu0 %v814
      %v1739 = vpop.f32.mrb[0].mxu0
      %v1740 = vadd.f32 0.0, %v1739
      %v1741 = vpop.f32.mrb[0].mxu0
      %v1742 = vpop.f32.mrb[0].mxu0
      %v1743 = vadd.f32 0.0, %v1742
      %v1744 = vpop.f32.mrb[0].mxu0
      %1745 = vmatprep.mubr.bf16.mxu0 %v1025
      %1746 = vmatmul.mubr.bf16.gmra.mrb[0].mxu0 %v816
      %v1747 = vpop.f32.mrb[0].mxu0
      %v1748 = vadd.f32 0.0, %v1747
      %v1749 = vpop.f32.mrb[0].mxu0
      %v1750 = vpop.f32.mrb[0].mxu0
      %v1751 = vadd.f32 0.0, %v1750
      %v1752 = vpop.f32.mrb[0].mxu0
      %1753 = vmatprep.mubr.bf16.mxu0 %v1028
      %1754 = vmatmul.mubr.bf16.gmra.mrb[0].mxu0 %v818
      %v1755 = vpop.f32.mrb[0].mxu0
      %v1756 = vadd.f32 0.0, %v1755
      %v1757 = vpop.f32.mrb[0].mxu0
      %v1758 = vpop.f32.mrb[0].mxu0
      %v1759 = vadd.f32 0.0, %v1758
      %v1760 = vpop.f32.mrb[0].mxu0
      %1761 = vmatprep.mubr.bf16.mxu0 %v1031
      %1762 = vmatmul.mubr.bf16.gmra.mrb[0].mxu0 %v820
      %v1763 = vpop.f32.mrb[0].mxu0
      %v1764 = vadd.f32 0.0, %v1763
      %v1765 = vpop.f32.mrb[0].mxu0
      %v1766 = vpop.f32.mrb[0].mxu0
      %v1767 = vadd.f32 0.0, %v1766
      %v1768 = vpop.f32.mrb[0].mxu0
      %1769 = vmatprep.mubr.bf16.mxu0 %v1034
      %1770 = vmatmul.mubr.bf16.gmra.mrb[0].mxu0 %v822
      %v1771 = vpop.f32.mrb[0].mxu0
      %v1772 = vadd.f32 0.0, %v1771
      %v1773 = vpop.f32.mrb[0].mxu0
      %v1774 = vpop.f32.mrb[0].mxu0
      %v1775 = vadd.f32 0.0, %v1774
      %v1776 = vpop.f32.mrb[0].mxu0
      %1777 = vmatprep.mubr.bf16.mxu0 %v1037
      %1778 = vmatmul.mubr.bf16.gmra.mrb[0].mxu0 %v824
      %v1779 = vpop.f32.mrb[0].mxu0
      %v1780 = vadd.f32 0.0, %v1779
      %v1781 = vpop.f32.mrb[0].mxu0
      %v1782 = vpop.f32.mrb[0].mxu0
      %v1783 = vadd.f32 0.0, %v1782
      %v1784 = vpop.f32.mrb[0].mxu0
      %1785 = vmatprep.mubr.bf16.mxu0 %v1040
      %1786 = vmatmul.mubr.bf16.gmra.mrb[0].mxu0 %v826
      %v1787 = vpop.f32.mrb[0].mxu0
      %v1788 = vadd.f32 0.0, %v1787
      %v1789 = vpop.f32.mrb[0].mxu0
      %v1790 = vpop.f32.mrb[0].mxu0
      %v1791 = vadd.f32 0.0, %v1790
      %v1792 = vpop.f32.mrb[0].mxu0
      %1793 = vmatprep.mubr.bf16.mxu0 %v1043
      %1794 = vmatmul.mubr.bf16.gmra.mrb[0].mxu0 %v828
      %v1795 = vpop.f32.mrb[0].mxu0
      %v1796 = vadd.f32 0.0, %v1795
      %v1797 = vpop.f32.mrb[0].mxu0
      %v1798 = vpop.f32.mrb[0].mxu0
      %v1799 = vadd.f32 0.0, %v1798
      %v1800 = vpop.f32.mrb[0].mxu0
      %1801 = vmatprep.mubr.bf16.mxu0 %v1046
      %1802 = vmatmul.mubr.bf16.gmra.mrb[0].mxu0 %v830
      %v1803 = vpop.f32.mrb[0].mxu0
      %v1804 = vadd.f32 0.0, %v1803
      %v1805 = vpop.f32.mrb[0].mxu0
      %v1806 = vpop.f32.mrb[0].mxu0
      %v1807 = vadd.f32 0.0, %v1806
      %v1808 = vpop.f32.mrb[0].mxu0
      %1809 = vmatprep.mubr.bf16.mxu0 %v1049
      %1810 = vmatmul.mubr.bf16.gmra.mrb[0].mxu0 %v832
      %v1811 = vpop.f32.mrb[0].mxu0
      %v1812 = vadd.f32 0.0, %v1811
      %v1813 = vpop.f32.mrb[0].mxu0
      %v1814 = vpop.f32.mrb[0].mxu0
      %v1815 = vadd.f32 0.0, %v1814
      %v1816 = vpop.f32.mrb[0].mxu0
      %1817 = vmatprep.mubr.bf16.mxu0 %v1052
      %1818 = vmatmul.mubr.bf16.gmra.mrb[0].mxu0 %v834
      %v1819 = vpop.f32.mrb[0].mxu0
      %v1820 = vadd.f32 0.0, %v1819
      %v1821 = vpop.f32.mrb[0].mxu0
      %v1822 = vpop.f32.mrb[0].mxu0
      %v1823 = vadd.f32 0.0, %v1822
      %v1824 = vpop.f32.mrb[0].mxu0
      %1825 = vmatprep.mubr.bf16.mxu0 %v1055
      %1826 = vmatmul.mubr.bf16.gmra.mrb[0].mxu0 %v836
      %v1827 = vpop.f32.mrb[0].mxu0
      %v1828 = vadd.f32 0.0, %v1827
      %v1829 = vpop.f32.mrb[0].mxu0
      %v1830 = vpop.f32.mrb[0].mxu0
      %v1831 = vadd.f32 0.0, %v1830
      %v1832 = vpop.f32.mrb[0].mxu0
      %1833 = vmatprep.mubr.bf16.mxu0 %v1058
      %1834 = vmatmul.mubr.bf16.gmra.mrb[0].mxu0 %v838
      %v1835 = vpop.f32.mrb[0].mxu0
      %v1836 = vadd.f32 0.0, %v1835
      %v1837 = vpop.f32.mrb[0].mxu0
      %v1838 = vpop.f32.mrb[0].mxu0
      %v1839 = vadd.f32 0.0, %v1838
      %v1840 = vpop.f32.mrb[0].mxu0
      %1841 = vmatprep.mubr.bf16.mxu0 %v1061
      %1842 = vmatmul.mubr.bf16.gmra.mrb[0].mxu0 %v840
      %v1843 = vpop.f32.mrb[0].mxu0
      %v1844 = vadd.f32 0.0, %v1843
      %v1845 = vpop.f32.mrb[0].mxu0
      %v1846 = vpop.f32.mrb[0].mxu0
      %v1847 = vadd.f32 0.0, %v1846
      %v1848 = vpop.f32.mrb[0].mxu0
      %1849 = vmatprep.mubr.bf16.mxu0 %v1064
      %1850 = vmatmul.mubr.bf16.gmra.mrb[0].mxu0 %v842
      %v1851 = vpop.f32.mrb[0].mxu0
      %v1852 = vadd.f32 0.0, %v1851
      %v1853 = vpop.f32.mrb[0].mxu0
      %v1854 = vpop.f32.mrb[0].mxu0
      %v1855 = vadd.f32 0.0, %v1854
      %v1856 = vpop.f32.mrb[0].mxu0
      %1857 = vmatprep.mubr.bf16.mxu0 %v1067
      %1858 = vmatmul.mubr.bf16.gmra.mrb[0].mxu0 %v844
      %v1859 = vpop.f32.mrb[0].mxu0
      %v1860 = vadd.f32 0.0, %v1859
      %v1861 = vpop.f32.mrb[0].mxu0
      %v1862 = vpop.f32.mrb[0].mxu0
      %v1863 = vadd.f32 0.0, %v1862
      %v1864 = vpop.f32.mrb[0].mxu0
      %1865 = vmatprep.mubr.bf16.mxu0 %v1070
      %1866 = vmatmul.mubr.bf16.gmra.mrb[0].mxu0 %v846
      %v1867 = vpop.f32.mrb[0].mxu0
      %v1868 = vadd.f32 0.0, %v1867
      %v1869 = vpop.f32.mrb[0].mxu0
      %v1870 = vpop.f32.mrb[0].mxu0
      %v1871 = vadd.f32 0.0, %v1870
      %v1872 = vpop.f32.mrb[0].mxu0
      %1873 = vmatprep.mubr.bf16.mxu0 %v1073
      %1874 = vmatmul.mubr.bf16.gmra.mrb[0].mxu0 %v848
      %v1875 = vpop.f32.mrb[0].mxu0
      %v1876 = vadd.f32 0.0, %v1875
      %v1877 = vpop.f32.mrb[0].mxu0
      %v1878 = vpop.f32.mrb[0].mxu0
      %v1879 = vadd.f32 0.0, %v1878
      %v1880 = vpop.f32.mrb[0].mxu0
      %1881 = vmatprep.mubr.bf16.mxu0 %v1076
      %1882 = vmatmul.mubr.bf16.gmra.mrb[0].mxu0 %v850
      %v1883 = vpop.f32.mrb[0].mxu0
      %v1884 = vadd.f32 0.0, %v1883
      %v1885 = vpop.f32.mrb[0].mxu0
      %v1886 = vpop.f32.mrb[0].mxu0
      %v1887 = vadd.f32 0.0, %v1886
      %v1888 = vpop.f32.mrb[0].mxu0
      %1889 = vmatprep.mubr.bf16.mxu0 %v1079
      %1890 = vmatmul.mubr.bf16.gmra.mrb[0].mxu0 %v852
      %v1891 = vpop.f32.mrb[0].mxu0
      %v1892 = vadd.f32 0.0, %v1891
      %v1893 = vpop.f32.mrb[0].mxu0
      %v1894 = vpop.f32.mrb[0].mxu0
      %v1895 = vadd.f32 0.0, %v1894
      %v1896 = vpop.f32.mrb[0].mxu0
      %1897 = vmatprep.mubr.bf16.mxu0 %v1082
      %1898 = vmatmul.mubr.bf16.gmra.mrb[0].mxu0 %v854
      %v1899 = vpop.f32.mrb[0].mxu0
      %v1900 = vadd.f32 0.0, %v1899
      %v1901 = vpop.f32.mrb[0].mxu0
      %v1902 = vpop.f32.mrb[0].mxu0
      %v1903 = vadd.f32 0.0, %v1902
      %v1904 = vpop.f32.mrb[0].mxu0
      %1905 = vmatprep.mubr.bf16.mxu0 %v1085
      %1906 = vmatmul.mubr.bf16.gmra.mrb[0].mxu0 %v856
      %v1907 = vpop.f32.mrb[0].mxu0
      %v1908 = vadd.f32 0.0, %v1907
      %v1909 = vpop.f32.mrb[0].mxu0
      %v1910 = vpop.f32.mrb[0].mxu0
      %v1911 = vadd.f32 0.0, %v1910
      %v1912 = vpop.f32.mrb[0].mxu0
      %1913 = vmatprep.mubr.bf16.mxu0 %v1088
      %1914 = vmatmul.mubr.bf16.gmra.mrb[0].mxu0 %v858
      %v1915 = vpop.f32.mrb[0].mxu0
      %v1916 = vadd.f32 0.0, %v1915
      %v1917 = vpop.f32.mrb[0].mxu0
      %v1918 = vpop.f32.mrb[0].mxu0
      %v1919 = vadd.f32 0.0, %v1918
      %v1920 = vpop.f32.mrb[0].mxu0
      %1921 = vmatprep.mubr.bf16.mxu0 %v1091
      %1922 = vmatmul.mubr.bf16.gmra.mrb[0].mxu0 %v860
      %v1923 = vpop.f32.mrb[0].mxu0
      %v1924 = vadd.f32 0.0, %v1923
      %v1925 = vpop.f32.mrb[0].mxu0
      %v1926 = vpop.f32.mrb[0].mxu0
      %v1927 = vadd.f32 0.0, %v1926
      %v1928 = vpop.f32.mrb[0].mxu0
      %1929 = vmatprep.mubr.bf16.mxu0 %v1094
      %1930 = vmatmul.mubr.bf16.gmra.mrb[0].mxu0 %v862
      %v1931 = vpop.f32.mrb[0].mxu0
      %v1932 = vadd.f32 0.0, %v1931
      %v1933 = vpop.f32.mrb[0].mxu0
      %v1934 = vpop.f32.mrb[0].mxu0
      %v1935 = vadd.f32 0.0, %v1934
      %v1936 = vpop.f32.mrb[0].mxu0
      %1937 = vmatprep.mubr.bf16.mxu0 %v1097
      %1938 = vmatmul.mubr.bf16.gmra.mrb[0].mxu0 %v864
      %v1939 = vpop.f32.mrb[0].mxu0
      %v1940 = vadd.f32 0.0, %v1939
      %v1941 = vpop.f32.mrb[0].mxu0
      %v1942 = vpop.f32.mrb[0].mxu0
      %v1943 = vadd.f32 0.0, %v1942
      %v1944 = vpop.f32.mrb[0].mxu0
      %1945 = vmatprep.mubr.bf16.mxu0 %v1100
      %1946 = vmatmul.mubr.bf16.gmra.mrb[0].mxu0 %v866
      %v1947 = vpop.f32.mrb[0].mxu0
      %v1948 = vadd.f32 0.0, %v1947
      %v1949 = vpop.f32.mrb[0].mxu0
      %v1950 = vpop.f32.mrb[0].mxu0
      %v1951 = vadd.f32 0.0, %v1950
      %v1952 = vpop.f32.mrb[0].mxu0
      %1953 = vmatprep.mubr.bf16.mxu0 %v1103
      %1954 = vmatmul.mubr.bf16.gmra.mrb[0].mxu0 %v868
      %v1955 = vpop.f32.mrb[0].mxu0
      %v1956 = vadd.f32 0.0, %v1955
      %v1957 = vpop.f32.mrb[0].mxu0
      %v1958 = vpop.f32.mrb[0].mxu0
      %v1959 = vadd.f32 0.0, %v1958
      %v1960 = vpop.f32.mrb[0].mxu0
      %1961 = vmatprep.mubr.bf16.mxu0 %v1106
      %1962 = vmatmul.mubr.bf16.gmra.mrb[0].mxu0 %v870
      %v1963 = vpop.f32.mrb[0].mxu0
      %v1964 = vadd.f32 0.0, %v1963
      %v1965 = vpop.f32.mrb[0].mxu0
      %v1966 = vpop.f32.mrb[0].mxu0
      %v1967 = vadd.f32 0.0, %v1966
      %v1968 = vpop.f32.mrb[0].mxu0
      %1969 = vmatprep.mubr.bf16.mxu0 %v1109
      %1970 = vmatmul.mubr.bf16.gmra.mrb[0].mxu0 %v872
      %v1971 = vpop.f32.mrb[0].mxu0
      %v1972 = vadd.f32 0.0, %v1971
      %v1973 = vpop.f32.mrb[0].mxu0
      %v1974 = vpop.f32.mrb[0].mxu0
      %v1975 = vadd.f32 0.0, %v1974
      %v1976 = vpop.f32.mrb[0].mxu0
      %1977 = vmatprep.mubr.bf16.mxu0 %v1112
      %1978 = vmatmul.mubr.bf16.gmra.mrb[0].mxu0 %v874
      %v1979 = vpop.f32.mrb[0].mxu0
      %v1980 = vadd.f32 0.0, %v1979
      %v1981 = vpop.f32.mrb[0].mxu0
      %v1982 = vpop.f32.mrb[0].mxu0
      %v1983 = vadd.f32 0.0, %v1982
      %v1984 = vpop.f32.mrb[0].mxu0
      %1985 = vmatprep.mubr.bf16.mxu0 %v1115
      %1986 = vmatmul.mubr.bf16.gmra.mrb[0].mxu0 %v876
      %v1987 = vpop.f32.mrb[0].mxu0
      %v1988 = vadd.f32 0.0, %v1987
      %v1989 = vpop.f32.mrb[0].mxu0
      %v1990 = vpop.f32.mrb[0].mxu0
      %v1991 = vadd.f32 0.0, %v1990
      %v1992 = vpop.f32.mrb[0].mxu0
      %1993 = vmatprep.mubr.bf16.mxu0 %v1118
      %1994 = vmatmul.mubr.bf16.gmra.mrb[0].mxu0 %v878
      %v1995 = vpop.f32.mrb[0].mxu0
      %v1996 = vadd.f32 0.0, %v1995
      %v1997 = vpop.f32.mrb[0].mxu0
      %v1998 = vpop.f32.mrb[0].mxu0
      %v1999 = vadd.f32 0.0, %v1998
      %v2000 = vpop.f32.mrb[0].mxu0
      %2001 = vmatprep.mubr.bf16.mxu0 %v1121
      %2002 = vmatmul.mubr.bf16.gmra.mrb[0].mxu0 %v880
      %v2003 = vpop.f32.mrb[0].mxu0
      %v2004 = vadd.f32 0.0, %v2003
      %v2005 = vpop.f32.mrb[0].mxu0
      %v2006 = vpop.f32.mrb[0].mxu0
      %v2007 = vadd.f32 0.0, %v2006
      %v2008 = vpop.f32.mrb[0].mxu0
      %2009 = vmatprep.mubr.bf16.mxu0 %v1124
      %2010 = vmatmul.mubr.bf16.gmra.mrb[0].mxu0 %v882
      %v2011 = vpop.f32.mrb[0].mxu0
      %v2012 = vadd.f32 0.0, %v2011
      %v2013 = vpop.f32.mrb[0].mxu0
      %v2014 = vpop.f32.mrb[0].mxu0
      %v2015 = vadd.f32 0.0, %v2014
      %v2016 = vpop.f32.mrb[0].mxu0
      %2017 = vmatprep.mubr.bf16.mxu0 %v1127
      %2018 = vmatmul.mubr.bf16.gmra.mrb[0].mxu0 %v884
      %v2019 = vpop.f32.mrb[0].mxu0
      %v2020 = vadd.f32 0.0, %v2019
      %v2021 = vpop.f32.mrb[0].mxu0
      %v2022 = vpop.f32.mrb[0].mxu0
      %v2023 = vadd.f32 0.0, %v2022
      %v2024 = vpop.f32.mrb[0].mxu0
      %2025 = vmatprep.mubr.bf16.mxu0 %v1130
      %2026 = vmatmul.mubr.bf16.gmra.mrb[0].mxu0 %v886
      %v2027 = vpop.f32.mrb[0].mxu0
      %v2028 = vadd.f32 0.0, %v2027
      %v2029 = vpop.f32.mrb[0].mxu0
      %v2030 = vpop.f32.mrb[0].mxu0
      %v2031 = vadd.f32 0.0, %v2030
      %v2032 = vpop.f32.mrb[0].mxu0
      %2033 = vmatprep.mubr.bf16.mxu0 %v1133
      %2034 = vmatmul.mubr.bf16.gmra.mrb[0].mxu0 %v888
      %v2035 = vpop.f32.mrb[0].mxu0
      %v2036 = vadd.f32 0.0, %v2035
      %v2037 = vpop.f32.mrb[0].mxu0
      %v2038 = vpop.f32.mrb[0].mxu0
      %v2039 = vadd.f32 0.0, %v2038
      %v2040 = vpop.f32.mrb[0].mxu0
      %2041 = vmatprep.mubr.bf16.mxu0 %v1136
      %2042 = vmatmul.mubr.bf16.gmra.mrb[0].mxu0 %v890
      %v2043 = vpop.f32.mrb[0].mxu0
      %v2044 = vadd.f32 0.0, %v2043
      %v2045 = vpop.f32.mrb[0].mxu0
      %v2046 = vpop.f32.mrb[0].mxu0
      %v2047 = vadd.f32 0.0, %v2046
      %v2048 = vpop.f32.mrb[0].mxu0
      %2049 = vdwg.mxu0
      %v2050 = vmax.f32 %v1177, %v1369
      %v2051 = vmax.f32 %v1180, %v1372
      %v2052 = vmax.f32 %v1185, %v1377
      %v2053 = vmax.f32 %v1188, %v1380
      %v2054 = vmax.f32 %v1193, %v1385
      %v2055 = vmax.f32 %v1196, %v1388
      %v2056 = vmax.f32 %v1201, %v1393
      %v2057 = vmax.f32 %v1204, %v1396
      %v2058 = vmax.f32 %v1209, %v1401
      %v2059 = vmax.f32 %v1212, %v1404
      %v2060 = vmax.f32 %v1217, %v1409
      %v2061 = vmax.f32 %v1220, %v1412
      %v2062 = vmax.f32 %v1225, %v1417
      %v2063 = vmax.f32 %v1228, %v1420
      %v2064 = vmax.f32 %v1233, %v1425
      %v2065 = vmax.f32 %v1236, %v1428
      %v2066 = vmax.f32 %v1241, %v1433
      %v2067 = vmax.f32 %v1244, %v1436
      %v2068 = vmax.f32 %v1249, %v1441
      %v2069 = vmax.f32 %v1252, %v1444
      %v2070 = vmax.f32 %v1257, %v1449
      %v2071 = vmax.f32 %v1260, %v1452
      %v2072 = vmax.f32 %v1265, %v1457
      %v2073 = vmax.f32 %v1268, %v1460
      %v2074 = vmax.f32 %v1273, %v1465
      %v2075 = vmax.f32 %v1276, %v1468
      %v2076 = vmax.f32 %v1281, %v1473
      %v2077 = vmax.f32 %v1284, %v1476
      %v2078 = vmax.f32 %v1289, %v1481
      %v2079 = vmax.f32 %v1292, %v1484
      %v2080 = vmax.f32 %v1297, %v1489
      %v2081 = vmax.f32 %v1300, %v1492
      %v2082 = vmax.f32 %v1305, %v1497
      %v2083 = vmax.f32 %v1308, %v1500
      %v2084 = vmax.f32 %v1313, %v1505
      %v2085 = vmax.f32 %v1316, %v1508
      %v2086 = vmax.f32 %v1321, %v1513
      %v2087 = vmax.f32 %v1324, %v1516
      %v2088 = vmax.f32 %v1329, %v1521
      %v2089 = vmax.f32 %v1332, %v1524
      %v2090 = vmax.f32 %v1337, %v1529
      %v2091 = vmax.f32 %v1340, %v1532
      %v2092 = vmax.f32 %v1345, %v1537
      %v2093 = vmax.f32 %v1348, %v1540
      %v2094 = vmax.f32 %v1353, %v1545
      %v2095 = vmax.f32 %v1356, %v1548
      %v2096 = vmax.f32 %v1361, %v1553
      %v2097 = vmax.f32 %v1364, %v1556
      %v2098 = vmax.f32 %v1668, %v1860
      %v2099 = vmax.f32 %v1671, %v1863
      %v2100 = vmax.f32 %v1676, %v1868
      %v2101 = vmax.f32 %v1679, %v1871
      %v2102 = vmax.f32 %v1684, %v1876
      %v2103 = vmax.f32 %v1687, %v1879
      %v2104 = vmax.f32 %v1692, %v1884
      %v2105 = vmax.f32 %v1695, %v1887
      %v2106 = vmax.f32 %v1700, %v1892
      %v2107 = vmax.f32 %v1703, %v1895
      %v2108 = vmax.f32 %v1708, %v1900
      %v2109 = vmax.f32 %v1711, %v1903
      %v2110 = vmax.f32 %v1716, %v1908
      %v2111 = vmax.f32 %v1719, %v1911
      %v2112 = vmax.f32 %v1724, %v1916
      %v2113 = vmax.f32 %v1727, %v1919
      %v2114 = vmax.f32 %v1732, %v1924
      %v2115 = vmax.f32 %v1735, %v1927
      %v2116 = vmax.f32 %v1740, %v1932
      %v2117 = vmax.f32 %v1743, %v1935
      %v2118 = vmax.f32 %v1748, %v1940
      %v2119 = vmax.f32 %v1751, %v1943
      %v2120 = vmax.f32 %v1756, %v1948
      %v2121 = vmax.f32 %v1759, %v1951
      %v2122 = vmax.f32 %v1764, %v1956
      %v2123 = vmax.f32 %v1767, %v1959
      %v2124 = vmax.f32 %v1772, %v1964
      %v2125 = vmax.f32 %v1775, %v1967
      %v2126 = vmax.f32 %v1780, %v1972
      %v2127 = vmax.f32 %v1783, %v1975
      %v2128 = vmax.f32 %v1788, %v1980
      %v2129 = vmax.f32 %v1791, %v1983
      %v2130 = vmax.f32 %v1796, %v1988
      %v2131 = vmax.f32 %v1799, %v1991
      %v2132 = vmax.f32 %v1804, %v1996
      %v2133 = vmax.f32 %v1807, %v1999
      %v2134 = vmax.f32 %v1812, %v2004
      %v2135 = vmax.f32 %v1815, %v2007
      %v2136 = vmax.f32 %v1820, %v2012
      %v2137 = vmax.f32 %v1823, %v2015
      %v2138 = vmax.f32 %v1828, %v2020
      %v2139 = vmax.f32 %v1831, %v2023
      %v2140 = vmax.f32 %v1836, %v2028
      %v2141 = vmax.f32 %v1839, %v2031
      %v2142 = vmax.f32 %v1844, %v2036
      %v2143 = vmax.f32 %v1847, %v2039
      %v2144 = vmax.f32 %v1852, %v2044
      %v2145 = vmax.f32 %v1855, %v2047
      %v2146 = vmax.f32 %v2050, %v2098
      %v2147 = vmax.f32 %v2051, %v2099
      %v2148 = vmax.f32 %v2052, %v2100
      %v2149 = vmax.f32 %v2053, %v2101
      %v2150 = vmax.f32 %v2054, %v2102
      %v2151 = vmax.f32 %v2055, %v2103
      %v2152 = vmax.f32 %v2056, %v2104
      %v2153 = vmax.f32 %v2057, %v2105
      %v2154 = vmax.f32 %v2058, %v2106
      %v2155 = vmax.f32 %v2059, %v2107
      %v2156 = vmax.f32 %v2060, %v2108
      %v2157 = vmax.f32 %v2061, %v2109
      %v2158 = vmax.f32 %v2062, %v2110
      %v2159 = vmax.f32 %v2063, %v2111
      %v2160 = vmax.f32 %v2064, %v2112
      %v2161 = vmax.f32 %v2065, %v2113
      %v2162 = vmax.f32 %v2066, %v2114
      %v2163 = vmax.f32 %v2067, %v2115
      %v2164 = vmax.f32 %v2068, %v2116
      %v2165 = vmax.f32 %v2069, %v2117
      %v2166 = vmax.f32 %v2070, %v2118
      %v2167 = vmax.f32 %v2071, %v2119
      %v2168 = vmax.f32 %v2072, %v2120
      %v2169 = vmax.f32 %v2073, %v2121
      %v2170 = vmax.f32 %v2074, %v2122
      %v2171 = vmax.f32 %v2075, %v2123
      %v2172 = vmax.f32 %v2076, %v2124
      %v2173 = vmax.f32 %v2077, %v2125
      %v2174 = vmax.f32 %v2078, %v2126
      %v2175 = vmax.f32 %v2079, %v2127
      %v2176 = vmax.f32 %v2080, %v2128
      %v2177 = vmax.f32 %v2081, %v2129
      %v2178 = vmax.f32 %v2082, %v2130
      %v2179 = vmax.f32 %v2083, %v2131
      %v2180 = vmax.f32 %v2084, %v2132
      %v2181 = vmax.f32 %v2085, %v2133
      %v2182 = vmax.f32 %v2086, %v2134
      %v2183 = vmax.f32 %v2087, %v2135
      %v2184 = vmax.f32 %v2088, %v2136
      %v2185 = vmax.f32 %v2089, %v2137
      %v2186 = vmax.f32 %v2090, %v2138
      %v2187 = vmax.f32 %v2091, %v2139
      %v2188 = vmax.f32 %v2092, %v2140
      %v2189 = vmax.f32 %v2093, %v2141
      %v2190 = vmax.f32 %v2094, %v2142
      %v2191 = vmax.f32 %v2095, %v2143
      %v2192 = vmax.f32 %v2096, %v2144
      %v2193 = vmax.f32 %v2097, %v2145
      %v2194 = vld [vmem:[%s3] sm:$0x1]
      %v2196 = vlaneseq
      %v2197 = vshrl.u32 %v2196, 7
      %v2198 = vsub.s32 0, %v2197
      %v2199 = vrot.slane %v2194, %v2198
      %v2201 = vadd.f32 %v2146, %v2199
      %v2202 = vadd.f32 %v2147, %v2199
      %v2203 = vadd.f32 %v2148, %v2199
      %v2204 = vadd.f32 %v2149, %v2199
      %v2205 = vadd.f32 %v2150, %v2199
      %v2206 = vadd.f32 %v2151, %v2199
      %v2207 = vadd.f32 %v2152, %v2199
      %v2208 = vadd.f32 %v2153, %v2199
      %v2209 = vadd.f32 %v2154, %v2199
      %v2210 = vadd.f32 %v2155, %v2199
      %v2211 = vadd.f32 %v2156, %v2199
      %v2212 = vadd.f32 %v2157, %v2199
      %v2213 = vadd.f32 %v2158, %v2199
      %v2214 = vadd.f32 %v2159, %v2199
      %v2215 = vadd.f32 %v2160, %v2199
      %v2216 = vadd.f32 %v2161, %v2199
      %v2217 = vadd.f32 %v2162, %v2199
      %v2218 = vadd.f32 %v2163, %v2199
      %v2219 = vadd.f32 %v2164, %v2199
      %v2220 = vadd.f32 %v2165, %v2199
      %v2221 = vadd.f32 %v2166, %v2199
      %v2222 = vadd.f32 %v2167, %v2199
      %v2223 = vadd.f32 %v2168, %v2199
      %v2224 = vadd.f32 %v2169, %v2199
      %v2225 = vadd.f32 %v2170, %v2199
      %v2226 = vadd.f32 %v2171, %v2199
      %v2227 = vadd.f32 %v2172, %v2199
      %v2228 = vadd.f32 %v2173, %v2199
      %v2229 = vadd.f32 %v2174, %v2199
      %v2230 = vadd.f32 %v2175, %v2199
      %v2231 = vadd.f32 %v2176, %v2199
      %v2232 = vadd.f32 %v2177, %v2199
      %v2233 = vadd.f32 %v2178, %v2199
      %v2234 = vadd.f32 %v2179, %v2199
      %v2235 = vadd.f32 %v2180, %v2199
      %v2236 = vadd.f32 %v2181, %v2199
      %v2237 = vadd.f32 %v2182, %v2199
      %v2238 = vadd.f32 %v2183, %v2199
      %v2239 = vadd.f32 %v2184, %v2199
      %v2240 = vadd.f32 %v2185, %v2199
      %v2241 = vadd.f32 %v2186, %v2199
      %v2242 = vadd.f32 %v2187, %v2199
      %v2243 = vadd.f32 %v2188, %v2199
      %v2244 = vadd.f32 %v2189, %v2199
      %v2245 = vadd.f32 %v2190, %v2199
      %v2246 = vadd.f32 %v2191, %v2199
      %v2247 = vadd.f32 %v2192, %v2199
      %v2248 = vadd.f32 %v2193, %v2199
      %v2249 = vmax.f32 %v2201, 0.0
      %v2250 = vmax.f32 %v2202, 0.0
      %v2251 = vmax.f32 %v2203, 0.0
      %v2252 = vmax.f32 %v2204, 0.0
      %v2253 = vmax.f32 %v2205, 0.0
      %v2254 = vmax.f32 %v2206, 0.0
      %v2255 = vmax.f32 %v2207, 0.0
      %v2256 = vmax.f32 %v2208, 0.0
      %v2257 = vmax.f32 %v2209, 0.0
      %v2258 = vmax.f32 %v2210, 0.0
      %v2259 = vmax.f32 %v2211, 0.0
      %v2260 = vmax.f32 %v2212, 0.0
      %v2261 = vmax.f32 %v2213, 0.0
      %v2262 = vmax.f32 %v2214, 0.0
      %v2263 = vmax.f32 %v2215, 0.0
      %v2264 = vmax.f32 %v2216, 0.0
      %v2265 = vmax.f32 %v2217, 0.0
      %v2266 = vmax.f32 %v2218, 0.0
      %v2267 = vmax.f32 %v2219, 0.0
      %v2268 = vmax.f32 %v2220, 0.0
      %v2269 = vmax.f32 %v2221, 0.0
      %v2270 = vmax.f32 %v2222, 0.0
      %v2271 = vmax.f32 %v2223, 0.0
      %v2272 = vmax.f32 %v2224, 0.0
      %v2273 = vmax.f32 %v2225, 0.0
      %v2274 = vmax.f32 %v2226, 0.0
      %v2275 = vmax.f32 %v2227, 0.0
      %v2276 = vmax.f32 %v2228, 0.0
      %v2277 = vmax.f32 %v2229, 0.0
      %v2278 = vmax.f32 %v2230, 0.0
      %v2279 = vmax.f32 %v2231, 0.0
      %v2280 = vmax.f32 %v2232, 0.0
      %v2281 = vmax.f32 %v2233, 0.0
      %v2282 = vmax.f32 %v2234, 0.0
      %v2283 = vmax.f32 %v2235, 0.0
      %v2284 = vmax.f32 %v2236, 0.0
      %v2285 = vmax.f32 %v2237, 0.0
      %v2286 = vmax.f32 %v2238, 0.0
      %v2287 = vmax.f32 %v2239, 0.0
      %v2288 = vmax.f32 %v2240, 0.0
      %v2289 = vmax.f32 %v2241, 0.0
      %v2290 = vmax.f32 %v2242, 0.0
      %v2291 = vmax.f32 %v2243, 0.0
      %v2292 = vmax.f32 %v2244, 0.0
      %v2293 = vmax.f32 %v2245, 0.0
      %v2294 = vmax.f32 %v2246, 0.0
      %v2295 = vmax.f32 %v2247, 0.0
      %v2296 = vmax.f32 %v2248, 0.0
      %v2297 = vpack.c.bf16 %v2250, %v2249
      %v2298 = vpack.c.bf16 %v2252, %v2251
      %v2299 = vpack.c.bf16 %v2254, %v2253
      %v2300 = vpack.c.bf16 %v2256, %v2255
      %v2301 = vpack.c.bf16 %v2258, %v2257
      %v2302 = vpack.c.bf16 %v2260, %v2259
      %v2303 = vpack.c.bf16 %v2262, %v2261
      %v2304 = vpack.c.bf16 %v2264, %v2263
      %v2305 = vpack.c.bf16 %v2266, %v2265
      %v2306 = vpack.c.bf16 %v2268, %v2267
      %v2307 = vpack.c.bf16 %v2270, %v2269
      %v2308 = vpack.c.bf16 %v2272, %v2271
      %v2309 = vpack.c.bf16 %v2274, %v2273
      %v2310 = vpack.c.bf16 %v2276, %v2275
      %v2311 = vpack.c.bf16 %v2278, %v2277
      %v2312 = vpack.c.bf16 %v2280, %v2279
      %v2313 = vpack.c.bf16 %v2282, %v2281
      %v2314 = vpack.c.bf16 %v2284, %v2283
      %v2315 = vpack.c.bf16 %v2286, %v2285
      %v2316 = vpack.c.bf16 %v2288, %v2287
      %v2317 = vpack.c.bf16 %v2290, %v2289
      %v2318 = vpack.c.bf16 %v2292, %v2291
      %v2319 = vpack.c.bf16 %v2294, %v2293
      %v2320 = vpack.c.bf16 %v2296, %v2295
      %v2321 = vld [vmem:[%s4] sm:$0xf]
      %v2322 = vld [vmem:[%s4 + $0x4] sm:$0xf]
      %v2323 = vld [vmem:[%s4 + $0x8] sm:$0xf]
      %v2324 = vld [vmem:[%s4 + $0xc] sm:$0xf]
      %v2325 = vld [vmem:[%s4 + $0x10] sm:$0xf]
      %v2326 = vld [vmem:[%s4 + $0x14] sm:$0xf]
      %v2327 = vld [vmem:[%s4 + $0x18] sm:$0xf]
      %v2328 = vld [vmem:[%s4 + $0x1c] sm:$0xf]
      %v2329 = vld [vmem:[%s4 + $0x20] sm:$0xf]
      %v2330 = vld [vmem:[%s4 + $0x24] sm:$0xf]
      %v2331 = vld [vmem:[%s4 + $0x28] sm:$0xf]
      %v2332 = vld [vmem:[%s4 + $0x2c] sm:$0xf]
      %v2333 = vld [vmem:[%s4 + $0x30] sm:$0xf]
      %v2334 = vld [vmem:[%s4 + $0x34] sm:$0xf]
      %v2335 = vld [vmem:[%s4 + $0x38] sm:$0xf]
      %v2336 = vld [vmem:[%s5] sm:$0xf]
      %v2337 = vld [vmem:[%s5 + $0x4] sm:$0xf]
      %v2338 = vld [vmem:[%s5 + $0x8] sm:$0xf]
      %v2339 = vld [vmem:[%s5 + $0xc] sm:$0xf]
      %v2340 = vld [vmem:[%s5 + $0x10] sm:$0xf]
      %v2341 = vld [vmem:[%s5 + $0x14] sm:$0xf]
      %v2342 = vld [vmem:[%s5 + $0x18] sm:$0xf]
      %v2343 = vld [vmem:[%s5 + $0x1c] sm:$0xf]
      %v2344 = vld [vmem:[%s5 + $0x20] sm:$0xf]
      %v2345 = vld [vmem:[%s5 + $0x24] sm:$0xf]
      %v2346 = vld [vmem:[%s5 + $0x28] sm:$0xf]
      %v2347 = vld [vmem:[%s5 + $0x2c] sm:$0xf]
      %v2348 = vld [vmem:[%s5 + $0x30] sm:$0xf]
      %v2349 = vld [vmem:[%s5 + $0x34] sm:$0xf]
      %v2350 = vld [vmem:[%s5 + $0x38] sm:$0xf]
      %v2351 = vld [vmem:[%s4 + $0x3c] sm:$0xf]
      %v2352 = vld [vmem:[%s4 + $0x40] sm:$0xf]
      %v2353 = vld [vmem:[%s4 + $0x44] sm:$0xf]
      %v2354 = vld [vmem:[%s4 + $0x48] sm:$0xf]
      %v2355 = vld [vmem:[%s4 + $0x4c] sm:$0xf]
      %v2356 = vld [vmem:[%s4 + $0x50] sm:$0xf]
      %v2357 = vld [vmem:[%s4 + $0x54] sm:$0xf]
      %v2358 = vld [vmem:[%s4 + $0x58] sm:$0xf]
      %v2359 = vld [vmem:[%s4 + $0x5c] sm:$0xf]
      %v2360 = vld [vmem:[%s4 + $0x60] sm:$0xf]
      %v2361 = vld [vmem:[%s4 + $0x64] sm:$0xf]
      %v2362 = vld [vmem:[%s4 + $0x68] sm:$0xf]
      %v2363 = vld [vmem:[%s4 + $0x6c] sm:$0xf]
      %v2364 = vld [vmem:[%s4 + $0x70] sm:$0xf]
      %v2365 = vld [vmem:[%s4 + $0x74] sm:$0xf]
      %v2366 = vld [vmem:[%s5 + $0x3c] sm:$0xf]
      %v2367 = vld [vmem:[%s5 + $0x40] sm:$0xf]
      %v2368 = vld [vmem:[%s5 + $0x44] sm:$0xf]
      %v2369 = vld [vmem:[%s5 + $0x48] sm:$0xf]
      %v2370 = vld [vmem:[%s5 + $0x4c] sm:$0xf]
      %v2371 = vld [vmem:[%s5 + $0x50] sm:$0xf]
      %v2372 = vld [vmem:[%s5 + $0x54] sm:$0xf]
      %v2373 = vld [vmem:[%s5 + $0x58] sm:$0xf]
      %v2374 = vld [vmem:[%s5 + $0x5c] sm:$0xf]
      %v2375 = vld [vmem:[%s5 + $0x60] sm:$0xf]
      %v2376 = vld [vmem:[%s5 + $0x64] sm:$0xf]
      %v2377 = vld [vmem:[%s5 + $0x68] sm:$0xf]
      %v2378 = vld [vmem:[%s5 + $0x6c] sm:$0xf]
      %v2379 = vld [vmem:[%s5 + $0x70] sm:$0xf]
      %v2380 = vld [vmem:[%s5 + $0x74] sm:$0xf]
      %v2396 = vunpack.c.l.b16 %v2351
      %v2397 = vunpack.c.l.b16 %v2352
      %v2398 = vunpack.c.l.b16 %v2353
      %v2399 = vunpack.c.l.b16 %v2354
      %v2400 = vunpack.c.l.b16 %v2355
      %v2401 = vunpack.c.l.b16 %v2356
      %v2402 = vunpack.c.l.b16 %v2357
      %v2403 = vunpack.c.l.b16 %v2358
      %v2404 = vunpack.c.l.b16 %v2359
      %v2405 = vunpack.c.l.b16 %v2360
      %v2406 = vunpack.c.l.b16 %v2361
      %v2407 = vunpack.c.l.b16 %v2362
      %v2408 = vunpack.c.l.b16 %v2363
      %v2409 = vunpack.c.l.b16 %v2364
      %v2410 = vunpack.c.l.b16 %v2365
      %v2411 = vpack.c.b16 %v2397, %v2396
      %v2412 = vpack.c.b16 %v2399, %v2398
      %v2413 = vpack.c.b16 %v2401, %v2400
      %v2414 = vpack.c.b16 %v2403, %v2402
      %v2415 = vpack.c.b16 %v2405, %v2404
      %v2416 = vpack.c.b16 %v2407, %v2406
      %v2417 = vpack.c.b16 %v2409, %v2408
      %v2418 = vpack.c.b16 %v2410, %v2410
      %vm2426 = vcmask 982016
      %v2428 = vsel %vm2426, %v2309, 0
      %v2431 = vsel %vm2426, %v2310, 0
      %v2434 = vsel %vm2426, %v2311, 0
      %v2437 = vsel %vm2426, %v2312, 0
      %v2440 = vsel %vm2426, %v2313, 0
      %v2443 = vsel %vm2426, %v2314, 0
      %v2446 = vsel %vm2426, %v2315, 0
      %v2449 = vsel %vm2426, %v2316, 0
      %vm2451 = vcmask 1043456
      %v2453 = vsel %vm2451, %v2418, 0
      %2455 = vmatprep.subr.bf16.mxu0 0
      %2456 = vmatpush1.bf16.msra.mxu0 %v2411
      %2457 = vmatprep.subr.bf16.mxu0 0
      %2458 = vmatpush1.bf16.msra.mxu0 %v2412
      %2459 = vmatprep.subr.bf16.mxu0 0
      %2460 = vmatpush1.bf16.msra.mxu0 %v2413
      %2461 = vmatprep.subr.bf16.mxu0 0
      %2462 = vmatpush1.bf16.msra.mxu0 %v2414
      %2463 = vmatprep.subr.bf16.mxu0 0
      %2464 = vmatpush1.bf16.msra.mxu0 %v2415
      %2465 = vmatprep.subr.bf16.mxu0 0
      %2466 = vmatpush1.bf16.msra.mxu0 %v2416
      %2467 = vmatprep.subr.bf16.mxu0 0
      %2468 = vmatpush1.bf16.msra.mxu0 %v2417
      %2469 = vmatprep.subr.bf16.mxu0 0
      %2470 = vmatpush1.bf16.msra.mxu0 %v2453
      %2471 = vmatprep.subr.bf16.mxu0 0
      %2472 = vmatpush1.bf16.msra.mxu0 0
      %2473 = vmatprep.subr.bf16.mxu0 0
      %2474 = vmatpush1.bf16.msra.mxu0 0
      %2475 = vmatprep.subr.bf16.mxu0 0
      %2476 = vmatpush1.bf16.msra.mxu0 0
      %2477 = vmatprep.subr.bf16.mxu0 0
      %2478 = vmatpush1.bf16.msra.mxu0 0
      %2479 = vmatprep.subr.bf16.mxu0 0
      %2480 = vmatpush1.bf16.msra.mxu0 0
      %2481 = vmatprep.subr.bf16.mxu0 0
      %2482 = vmatpush1.bf16.msra.mxu0 0
      %2483 = vmatprep.subr.bf16.mxu0 0
      %2484 = vmatpush1.bf16.msra.mxu0 0
      %2485 = vmatprep.subr.bf16.mxu0 0
      %2486 = vmatpush1.bf16.msra.mxu0 0
      %2487 = vmatprep.mubr.bf16.mxu0 0
      %2488 = vmatmul.mubr.bf16.gmra.mrb[0].mxu0 %v2428
      %v2489 = vpop.f32.mrb[0].mxu0
      %v2490 = vadd.f32 0.0, %v2489
      %v2491 = vpop.f32.mrb[0].mxu0
      %v2492 = vpop.f32.mrb[0].mxu0
      %v2493 = vadd.f32 0.0, %v2492
      %v2494 = vpop.f32.mrb[0].mxu0
      %2495 = vmatprep.mubr.bf16.mxu0 0
      %2496 = vmatmul.mubr.bf16.gmra.mrb[0].mxu0 %v2431
      %v2497 = vpop.f32.mrb[0].mxu0
      %v2498 = vadd.f32 0.0, %v2497
      %v2499 = vpop.f32.mrb[0].mxu0
      %v2500 = vpop.f32.mrb[0].mxu0
      %v2501 = vadd.f32 0.0, %v2500
      %v2502 = vpop.f32.mrb[0].mxu0
      %2503 = vmatprep.mubr.bf16.mxu0 0
      %2504 = vmatmul.mubr.bf16.gmra.mrb[0].mxu0 %v2434
      %v2505 = vpop.f32.mrb[0].mxu0
      %v2506 = vadd.f32 0.0, %v2505
      %v2507 = vpop.f32.mrb[0].mxu0
      %v2508 = vpop.f32.mrb[0].mxu0
      %v2509 = vadd.f32 0.0, %v2508
      %v2510 = vpop.f32.mrb[0].mxu0
      %2511 = vmatprep.mubr.bf16.mxu0 0
      %2512 = vmatmul.mubr.bf16.gmra.mrb[0].mxu0 %v2437
      %v2513 = vpop.f32.mrb[0].mxu0
      %v2514 = vadd.f32 0.0, %v2513
      %v2515 = vpop.f32.mrb[0].mxu0
      %v2516 = vpop.f32.mrb[0].mxu0
      %v2517 = vadd.f32 0.0, %v2516
      %v2518 = vpop.f32.mrb[0].mxu0
      %2519 = vmatprep.mubr.bf16.mxu0 0
      %2520 = vmatmul.mubr.bf16.gmra.mrb[0].mxu0 %v2440
      %v2521 = vpop.f32.mrb[0].mxu0
      %v2522 = vadd.f32 0.0, %v2521
      %v2523 = vpop.f32.mrb[0].mxu0
      %v2524 = vpop.f32.mrb[0].mxu0
      %v2525 = vadd.f32 0.0, %v2524
      %v2526 = vpop.f32.mrb[0].mxu0
      %2527 = vmatprep.mubr.bf16.mxu0 0
      %2528 = vmatmul.mubr.bf16.gmra.mrb[0].mxu0 %v2443
      %v2529 = vpop.f32.mrb[0].mxu0
      %v2530 = vadd.f32 0.0, %v2529
      %v2531 = vpop.f32.mrb[0].mxu0
      %v2532 = vpop.f32.mrb[0].mxu0
      %v2533 = vadd.f32 0.0, %v2532
      %v2534 = vpop.f32.mrb[0].mxu0
      %2535 = vmatprep.mubr.bf16.mxu0 0
      %2536 = vmatmul.mubr.bf16.gmra.mrb[0].mxu0 %v2446
      %v2537 = vpop.f32.mrb[0].mxu0
      %v2538 = vadd.f32 0.0, %v2537
      %v2539 = vpop.f32.mrb[0].mxu0
      %v2540 = vpop.f32.mrb[0].mxu0
      %v2541 = vadd.f32 0.0, %v2540
      %v2542 = vpop.f32.mrb[0].mxu0
      %2543 = vmatprep.mubr.bf16.mxu0 0
      %2544 = vmatmul.mubr.bf16.gmra.mrb[0].mxu0 %v2449
      %v2545 = vpop.f32.mrb[0].mxu0
      %v2546 = vadd.f32 0.0, %v2545
      %v2547 = vpop.f32.mrb[0].mxu0
      %v2548 = vpop.f32.mrb[0].mxu0
      %v2549 = vadd.f32 0.0, %v2548
      %v2550 = vpop.f32.mrb[0].mxu0
      %2551 = vdwg.mxu0
      %v2567 = vunpack.c.l.b16 %v2366
      %v2568 = vunpack.c.l.b16 %v2367
      %v2569 = vunpack.c.l.b16 %v2368
      %v2570 = vunpack.c.l.b16 %v2369
      %v2571 = vunpack.c.l.b16 %v2370
      %v2572 = vunpack.c.l.b16 %v2371
      %v2573 = vunpack.c.l.b16 %v2372
      %v2574 = vunpack.c.l.b16 %v2373
      %v2575 = vunpack.c.l.b16 %v2374
      %v2576 = vunpack.c.l.b16 %v2375
      %v2577 = vunpack.c.l.b16 %v2376
      %v2578 = vunpack.c.l.b16 %v2377
      %v2579 = vunpack.c.l.b16 %v2378
      %v2580 = vunpack.c.l.b16 %v2379
      %v2581 = vunpack.c.l.b16 %v2380
      %v2582 = vpack.c.b16 %v2568, %v2567
      %v2583 = vpack.c.b16 %v2570, %v2569
      %v2584 = vpack.c.b16 %v2572, %v2571
      %v2585 = vpack.c.b16 %v2574, %v2573
      %v2586 = vpack.c.b16 %v2576, %v2575
      %v2587 = vpack.c.b16 %v2578, %v2577
      %v2588 = vpack.c.b16 %v2580, %v2579
      %v2589 = vpack.c.b16 %v2581, %v2581
      %v2598 = vsel %vm2451, %v2589, 0
      %2600 = vmatprep.subr.bf16.mxu0 0
      %2601 = vmatpush1.bf16.msra.mxu0 %v2582
      %2602 = vmatprep.subr.bf16.mxu0 0
      %2603 = vmatpush1.bf16.msra.mxu0 %v2583
      %2604 = vmatprep.subr.bf16.mxu0 0
      %2605 = vmatpush1.bf16.msra.mxu0 %v2584
      %2606 = vmatprep.subr.bf16.mxu0 0
      %2607 = vmatpush1.bf16.msra.mxu0 %v2585
      %2608 = vmatprep.subr.bf16.mxu0 0
      %2609 = vmatpush1.bf16.msra.mxu0 %v2586
      %2610 = vmatprep.subr.bf16.mxu0 0
      %2611 = vmatpush1.bf16.msra.mxu0 %v2587
      %2612 = vmatprep.subr.bf16.mxu0 0
      %2613 = vmatpush1.bf16.msra.mxu0 %v2588
      %2614 = vmatprep.subr.bf16.mxu0 0
      %2615 = vmatpush1.bf16.msra.mxu0 %v2598
      %2616 = vmatprep.subr.bf16.mxu0 0
      %2617 = vmatpush1.bf16.msra.mxu0 0
      %2618 = vmatprep.subr.bf16.mxu0 0
      %2619 = vmatpush1.bf16.msra.mxu0 0
      %2620 = vmatprep.subr.bf16.mxu0 0
      %2621 = vmatpush1.bf16.msra.mxu0 0
      %2622 = vmatprep.subr.bf16.mxu0 0
      %2623 = vmatpush1.bf16.msra.mxu0 0
      %2624 = vmatprep.subr.bf16.mxu0 0
      %2625 = vmatpush1.bf16.msra.mxu0 0
      %2626 = vmatprep.subr.bf16.mxu0 0
      %2627 = vmatpush1.bf16.msra.mxu0 0
      %2628 = vmatprep.subr.bf16.mxu0 0
      %2629 = vmatpush1.bf16.msra.mxu0 0
      %2630 = vmatprep.subr.bf16.mxu0 0
      %2631 = vmatpush1.bf16.msra.mxu0 0
      %2632 = vmatprep.mubr.bf16.mxu0 0
      %2633 = vmatmul.mubr.bf16.gmra.mrb[0].mxu0 %v2428
      %v2634 = vpop.f32.mrb[0].mxu0
      %v2635 = vadd.f32 0.0, %v2634
      %v2636 = vpop.f32.mrb[0].mxu0
      %v2637 = vpop.f32.mrb[0].mxu0
      %v2638 = vadd.f32 0.0, %v2637
      %v2639 = vpop.f32.mrb[0].mxu0
      %2640 = vmatprep.mubr.bf16.mxu0 0
      %2641 = vmatmul.mubr.bf16.gmra.mrb[0].mxu0 %v2431
      %v2642 = vpop.f32.mrb[0].mxu0
      %v2643 = vadd.f32 0.0, %v2642
      %v2644 = vpop.f32.mrb[0].mxu0
      %v2645 = vpop.f32.mrb[0].mxu0
      %v2646 = vadd.f32 0.0, %v2645
      %v2647 = vpop.f32.mrb[0].mxu0
      %2648 = vmatprep.mubr.bf16.mxu0 0
      %2649 = vmatmul.mubr.bf16.gmra.mrb[0].mxu0 %v2434
      %v2650 = vpop.f32.mrb[0].mxu0
      %v2651 = vadd.f32 0.0, %v2650
      %v2652 = vpop.f32.mrb[0].mxu0
      %v2653 = vpop.f32.mrb[0].mxu0
      %v2654 = vadd.f32 0.0, %v2653
      %v2655 = vpop.f32.mrb[0].mxu0
      %2656 = vmatprep.mubr.bf16.mxu0 0
      %2657 = vmatmul.mubr.bf16.gmra.mrb[0].mxu0 %v2437
      %v2658 = vpop.f32.mrb[0].mxu0
      %v2659 = vadd.f32 0.0, %v2658
      %v2660 = vpop.f32.mrb[0].mxu0
      %v2661 = vpop.f32.mrb[0].mxu0
      %v2662 = vadd.f32 0.0, %v2661
      %v2663 = vpop.f32.mrb[0].mxu0
      %2664 = vmatprep.mubr.bf16.mxu0 0
      %2665 = vmatmul.mubr.bf16.gmra.mrb[0].mxu0 %v2440
      %v2666 = vpop.f32.mrb[0].mxu0
      %v2667 = vadd.f32 0.0, %v2666
      %v2668 = vpop.f32.mrb[0].mxu0
      %v2669 = vpop.f32.mrb[0].mxu0
      %v2670 = vadd.f32 0.0, %v2669
      %v2671 = vpop.f32.mrb[0].mxu0
      %2672 = vmatprep.mubr.bf16.mxu0 0
      %2673 = vmatmul.mubr.bf16.gmra.mrb[0].mxu0 %v2443
      %v2674 = vpop.f32.mrb[0].mxu0
      %v2675 = vadd.f32 0.0, %v2674
      %v2676 = vpop.f32.mrb[0].mxu0
      %v2677 = vpop.f32.mrb[0].mxu0
      %v2678 = vadd.f32 0.0, %v2677
      %v2679 = vpop.f32.mrb[0].mxu0
      %2680 = vmatprep.mubr.bf16.mxu0 0
      %2681 = vmatmul.mubr.bf16.gmra.mrb[0].mxu0 %v2446
      %v2682 = vpop.f32.mrb[0].mxu0
      %v2683 = vadd.f32 0.0, %v2682
      %v2684 = vpop.f32.mrb[0].mxu0
      %v2685 = vpop.f32.mrb[0].mxu0
      %v2686 = vadd.f32 0.0, %v2685
      %v2687 = vpop.f32.mrb[0].mxu0
      %2688 = vmatprep.mubr.bf16.mxu0 0
      %2689 = vmatmul.mubr.bf16.gmra.mrb[0].mxu0 %v2449
      %v2690 = vpop.f32.mrb[0].mxu0
      %v2691 = vadd.f32 0.0, %v2690
      %v2692 = vpop.f32.mrb[0].mxu0
      %v2693 = vpop.f32.mrb[0].mxu0
      %v2694 = vadd.f32 0.0, %v2693
      %v2695 = vpop.f32.mrb[0].mxu0
      %2696 = vdwg.mxu0
      %v2712 = vunpack.c.l.b16 %v2321
      %v2713 = vunpack.c.l.b16 %v2322
      %v2714 = vunpack.c.l.b16 %v2323
      %v2715 = vunpack.c.l.b16 %v2324
      %v2716 = vunpack.c.l.b16 %v2325
      %v2717 = vunpack.c.l.b16 %v2326
      %v2718 = vunpack.c.l.b16 %v2327
      %v2719 = vunpack.c.l.b16 %v2328
      %v2720 = vunpack.c.l.b16 %v2329
      %v2721 = vunpack.c.l.b16 %v2330
      %v2722 = vunpack.c.l.b16 %v2331
      %v2723 = vunpack.c.l.b16 %v2332
      %v2724 = vunpack.c.l.b16 %v2333
      %v2725 = vunpack.c.l.b16 %v2334
      %v2726 = vunpack.c.l.b16 %v2335
      %v2727 = vpack.c.b16 %v2713, %v2712
      %v2728 = vpack.c.b16 %v2715, %v2714
      %v2729 = vpack.c.b16 %v2717, %v2716
      %v2730 = vpack.c.b16 %v2719, %v2718
      %v2731 = vpack.c.b16 %v2721, %v2720
      %v2732 = vpack.c.b16 %v2723, %v2722
      %v2733 = vpack.c.b16 %v2725, %v2724
      %v2734 = vpack.c.b16 %v2726, %v2726
      %v2743 = vsel %vm2426, %v2297, 0
      %v2746 = vsel %vm2426, %v2298, 0
      %v2749 = vsel %vm2426, %v2299, 0
      %v2752 = vsel %vm2426, %v2300, 0
      %v2755 = vsel %vm2426, %v2301, 0
      %v2758 = vsel %vm2426, %v2302, 0
      %v2761 = vsel %vm2426, %v2303, 0
      %v2764 = vsel %vm2426, %v2304, 0
      %v2767 = vsel %vm2451, %v2734, 0
      %2769 = vmatprep.subr.bf16.mxu0 0
      %2770 = vmatpush1.bf16.msra.mxu0 %v2727
      %2771 = vmatprep.subr.bf16.mxu0 0
      %2772 = vmatpush1.bf16.msra.mxu0 %v2728
      %2773 = vmatprep.subr.bf16.mxu0 0
      %2774 = vmatpush1.bf16.msra.mxu0 %v2729
      %2775 = vmatprep.subr.bf16.mxu0 0
      %2776 = vmatpush1.bf16.msra.mxu0 %v2730
      %2777 = vmatprep.subr.bf16.mxu0 0
      %2778 = vmatpush1.bf16.msra.mxu0 %v2731
      %2779 = vmatprep.subr.bf16.mxu0 0
      %2780 = vmatpush1.bf16.msra.mxu0 %v2732
      %2781 = vmatprep.subr.bf16.mxu0 0
      %2782 = vmatpush1.bf16.msra.mxu0 %v2733
      %2783 = vmatprep.subr.bf16.mxu0 0
      %2784 = vmatpush1.bf16.msra.mxu0 %v2767
      %2785 = vmatprep.subr.bf16.mxu0 0
      %2786 = vmatpush1.bf16.msra.mxu0 0
      %2787 = vmatprep.subr.bf16.mxu0 0
      %2788 = vmatpush1.bf16.msra.mxu0 0
      %2789 = vmatprep.subr.bf16.mxu0 0
      %2790 = vmatpush1.bf16.msra.mxu0 0
      %2791 = vmatprep.subr.bf16.mxu0 0
      %2792 = vmatpush1.bf16.msra.mxu0 0
      %2793 = vmatprep.subr.bf16.mxu0 0
      %2794 = vmatpush1.bf16.msra.mxu0 0
      %2795 = vmatprep.subr.bf16.mxu0 0
      %2796 = vmatpush1.bf16.msra.mxu0 0
      %2797 = vmatprep.subr.bf16.mxu0 0
      %2798 = vmatpush1.bf16.msra.mxu0 0
      %2799 = vmatprep.subr.bf16.mxu0 0
      %2800 = vmatpush1.bf16.msra.mxu0 0
      %2801 = vmatprep.mubr.bf16.mxu0 0
      %2802 = vmatmul.mubr.bf16.gmra.mrb[0].mxu0 %v2743
      %v2803 = vpop.f32.mrb[0].mxu0
      %v2804 = vadd.f32 %v2490, %v2803
      %v2805 = vpop.f32.mrb[0].mxu0
      %v2806 = vpop.f32.mrb[0].mxu0
      %v2807 = vadd.f32 %v2493, %v2806
      %v2808 = vpop.f32.mrb[0].mxu0
      %2809 = vmatprep.mubr.bf16.mxu0 0
      %2810 = vmatmul.mubr.bf16.gmra.mrb[0].mxu0 %v2746
      %v2811 = vpop.f32.mrb[0].mxu0
      %v2812 = vadd.f32 %v2498, %v2811
      %v2813 = vpop.f32.mrb[0].mxu0
      %v2814 = vpop.f32.mrb[0].mxu0
      %v2815 = vadd.f32 %v2501, %v2814
      %v2816 = vpop.f32.mrb[0].mxu0
      %2817 = vmatprep.mubr.bf16.mxu0 0
      %2818 = vmatmul.mubr.bf16.gmra.mrb[0].mxu0 %v2749
      %v2819 = vpop.f32.mrb[0].mxu0
      %v2820 = vadd.f32 %v2506, %v2819
      %v2821 = vpop.f32.mrb[0].mxu0
      %v2822 = vpop.f32.mrb[0].mxu0
      %v2823 = vadd.f32 %v2509, %v2822
      %v2824 = vpop.f32.mrb[0].mxu0
      %2825 = vmatprep.mubr.bf16.mxu0 0
      %2826 = vmatmul.mubr.bf16.gmra.mrb[0].mxu0 %v2752
      %v2827 = vpop.f32.mrb[0].mxu0
      %v2828 = vadd.f32 %v2514, %v2827
      %v2829 = vpop.f32.mrb[0].mxu0
      %v2830 = vpop.f32.mrb[0].mxu0
      %v2831 = vadd.f32 %v2517, %v2830
      %v2832 = vpop.f32.mrb[0].mxu0
      %2833 = vmatprep.mubr.bf16.mxu0 0
      %2834 = vmatmul.mubr.bf16.gmra.mrb[0].mxu0 %v2755
      %v2835 = vpop.f32.mrb[0].mxu0
      %v2836 = vadd.f32 %v2522, %v2835
      %v2837 = vpop.f32.mrb[0].mxu0
      %v2838 = vpop.f32.mrb[0].mxu0
      %v2839 = vadd.f32 %v2525, %v2838
      %v2840 = vpop.f32.mrb[0].mxu0
      %2841 = vmatprep.mubr.bf16.mxu0 0
      %2842 = vmatmul.mubr.bf16.gmra.mrb[0].mxu0 %v2758
      %v2843 = vpop.f32.mrb[0].mxu0
      %v2844 = vadd.f32 %v2530, %v2843
      %v2845 = vpop.f32.mrb[0].mxu0
      %v2846 = vpop.f32.mrb[0].mxu0
      %v2847 = vadd.f32 %v2533, %v2846
      %v2848 = vpop.f32.mrb[0].mxu0
      %2849 = vmatprep.mubr.bf16.mxu0 0
      %2850 = vmatmul.mubr.bf16.gmra.mrb[0].mxu0 %v2761
      %v2851 = vpop.f32.mrb[0].mxu0
      %v2852 = vadd.f32 %v2538, %v2851
      %v2853 = vpop.f32.mrb[0].mxu0
      %v2854 = vpop.f32.mrb[0].mxu0
      %v2855 = vadd.f32 %v2541, %v2854
      %v2856 = vpop.f32.mrb[0].mxu0
      %2857 = vmatprep.mubr.bf16.mxu0 0
      %2858 = vmatmul.mubr.bf16.gmra.mrb[0].mxu0 %v2764
      %v2859 = vpop.f32.mrb[0].mxu0
      %v2860 = vadd.f32 %v2546, %v2859
      %v2861 = vpop.f32.mrb[0].mxu0
      %v2862 = vpop.f32.mrb[0].mxu0
      %v2863 = vadd.f32 %v2549, %v2862
      %v2864 = vpop.f32.mrb[0].mxu0
      %2865 = vdwg.mxu0
      %v2881 = vunpack.c.l.b16 %v2336
      %v2882 = vunpack.c.l.b16 %v2337
      %v2883 = vunpack.c.l.b16 %v2338
      %v2884 = vunpack.c.l.b16 %v2339
      %v2885 = vunpack.c.l.b16 %v2340
      %v2886 = vunpack.c.l.b16 %v2341
      %v2887 = vunpack.c.l.b16 %v2342
      %v2888 = vunpack.c.l.b16 %v2343
      %v2889 = vunpack.c.l.b16 %v2344
      %v2890 = vunpack.c.l.b16 %v2345
      %v2891 = vunpack.c.l.b16 %v2346
      %v2892 = vunpack.c.l.b16 %v2347
      %v2893 = vunpack.c.l.b16 %v2348
      %v2894 = vunpack.c.l.b16 %v2349
      %v2895 = vunpack.c.l.b16 %v2350
      %v2896 = vpack.c.b16 %v2882, %v2881
      %v2897 = vpack.c.b16 %v2884, %v2883
      %v2898 = vpack.c.b16 %v2886, %v2885
      %v2899 = vpack.c.b16 %v2888, %v2887
      %v2900 = vpack.c.b16 %v2890, %v2889
      %v2901 = vpack.c.b16 %v2892, %v2891
      %v2902 = vpack.c.b16 %v2894, %v2893
      %v2903 = vpack.c.b16 %v2895, %v2895
      %v2912 = vsel %vm2451, %v2903, 0
      %2914 = vmatprep.subr.bf16.mxu0 0
      %2915 = vmatpush1.bf16.msra.mxu0 %v2896
      %2916 = vmatprep.subr.bf16.mxu0 0
      %2917 = vmatpush1.bf16.msra.mxu0 %v2897
      %2918 = vmatprep.subr.bf16.mxu0 0
      %2919 = vmatpush1.bf16.msra.mxu0 %v2898
      %2920 = vmatprep.subr.bf16.mxu0 0
      %2921 = vmatpush1.bf16.msra.mxu0 %v2899
      %2922 = vmatprep.subr.bf16.mxu0 0
      %2923 = vmatpush1.bf16.msra.mxu0 %v2900
      %2924 = vmatprep.subr.bf16.mxu0 0
      %2925 = vmatpush1.bf16.msra.mxu0 %v2901
      %2926 = vmatprep.subr.bf16.mxu0 0
      %2927 = vmatpush1.bf16.msra.mxu0 %v2902
      %2928 = vmatprep.subr.bf16.mxu0 0
      %2929 = vmatpush1.bf16.msra.mxu0 %v2912
      %2930 = vmatprep.subr.bf16.mxu0 0
      %2931 = vmatpush1.bf16.msra.mxu0 0
      %2932 = vmatprep.subr.bf16.mxu0 0
      %2933 = vmatpush1.bf16.msra.mxu0 0
      %2934 = vmatprep.subr.bf16.mxu0 0
      %2935 = vmatpush1.bf16.msra.mxu0 0
      %2936 = vmatprep.subr.bf16.mxu0 0
      %2937 = vmatpush1.bf16.msra.mxu0 0
      %2938 = vmatprep.subr.bf16.mxu0 0
      %2939 = vmatpush1.bf16.msra.mxu0 0
      %2940 = vmatprep.subr.bf16.mxu0 0
      %2941 = vmatpush1.bf16.msra.mxu0 0
      %2942 = vmatprep.subr.bf16.mxu0 0
      %2943 = vmatpush1.bf16.msra.mxu0 0
      %2944 = vmatprep.subr.bf16.mxu0 0
      %2945 = vmatpush1.bf16.msra.mxu0 0
      %2946 = vmatprep.mubr.bf16.mxu0 0
      %2947 = vmatmul.mubr.bf16.gmra.mrb[0].mxu0 %v2743
      %v2948 = vpop.f32.mrb[0].mxu0
      %v2949 = vadd.f32 %v2635, %v2948
      %v2950 = vpop.f32.mrb[0].mxu0
      %v2951 = vpop.f32.mrb[0].mxu0
      %v2952 = vadd.f32 %v2638, %v2951
      %v2953 = vpop.f32.mrb[0].mxu0
      %2954 = vmatprep.mubr.bf16.mxu0 0
      %2955 = vmatmul.mubr.bf16.gmra.mrb[0].mxu0 %v2746
      %v2956 = vpop.f32.mrb[0].mxu0
      %v2957 = vadd.f32 %v2643, %v2956
      %v2958 = vpop.f32.mrb[0].mxu0
      %v2959 = vpop.f32.mrb[0].mxu0
      %v2960 = vadd.f32 %v2646, %v2959
      %v2961 = vpop.f32.mrb[0].mxu0
      %2962 = vmatprep.mubr.bf16.mxu0 0
      %2963 = vmatmul.mubr.bf16.gmra.mrb[0].mxu0 %v2749
      %v2964 = vpop.f32.mrb[0].mxu0
      %v2965 = vadd.f32 %v2651, %v2964
      %v2966 = vpop.f32.mrb[0].mxu0
      %v2967 = vpop.f32.mrb[0].mxu0
      %v2968 = vadd.f32 %v2654, %v2967
      %v2969 = vpop.f32.mrb[0].mxu0
      %2970 = vmatprep.mubr.bf16.mxu0 0
      %2971 = vmatmul.mubr.bf16.gmra.mrb[0].mxu0 %v2752
      %v2972 = vpop.f32.mrb[0].mxu0
      %v2973 = vadd.f32 %v2659, %v2972
      %v2974 = vpop.f32.mrb[0].mxu0
      %v2975 = vpop.f32.mrb[0].mxu0
      %v2976 = vadd.f32 %v2662, %v2975
      %v2977 = vpop.f32.mrb[0].mxu0
      %2978 = vmatprep.mubr.bf16.mxu0 0
      %2979 = vmatmul.mubr.bf16.gmra.mrb[0].mxu0 %v2755
      %v2980 = vpop.f32.mrb[0].mxu0
      %v2981 = vadd.f32 %v2667, %v2980
      %v2982 = vpop.f32.mrb[0].mxu0
      %v2983 = vpop.f32.mrb[0].mxu0
      %v2984 = vadd.f32 %v2670, %v2983
      %v2985 = vpop.f32.mrb[0].mxu0
      %2986 = vmatprep.mubr.bf16.mxu0 0
      %2987 = vmatmul.mubr.bf16.gmra.mrb[0].mxu0 %v2758
      %v2988 = vpop.f32.mrb[0].mxu0
      %v2989 = vadd.f32 %v2675, %v2988
      %v2990 = vpop.f32.mrb[0].mxu0
      %v2991 = vpop.f32.mrb[0].mxu0
      %v2992 = vadd.f32 %v2678, %v2991
      %v2993 = vpop.f32.mrb[0].mxu0
      %2994 = vmatprep.mubr.bf16.mxu0 0
      %2995 = vmatmul.mubr.bf16.gmra.mrb[0].mxu0 %v2761
      %v2996 = vpop.f32.mrb[0].mxu0
      %v2997 = vadd.f32 %v2683, %v2996
      %v2998 = vpop.f32.mrb[0].mxu0
      %v2999 = vpop.f32.mrb[0].mxu0
      %v3000 = vadd.f32 %v2686, %v2999
      %v3001 = vpop.f32.mrb[0].mxu0
      %3002 = vmatprep.mubr.bf16.mxu0 0
      %3003 = vmatmul.mubr.bf16.gmra.mrb[0].mxu0 %v2764
      %v3004 = vpop.f32.mrb[0].mxu0
      %v3005 = vadd.f32 %v2691, %v3004
      %v3006 = vpop.f32.mrb[0].mxu0
      %v3007 = vpop.f32.mrb[0].mxu0
      %v3008 = vadd.f32 %v2694, %v3007
      %v3009 = vpop.f32.mrb[0].mxu0
      %3010 = vdwg.mxu0
      %v3012 = vsel %vm2426, %v2305, 0
      %v3015 = vsel %vm2426, %v2306, 0
      %3017 = vmatprep.subr.bf16.mxu0 0
      %3018 = vmatpush1.bf16.msra.mxu0 %v2411
      %3019 = vmatprep.subr.bf16.mxu0 0
      %3020 = vmatpush1.bf16.msra.mxu0 %v2412
      %3021 = vmatprep.subr.bf16.mxu0 0
      %3022 = vmatpush1.bf16.msra.mxu0 %v2413
      %3023 = vmatprep.subr.bf16.mxu0 0
      %3024 = vmatpush1.bf16.msra.mxu0 %v2414
      %3025 = vmatprep.subr.bf16.mxu0 0
      %3026 = vmatpush1.bf16.msra.mxu0 %v2415
      %3027 = vmatprep.subr.bf16.mxu0 0
      %3028 = vmatpush1.bf16.msra.mxu0 %v2416
      %3029 = vmatprep.subr.bf16.mxu0 0
      %3030 = vmatpush1.bf16.msra.mxu0 %v2417
      %3031 = vmatprep.subr.bf16.mxu0 0
      %3032 = vmatpush1.bf16.msra.mxu0 %v2453
      %3033 = vmatprep.subr.bf16.mxu0 0
      %3034 = vmatpush1.bf16.msra.mxu0 0
      %3035 = vmatprep.subr.bf16.mxu0 0
      %3036 = vmatpush1.bf16.msra.mxu0 0
      %3037 = vmatprep.subr.bf16.mxu0 0
      %3038 = vmatpush1.bf16.msra.mxu0 0
      %3039 = vmatprep.subr.bf16.mxu0 0
      %3040 = vmatpush1.bf16.msra.mxu0 0
      %3041 = vmatprep.subr.bf16.mxu0 0
      %3042 = vmatpush1.bf16.msra.mxu0 0
      %3043 = vmatprep.subr.bf16.mxu0 0
      %3044 = vmatpush1.bf16.msra.mxu0 0
      %3045 = vmatprep.subr.bf16.mxu0 0
      %3046 = vmatpush1.bf16.msra.mxu0 0
      %3047 = vmatprep.subr.bf16.mxu0 0
      %3048 = vmatpush1.bf16.msra.mxu0 0
      %3049 = vmatprep.mubr.bf16.mxu0 0
      %3050 = vmatmul.mubr.bf16.gmra.mrb[0].mxu0 %v2749
      %v3051 = vpop.f32.mrb[0].mxu0
      %v3052 = vadd.f32 0.0, %v3051
      %v3053 = vpop.f32.mrb[0].mxu0
      %v3054 = vpop.f32.mrb[0].mxu0
      %v3055 = vadd.f32 0.0, %v3054
      %v3056 = vpop.f32.mrb[0].mxu0
      %3057 = vmatprep.mubr.bf16.mxu0 0
      %3058 = vmatmul.mubr.bf16.gmra.mrb[0].mxu0 %v2752
      %v3059 = vpop.f32.mrb[0].mxu0
      %v3060 = vadd.f32 0.0, %v3059
      %v3061 = vpop.f32.mrb[0].mxu0
      %v3062 = vpop.f32.mrb[0].mxu0
      %v3063 = vadd.f32 0.0, %v3062
      %v3064 = vpop.f32.mrb[0].mxu0
      %3065 = vmatprep.mubr.bf16.mxu0 0
      %3066 = vmatmul.mubr.bf16.gmra.mrb[0].mxu0 %v2755
      %v3067 = vpop.f32.mrb[0].mxu0
      %v3068 = vadd.f32 0.0, %v3067
      %v3069 = vpop.f32.mrb[0].mxu0
      %v3070 = vpop.f32.mrb[0].mxu0
      %v3071 = vadd.f32 0.0, %v3070
      %v3072 = vpop.f32.mrb[0].mxu0
      %3073 = vmatprep.mubr.bf16.mxu0 0
      %3074 = vmatmul.mubr.bf16.gmra.mrb[0].mxu0 %v2758
      %v3075 = vpop.f32.mrb[0].mxu0
      %v3076 = vadd.f32 0.0, %v3075
      %v3077 = vpop.f32.mrb[0].mxu0
      %v3078 = vpop.f32.mrb[0].mxu0
      %v3079 = vadd.f32 0.0, %v3078
      %v3080 = vpop.f32.mrb[0].mxu0
      %3081 = vmatprep.mubr.bf16.mxu0 0
      %3082 = vmatmul.mubr.bf16.gmra.mrb[0].mxu0 %v2761
      %v3083 = vpop.f32.mrb[0].mxu0
      %v3084 = vadd.f32 0.0, %v3083
      %v3085 = vpop.f32.mrb[0].mxu0
      %v3086 = vpop.f32.mrb[0].mxu0
      %v3087 = vadd.f32 0.0, %v3086
      %v3088 = vpop.f32.mrb[0].mxu0
      %3089 = vmatprep.mubr.bf16.mxu0 0
      %3090 = vmatmul.mubr.bf16.gmra.mrb[0].mxu0 %v2764
      %v3091 = vpop.f32.mrb[0].mxu0
      %v3092 = vadd.f32 0.0, %v3091
      %v3093 = vpop.f32.mrb[0].mxu0
      %v3094 = vpop.f32.mrb[0].mxu0
      %v3095 = vadd.f32 0.0, %v3094
      %v3096 = vpop.f32.mrb[0].mxu0
      %3097 = vmatprep.mubr.bf16.mxu0 0
      %3098 = vmatmul.mubr.bf16.gmra.mrb[0].mxu0 %v3012
      %v3099 = vpop.f32.mrb[0].mxu0
      %v3100 = vadd.f32 0.0, %v3099
      %v3101 = vpop.f32.mrb[0].mxu0
      %v3102 = vpop.f32.mrb[0].mxu0
      %v3103 = vadd.f32 0.0, %v3102
      %v3104 = vpop.f32.mrb[0].mxu0
      %3105 = vmatprep.mubr.bf16.mxu0 0
      %3106 = vmatmul.mubr.bf16.gmra.mrb[0].mxu0 %v3015
      %v3107 = vpop.f32.mrb[0].mxu0
      %v3108 = vadd.f32 0.0, %v3107
      %v3109 = vpop.f32.mrb[0].mxu0
      %v3110 = vpop.f32.mrb[0].mxu0
      %v3111 = vadd.f32 0.0, %v3110
      %v3112 = vpop.f32.mrb[0].mxu0
      %3113 = vdwg.mxu0
      %3114 = vmatprep.subr.bf16.mxu0 0
      %3115 = vmatpush1.bf16.msra.mxu0 %v2582
      %3116 = vmatprep.subr.bf16.mxu0 0
      %3117 = vmatpush1.bf16.msra.mxu0 %v2583
      %3118 = vmatprep.subr.bf16.mxu0 0
      %3119 = vmatpush1.bf16.msra.mxu0 %v2584
      %3120 = vmatprep.subr.bf16.mxu0 0
      %3121 = vmatpush1.bf16.msra.mxu0 %v2585
      %3122 = vmatprep.subr.bf16.mxu0 0
      %3123 = vmatpush1.bf16.msra.mxu0 %v2586
      %3124 = vmatprep.subr.bf16.mxu0 0
      %3125 = vmatpush1.bf16.msra.mxu0 %v2587
      %3126 = vmatprep.subr.bf16.mxu0 0
      %3127 = vmatpush1.bf16.msra.mxu0 %v2588
      %3128 = vmatprep.subr.bf16.mxu0 0
      %3129 = vmatpush1.bf16.msra.mxu0 %v2598
      %3130 = vmatprep.subr.bf16.mxu0 0
      %3131 = vmatpush1.bf16.msra.mxu0 0
      %3132 = vmatprep.subr.bf16.mxu0 0
      %3133 = vmatpush1.bf16.msra.mxu0 0
      %3134 = vmatprep.subr.bf16.mxu0 0
      %3135 = vmatpush1.bf16.msra.mxu0 0
      %3136 = vmatprep.subr.bf16.mxu0 0
      %3137 = vmatpush1.bf16.msra.mxu0 0
      %3138 = vmatprep.subr.bf16.mxu0 0
      %3139 = vmatpush1.bf16.msra.mxu0 0
      %3140 = vmatprep.subr.bf16.mxu0 0
      %3141 = vmatpush1.bf16.msra.mxu0 0
      %3142 = vmatprep.subr.bf16.mxu0 0
      %3143 = vmatpush1.bf16.msra.mxu0 0
      %3144 = vmatprep.subr.bf16.mxu0 0
      %3145 = vmatpush1.bf16.msra.mxu0 0
      %3146 = vmatprep.mubr.bf16.mxu0 0
      %3147 = vmatmul.mubr.bf16.gmra.mrb[0].mxu0 %v2749
      %v3148 = vpop.f32.mrb[0].mxu0
      %v3149 = vadd.f32 0.0, %v3148
      %v3150 = vpop.f32.mrb[0].mxu0
      %v3151 = vpop.f32.mrb[0].mxu0
      %v3152 = vadd.f32 0.0, %v3151
      %v3153 = vpop.f32.mrb[0].mxu0
      %3154 = vmatprep.mubr.bf16.mxu0 0
      %3155 = vmatmul.mubr.bf16.gmra.mrb[0].mxu0 %v2752
      %v3156 = vpop.f32.mrb[0].mxu0
      %v3157 = vadd.f32 0.0, %v3156
      %v3158 = vpop.f32.mrb[0].mxu0
      %v3159 = vpop.f32.mrb[0].mxu0
      %v3160 = vadd.f32 0.0, %v3159
      %v3161 = vpop.f32.mrb[0].mxu0
      %3162 = vmatprep.mubr.bf16.mxu0 0
      %3163 = vmatmul.mubr.bf16.gmra.mrb[0].mxu0 %v2755
      %v3164 = vpop.f32.mrb[0].mxu0
      %v3165 = vadd.f32 0.0, %v3164
      %v3166 = vpop.f32.mrb[0].mxu0
      %v3167 = vpop.f32.mrb[0].mxu0
      %v3168 = vadd.f32 0.0, %v3167
      %v3169 = vpop.f32.mrb[0].mxu0
      %3170 = vmatprep.mubr.bf16.mxu0 0
      %3171 = vmatmul.mubr.bf16.gmra.mrb[0].mxu0 %v2758
      %v3172 = vpop.f32.mrb[0].mxu0
      %v3173 = vadd.f32 0.0, %v3172
      %v3174 = vpop.f32.mrb[0].mxu0
      %v3175 = vpop.f32.mrb[0].mxu0
      %v3176 = vadd.f32 0.0, %v3175
      %v3177 = vpop.f32.mrb[0].mxu0
      %3178 = vmatprep.mubr.bf16.mxu0 0
      %3179 = vmatmul.mubr.bf16.gmra.mrb[0].mxu0 %v2761
      %v3180 = vpop.f32.mrb[0].mxu0
      %v3181 = vadd.f32 0.0, %v3180
      %v3182 = vpop.f32.mrb[0].mxu0
      %v3183 = vpop.f32.mrb[0].mxu0
      %v3184 = vadd.f32 0.0, %v3183
      %v3185 = vpop.f32.mrb[0].mxu0
      %3186 = vmatprep.mubr.bf16.mxu0 0
      %3187 = vmatmul.mubr.bf16.gmra.mrb[0].mxu0 %v2764
      %v3188 = vpop.f32.mrb[0].mxu0
      %v3189 = vadd.f32 0.0, %v3188
      %v3190 = vpop.f32.mrb[0].mxu0
      %v3191 = vpop.f32.mrb[0].mxu0
      %v3192 = vadd.f32 0.0, %v3191
      %v3193 = vpop.f32.mrb[0].mxu0
      %3194 = vmatprep.mubr.bf16.mxu0 0
      %3195 = vmatmul.mubr.bf16.gmra.mrb[0].mxu0 %v3012
      %v3196 = vpop.f32.mrb[0].mxu0
      %v3197 = vadd.f32 0.0, %v3196
      %v3198 = vpop.f32.mrb[0].mxu0
      %v3199 = vpop.f32.mrb[0].mxu0
      %v3200 = vadd.f32 0.0, %v3199
      %v3201 = vpop.f32.mrb[0].mxu0
      %3202 = vmatprep.mubr.bf16.mxu0 0
      %3203 = vmatmul.mubr.bf16.gmra.mrb[0].mxu0 %v3015
      %v3204 = vpop.f32.mrb[0].mxu0
      %v3205 = vadd.f32 0.0, %v3204
      %v3206 = vpop.f32.mrb[0].mxu0
      %v3207 = vpop.f32.mrb[0].mxu0
      %v3208 = vadd.f32 0.0, %v3207
      %v3209 = vpop.f32.mrb[0].mxu0
      %3210 = vdwg.mxu0
      %3211 = vmatprep.subr.bf16.mxu0 0
      %3212 = vmatpush1.bf16.msra.mxu0 %v2727
      %3213 = vmatprep.subr.bf16.mxu0 0
      %3214 = vmatpush1.bf16.msra.mxu0 %v2728
      %3215 = vmatprep.subr.bf16.mxu0 0
      %3216 = vmatpush1.bf16.msra.mxu0 %v2729
      %3217 = vmatprep.subr.bf16.mxu0 0
      %3218 = vmatpush1.bf16.msra.mxu0 %v2730
      %3219 = vmatprep.subr.bf16.mxu0 0
      %3220 = vmatpush1.bf16.msra.mxu0 %v2731
      %3221 = vmatprep.subr.bf16.mxu0 0
      %3222 = vmatpush1.bf16.msra.mxu0 %v2732
      %3223 = vmatprep.subr.bf16.mxu0 0
      %3224 = vmatpush1.bf16.msra.mxu0 %v2733
      %3225 = vmatprep.subr.bf16.mxu0 0
      %3226 = vmatpush1.bf16.msra.mxu0 %v2767
      %3227 = vmatprep.subr.bf16.mxu0 0
      %3228 = vmatpush1.bf16.msra.mxu0 0
      %3229 = vmatprep.subr.bf16.mxu0 0
      %3230 = vmatpush1.bf16.msra.mxu0 0
      %3231 = vmatprep.subr.bf16.mxu0 0
      %3232 = vmatpush1.bf16.msra.mxu0 0
      %3233 = vmatprep.subr.bf16.mxu0 0
      %3234 = vmatpush1.bf16.msra.mxu0 0
      %3235 = vmatprep.subr.bf16.mxu0 0
      %3236 = vmatpush1.bf16.msra.mxu0 0
      %3237 = vmatprep.subr.bf16.mxu0 0
      %3238 = vmatpush1.bf16.msra.mxu0 0
      %3239 = vmatprep.subr.bf16.mxu0 0
      %3240 = vmatpush1.bf16.msra.mxu0 0
      %3241 = vmatprep.subr.bf16.mxu0 0
      %3242 = vmatpush1.bf16.msra.mxu0 0
      %3243 = vmatprep.mubr.bf16.mxu0 0
      %3244 = vmatmul.mubr.bf16.gmra.mrb[0].mxu0 %v2428
      %v3245 = vpop.f32.mrb[0].mxu0
      %v3246 = vadd.f32 %v3052, %v3245
      %v3247 = vpop.f32.mrb[0].mxu0
      %v3248 = vpop.f32.mrb[0].mxu0
      %v3249 = vadd.f32 %v3055, %v3248
      %v3250 = vpop.f32.mrb[0].mxu0
      %3251 = vmatprep.mubr.bf16.mxu0 0
      %3252 = vmatmul.mubr.bf16.gmra.mrb[0].mxu0 %v2431
      %v3253 = vpop.f32.mrb[0].mxu0
      %v3254 = vadd.f32 %v3060, %v3253
      %v3255 = vpop.f32.mrb[0].mxu0
      %v3256 = vpop.f32.mrb[0].mxu0
      %v3257 = vadd.f32 %v3063, %v3256
      %v3258 = vpop.f32.mrb[0].mxu0
      %3259 = vmatprep.mubr.bf16.mxu0 0
      %3260 = vmatmul.mubr.bf16.gmra.mrb[0].mxu0 %v2434
      %v3261 = vpop.f32.mrb[0].mxu0
      %v3262 = vadd.f32 %v3068, %v3261
      %v3263 = vpop.f32.mrb[0].mxu0
      %v3264 = vpop.f32.mrb[0].mxu0
      %v3265 = vadd.f32 %v3071, %v3264
      %v3266 = vpop.f32.mrb[0].mxu0
      %3267 = vmatprep.mubr.bf16.mxu0 0
      %3268 = vmatmul.mubr.bf16.gmra.mrb[0].mxu0 %v2437
      %v3269 = vpop.f32.mrb[0].mxu0
      %v3270 = vadd.f32 %v3076, %v3269
      %v3271 = vpop.f32.mrb[0].mxu0
      %v3272 = vpop.f32.mrb[0].mxu0
      %v3273 = vadd.f32 %v3079, %v3272
      %v3274 = vpop.f32.mrb[0].mxu0
      %3275 = vmatprep.mubr.bf16.mxu0 0
      %3276 = vmatmul.mubr.bf16.gmra.mrb[0].mxu0 %v2440
      %v3277 = vpop.f32.mrb[0].mxu0
      %v3278 = vadd.f32 %v3084, %v3277
      %v3279 = vpop.f32.mrb[0].mxu0
      %v3280 = vpop.f32.mrb[0].mxu0
      %v3281 = vadd.f32 %v3087, %v3280
      %v3282 = vpop.f32.mrb[0].mxu0
      %3283 = vmatprep.mubr.bf16.mxu0 0
      %3284 = vmatmul.mubr.bf16.gmra.mrb[0].mxu0 %v2443
      %v3285 = vpop.f32.mrb[0].mxu0
      %v3286 = vadd.f32 %v3092, %v3285
      %v3287 = vpop.f32.mrb[0].mxu0
      %v3288 = vpop.f32.mrb[0].mxu0
      %v3289 = vadd.f32 %v3095, %v3288
      %v3290 = vpop.f32.mrb[0].mxu0
      %3291 = vmatprep.mubr.bf16.mxu0 0
      %3292 = vmatmul.mubr.bf16.gmra.mrb[0].mxu0 %v2446
      %v3293 = vpop.f32.mrb[0].mxu0
      %v3294 = vadd.f32 %v3100, %v3293
      %v3295 = vpop.f32.mrb[0].mxu0
      %v3296 = vpop.f32.mrb[0].mxu0
      %v3297 = vadd.f32 %v3103, %v3296
      %v3298 = vpop.f32.mrb[0].mxu0
      %3299 = vmatprep.mubr.bf16.mxu0 0
      %3300 = vmatmul.mubr.bf16.gmra.mrb[0].mxu0 %v2449
      %v3301 = vpop.f32.mrb[0].mxu0
      %v3302 = vadd.f32 %v3108, %v3301
      %v3303 = vpop.f32.mrb[0].mxu0
      %v3304 = vpop.f32.mrb[0].mxu0
      %v3305 = vadd.f32 %v3111, %v3304
      %v3306 = vpop.f32.mrb[0].mxu0
      %3307 = vdwg.mxu0
      %3308 = vmatprep.subr.bf16.mxu0 0
      %3309 = vmatpush1.bf16.msra.mxu0 %v2896
      %3310 = vmatprep.subr.bf16.mxu0 0
      %3311 = vmatpush1.bf16.msra.mxu0 %v2897
      %3312 = vmatprep.subr.bf16.mxu0 0
      %3313 = vmatpush1.bf16.msra.mxu0 %v2898
      %3314 = vmatprep.subr.bf16.mxu0 0
      %3315 = vmatpush1.bf16.msra.mxu0 %v2899
      %3316 = vmatprep.subr.bf16.mxu0 0
      %3317 = vmatpush1.bf16.msra.mxu0 %v2900
      %3318 = vmatprep.subr.bf16.mxu0 0
      %3319 = vmatpush1.bf16.msra.mxu0 %v2901
      %3320 = vmatprep.subr.bf16.mxu0 0
      %3321 = vmatpush1.bf16.msra.mxu0 %v2902
      %3322 = vmatprep.subr.bf16.mxu0 0
      %3323 = vmatpush1.bf16.msra.mxu0 %v2912
      %3324 = vmatprep.subr.bf16.mxu0 0
      %3325 = vmatpush1.bf16.msra.mxu0 0
      %3326 = vmatprep.subr.bf16.mxu0 0
      %3327 = vmatpush1.bf16.msra.mxu0 0
      %3328 = vmatprep.subr.bf16.mxu0 0
      %3329 = vmatpush1.bf16.msra.mxu0 0
      %3330 = vmatprep.subr.bf16.mxu0 0
      %3331 = vmatpush1.bf16.msra.mxu0 0
      %3332 = vmatprep.subr.bf16.mxu0 0
      %3333 = vmatpush1.bf16.msra.mxu0 0
      %3334 = vmatprep.subr.bf16.mxu0 0
      %3335 = vmatpush1.bf16.msra.mxu0 0
      %3336 = vmatprep.subr.bf16.mxu0 0
      %3337 = vmatpush1.bf16.msra.mxu0 0
      %3338 = vmatprep.subr.bf16.mxu0 0
      %3339 = vmatpush1.bf16.msra.mxu0 0
      %3340 = vmatprep.mubr.bf16.mxu0 0
      %3341 = vmatmul.mubr.bf16.gmra.mrb[0].mxu0 %v2428
      %v3342 = vpop.f32.mrb[0].mxu0
      %v3343 = vadd.f32 %v3149, %v3342
      %v3344 = vpop.f32.mrb[0].mxu0
      %v3345 = vpop.f32.mrb[0].mxu0
      %v3346 = vadd.f32 %v3152, %v3345
      %v3347 = vpop.f32.mrb[0].mxu0
      %3348 = vmatprep.mubr.bf16.mxu0 0
      %3349 = vmatmul.mubr.bf16.gmra.mrb[0].mxu0 %v2431
      %v3350 = vpop.f32.mrb[0].mxu0
      %v3351 = vadd.f32 %v3157, %v3350
      %v3352 = vpop.f32.mrb[0].mxu0
      %v3353 = vpop.f32.mrb[0].mxu0
      %v3354 = vadd.f32 %v3160, %v3353
      %v3355 = vpop.f32.mrb[0].mxu0
      %3356 = vmatprep.mubr.bf16.mxu0 0
      %3357 = vmatmul.mubr.bf16.gmra.mrb[0].mxu0 %v2434
      %v3358 = vpop.f32.mrb[0].mxu0
      %v3359 = vadd.f32 %v3165, %v3358
      %v3360 = vpop.f32.mrb[0].mxu0
      %v3361 = vpop.f32.mrb[0].mxu0
      %v3362 = vadd.f32 %v3168, %v3361
      %v3363 = vpop.f32.mrb[0].mxu0
      %3364 = vmatprep.mubr.bf16.mxu0 0
      %3365 = vmatmul.mubr.bf16.gmra.mrb[0].mxu0 %v2437
      %v3366 = vpop.f32.mrb[0].mxu0
      %v3367 = vadd.f32 %v3173, %v3366
      %v3368 = vpop.f32.mrb[0].mxu0
      %v3369 = vpop.f32.mrb[0].mxu0
      %v3370 = vadd.f32 %v3176, %v3369
      %v3371 = vpop.f32.mrb[0].mxu0
      %3372 = vmatprep.mubr.bf16.mxu0 0
      %3373 = vmatmul.mubr.bf16.gmra.mrb[0].mxu0 %v2440
      %v3374 = vpop.f32.mrb[0].mxu0
      %v3375 = vadd.f32 %v3181, %v3374
      %v3376 = vpop.f32.mrb[0].mxu0
      %v3377 = vpop.f32.mrb[0].mxu0
      %v3378 = vadd.f32 %v3184, %v3377
      %v3379 = vpop.f32.mrb[0].mxu0
      %3380 = vmatprep.mubr.bf16.mxu0 0
      %3381 = vmatmul.mubr.bf16.gmra.mrb[0].mxu0 %v2443
      %v3382 = vpop.f32.mrb[0].mxu0
      %v3383 = vadd.f32 %v3189, %v3382
      %v3384 = vpop.f32.mrb[0].mxu0
      %v3385 = vpop.f32.mrb[0].mxu0
      %v3386 = vadd.f32 %v3192, %v3385
      %v3387 = vpop.f32.mrb[0].mxu0
      %3388 = vmatprep.mubr.bf16.mxu0 0
      %3389 = vmatmul.mubr.bf16.gmra.mrb[0].mxu0 %v2446
      %v3390 = vpop.f32.mrb[0].mxu0
      %v3391 = vadd.f32 %v3197, %v3390
      %v3392 = vpop.f32.mrb[0].mxu0
      %v3393 = vpop.f32.mrb[0].mxu0
      %v3394 = vadd.f32 %v3200, %v3393
      %v3395 = vpop.f32.mrb[0].mxu0
      %3396 = vmatprep.mubr.bf16.mxu0 0
      %3397 = vmatmul.mubr.bf16.gmra.mrb[0].mxu0 %v2449
      %v3398 = vpop.f32.mrb[0].mxu0
      %v3399 = vadd.f32 %v3205, %v3398
      %v3400 = vpop.f32.mrb[0].mxu0
      %v3401 = vpop.f32.mrb[0].mxu0
      %v3402 = vadd.f32 %v3208, %v3401
      %v3403 = vpop.f32.mrb[0].mxu0
      %3404 = vdwg.mxu0
      %v3405 = vld [vmem:[%s4 + $0x78] sm:$0xf]
      %v3406 = vld [vmem:[%s4 + $0x7c] sm:$0xf]
      %v3407 = vld [vmem:[%s4 + $0x80] sm:$0xf]
      %v3408 = vld [vmem:[%s4 + $0x84] sm:$0xf]
      %v3409 = vld [vmem:[%s4 + $0x88] sm:$0xf]
      %v3410 = vld [vmem:[%s4 + $0x8c] sm:$0xf]
      %v3411 = vld [vmem:[%s4 + $0x90] sm:$0xf]
      %v3412 = vld [vmem:[%s4 + $0x94] sm:$0xf]
      %v3413 = vld [vmem:[%s4 + $0x98] sm:$0xf]
      %v3414 = vld [vmem:[%s4 + $0x9c] sm:$0xf]
      %v3415 = vld [vmem:[%s4 + $0xa0] sm:$0xf]
      %v3416 = vld [vmem:[%s4 + $0xa4] sm:$0xf]
      %v3417 = vld [vmem:[%s4 + $0xa8] sm:$0xf]
      %v3418 = vld [vmem:[%s4 + $0xac] sm:$0xf]
      %v3419 = vld [vmem:[%s4 + $0xb0] sm:$0xf]
      %v3420 = vld [vmem:[%s5 + $0x78] sm:$0xf]
      %v3421 = vld [vmem:[%s5 + $0x7c] sm:$0xf]
      %v3422 = vld [vmem:[%s5 + $0x80] sm:$0xf]
      %v3423 = vld [vmem:[%s5 + $0x84] sm:$0xf]
      %v3424 = vld [vmem:[%s5 + $0x88] sm:$0xf]
      %v3425 = vld [vmem:[%s5 + $0x8c] sm:$0xf]
      %v3426 = vld [vmem:[%s5 + $0x90] sm:$0xf]
      %v3427 = vld [vmem:[%s5 + $0x94] sm:$0xf]
      %v3428 = vld [vmem:[%s5 + $0x98] sm:$0xf]
      %v3429 = vld [vmem:[%s5 + $0x9c] sm:$0xf]
      %v3430 = vld [vmem:[%s5 + $0xa0] sm:$0xf]
      %v3431 = vld [vmem:[%s5 + $0xa4] sm:$0xf]
      %v3432 = vld [vmem:[%s5 + $0xa8] sm:$0xf]
      %v3433 = vld [vmem:[%s5 + $0xac] sm:$0xf]
      %v3434 = vld [vmem:[%s5 + $0xb0] sm:$0xf]
      %v3450 = vunpack.c.l.b16 %v3405
      %v3451 = vunpack.c.l.b16 %v3406
      %v3452 = vunpack.c.l.b16 %v3407
      %v3453 = vunpack.c.l.b16 %v3408
      %v3454 = vunpack.c.l.b16 %v3409
      %v3455 = vunpack.c.l.b16 %v3410
      %v3456 = vunpack.c.l.b16 %v3411
      %v3457 = vunpack.c.l.b16 %v3412
      %v3458 = vunpack.c.l.b16 %v3413
      %v3459 = vunpack.c.l.b16 %v3414
      %v3460 = vunpack.c.l.b16 %v3415
      %v3461 = vunpack.c.l.b16 %v3416
      %v3462 = vunpack.c.l.b16 %v3417
      %v3463 = vunpack.c.l.b16 %v3418
      %v3464 = vunpack.c.l.b16 %v3419
      %v3465 = vpack.c.b16 %v3451, %v3450
      %v3466 = vpack.c.b16 %v3453, %v3452
      %v3467 = vpack.c.b16 %v3455, %v3454
      %v3468 = vpack.c.b16 %v3457, %v3456
      %v3469 = vpack.c.b16 %v3459, %v3458
      %v3470 = vpack.c.b16 %v3461, %v3460
      %v3471 = vpack.c.b16 %v3463, %v3462
      %v3472 = vpack.c.b16 %v3464, %v3464
      %v3481 = vsel %vm2451, %v3472, 0
      %3483 = vmatprep.subr.bf16.mxu0 0
      %3484 = vmatpush1.bf16.msra.mxu0 %v3465
      %3485 = vmatprep.subr.bf16.mxu0 0
      %3486 = vmatpush1.bf16.msra.mxu0 %v3466
      %3487 = vmatprep.subr.bf16.mxu0 0
      %3488 = vmatpush1.bf16.msra.mxu0 %v3467
      %3489 = vmatprep.subr.bf16.mxu0 0
      %3490 = vmatpush1.bf16.msra.mxu0 %v3468
      %3491 = vmatprep.subr.bf16.mxu0 0
      %3492 = vmatpush1.bf16.msra.mxu0 %v3469
      %3493 = vmatprep.subr.bf16.mxu0 0
      %3494 = vmatpush1.bf16.msra.mxu0 %v3470
      %3495 = vmatprep.subr.bf16.mxu0 0
      %3496 = vmatpush1.bf16.msra.mxu0 %v3471
      %3497 = vmatprep.subr.bf16.mxu0 0
      %3498 = vmatpush1.bf16.msra.mxu0 %v3481
      %3499 = vmatprep.subr.bf16.mxu0 0
      %3500 = vmatpush1.bf16.msra.mxu0 0
      %3501 = vmatprep.subr.bf16.mxu0 0
      %3502 = vmatpush1.bf16.msra.mxu0 0
      %3503 = vmatprep.subr.bf16.mxu0 0
      %3504 = vmatpush1.bf16.msra.mxu0 0
      %3505 = vmatprep.subr.bf16.mxu0 0
      %3506 = vmatpush1.bf16.msra.mxu0 0
      %3507 = vmatprep.subr.bf16.mxu0 0
      %3508 = vmatpush1.bf16.msra.mxu0 0
      %3509 = vmatprep.subr.bf16.mxu0 0
      %3510 = vmatpush1.bf16.msra.mxu0 0
      %3511 = vmatprep.subr.bf16.mxu0 0
      %3512 = vmatpush1.bf16.msra.mxu0 0
      %3513 = vmatprep.subr.bf16.mxu0 0
      %3514 = vmatpush1.bf16.msra.mxu0 0
      %3515 = vmatprep.mubr.bf16.mxu0 0
      %3516 = vmatmul.mubr.bf16.gmra.mrb[0].mxu0 %v2749
      %v3517 = vpop.f32.mrb[0].mxu0
      %v3518 = vadd.f32 0.0, %v3517
      %v3519 = vpop.f32.mrb[0].mxu0
      %v3520 = vpop.f32.mrb[0].mxu0
      %v3521 = vadd.f32 0.0, %v3520
      %v3522 = vpop.f32.mrb[0].mxu0
      %3523 = vmatprep.mubr.bf16.mxu0 0
      %3524 = vmatmul.mubr.bf16.gmra.mrb[0].mxu0 %v2752
      %v3525 = vpop.f32.mrb[0].mxu0
      %v3526 = vadd.f32 0.0, %v3525
      %v3527 = vpop.f32.mrb[0].mxu0
      %v3528 = vpop.f32.mrb[0].mxu0
      %v3529 = vadd.f32 0.0, %v3528
      %v3530 = vpop.f32.mrb[0].mxu0
      %3531 = vmatprep.mubr.bf16.mxu0 0
      %3532 = vmatmul.mubr.bf16.gmra.mrb[0].mxu0 %v2755
      %v3533 = vpop.f32.mrb[0].mxu0
      %v3534 = vadd.f32 0.0, %v3533
      %v3535 = vpop.f32.mrb[0].mxu0
      %v3536 = vpop.f32.mrb[0].mxu0
      %v3537 = vadd.f32 0.0, %v3536
      %v3538 = vpop.f32.mrb[0].mxu0
      %3539 = vmatprep.mubr.bf16.mxu0 0
      %3540 = vmatmul.mubr.bf16.gmra.mrb[0].mxu0 %v2758
      %v3541 = vpop.f32.mrb[0].mxu0
      %v3542 = vadd.f32 0.0, %v3541
      %v3543 = vpop.f32.mrb[0].mxu0
      %v3544 = vpop.f32.mrb[0].mxu0
      %v3545 = vadd.f32 0.0, %v3544
      %v3546 = vpop.f32.mrb[0].mxu0
      %3547 = vmatprep.mubr.bf16.mxu0 0
      %3548 = vmatmul.mubr.bf16.gmra.mrb[0].mxu0 %v2761
      %v3549 = vpop.f32.mrb[0].mxu0
      %v3550 = vadd.f32 0.0, %v3549
      %v3551 = vpop.f32.mrb[0].mxu0
      %v3552 = vpop.f32.mrb[0].mxu0
      %v3553 = vadd.f32 0.0, %v3552
      %v3554 = vpop.f32.mrb[0].mxu0
      %3555 = vmatprep.mubr.bf16.mxu0 0
      %3556 = vmatmul.mubr.bf16.gmra.mrb[0].mxu0 %v2764
      %v3557 = vpop.f32.mrb[0].mxu0
      %v3558 = vadd.f32 0.0, %v3557
      %v3559 = vpop.f32.mrb[0].mxu0
      %v3560 = vpop.f32.mrb[0].mxu0
      %v3561 = vadd.f32 0.0, %v3560
      %v3562 = vpop.f32.mrb[0].mxu0
      %3563 = vmatprep.mubr.bf16.mxu0 0
      %3564 = vmatmul.mubr.bf16.gmra.mrb[0].mxu0 %v3012
      %v3565 = vpop.f32.mrb[0].mxu0
      %v3566 = vadd.f32 0.0, %v3565
      %v3567 = vpop.f32.mrb[0].mxu0
      %v3568 = vpop.f32.mrb[0].mxu0
      %v3569 = vadd.f32 0.0, %v3568
      %v3570 = vpop.f32.mrb[0].mxu0
      %3571 = vmatprep.mubr.bf16.mxu0 0
      %3572 = vmatmul.mubr.bf16.gmra.mrb[0].mxu0 %v3015
      %v3573 = vpop.f32.mrb[0].mxu0
      %v3574 = vadd.f32 0.0, %v3573
      %v3575 = vpop.f32.mrb[0].mxu0
      %v3576 = vpop.f32.mrb[0].mxu0
      %v3577 = vadd.f32 0.0, %v3576
      %v3578 = vpop.f32.mrb[0].mxu0
      %3579 = vdwg.mxu0
      %v3595 = vunpack.c.l.b16 %v3420
      %v3596 = vunpack.c.l.b16 %v3421
      %v3597 = vunpack.c.l.b16 %v3422
      %v3598 = vunpack.c.l.b16 %v3423
      %v3599 = vunpack.c.l.b16 %v3424
      %v3600 = vunpack.c.l.b16 %v3425
      %v3601 = vunpack.c.l.b16 %v3426
      %v3602 = vunpack.c.l.b16 %v3427
      %v3603 = vunpack.c.l.b16 %v3428
      %v3604 = vunpack.c.l.b16 %v3429
      %v3605 = vunpack.c.l.b16 %v3430
      %v3606 = vunpack.c.l.b16 %v3431
      %v3607 = vunpack.c.l.b16 %v3432
      %v3608 = vunpack.c.l.b16 %v3433
      %v3609 = vunpack.c.l.b16 %v3434
      %v3610 = vpack.c.b16 %v3596, %v3595
      %v3611 = vpack.c.b16 %v3598, %v3597
      %v3612 = vpack.c.b16 %v3600, %v3599
      %v3613 = vpack.c.b16 %v3602, %v3601
      %v3614 = vpack.c.b16 %v3604, %v3603
      %v3615 = vpack.c.b16 %v3606, %v3605
      %v3616 = vpack.c.b16 %v3608, %v3607
      %v3617 = vpack.c.b16 %v3609, %v3609
      %v3626 = vsel %vm2451, %v3617, 0
      %3628 = vmatprep.subr.bf16.mxu0 0
      %3629 = vmatpush1.bf16.msra.mxu0 %v3610
      %3630 = vmatprep.subr.bf16.mxu0 0
      %3631 = vmatpush1.bf16.msra.mxu0 %v3611
      %3632 = vmatprep.subr.bf16.mxu0 0
      %3633 = vmatpush1.bf16.msra.mxu0 %v3612
      %3634 = vmatprep.subr.bf16.mxu0 0
      %3635 = vmatpush1.bf16.msra.mxu0 %v3613
      %3636 = vmatprep.subr.bf16.mxu0 0
      %3637 = vmatpush1.bf16.msra.mxu0 %v3614
      %3638 = vmatprep.subr.bf16.mxu0 0
      %3639 = vmatpush1.bf16.msra.mxu0 %v3615
      %3640 = vmatprep.subr.bf16.mxu0 0
      %3641 = vmatpush1.bf16.msra.mxu0 %v3616
      %3642 = vmatprep.subr.bf16.mxu0 0
      %3643 = vmatpush1.bf16.msra.mxu0 %v3626
      %3644 = vmatprep.subr.bf16.mxu0 0
      %3645 = vmatpush1.bf16.msra.mxu0 0
      %3646 = vmatprep.subr.bf16.mxu0 0
      %3647 = vmatpush1.bf16.msra.mxu0 0
      %3648 = vmatprep.subr.bf16.mxu0 0
      %3649 = vmatpush1.bf16.msra.mxu0 0
      %3650 = vmatprep.subr.bf16.mxu0 0
      %3651 = vmatpush1.bf16.msra.mxu0 0
      %3652 = vmatprep.subr.bf16.mxu0 0
      %3653 = vmatpush1.bf16.msra.mxu0 0
      %3654 = vmatprep.subr.bf16.mxu0 0
      %3655 = vmatpush1.bf16.msra.mxu0 0
      %3656 = vmatprep.subr.bf16.mxu0 0
      %3657 = vmatpush1.bf16.msra.mxu0 0
      %3658 = vmatprep.subr.bf16.mxu0 0
      %3659 = vmatpush1.bf16.msra.mxu0 0
      %3660 = vmatprep.mubr.bf16.mxu0 0
      %3661 = vmatmul.mubr.bf16.gmra.mrb[0].mxu0 %v2749
      %v3662 = vpop.f32.mrb[0].mxu0
      %v3663 = vadd.f32 0.0, %v3662
      %v3664 = vpop.f32.mrb[0].mxu0
      %v3665 = vpop.f32.mrb[0].mxu0
      %v3666 = vadd.f32 0.0, %v3665
      %v3667 = vpop.f32.mrb[0].mxu0
      %3668 = vmatprep.mubr.bf16.mxu0 0
      %3669 = vmatmul.mubr.bf16.gmra.mrb[0].mxu0 %v2752
      %v3670 = vpop.f32.mrb[0].mxu0
      %v3671 = vadd.f32 0.0, %v3670
      %v3672 = vpop.f32.mrb[0].mxu0
      %v3673 = vpop.f32.mrb[0].mxu0
      %v3674 = vadd.f32 0.0, %v3673
      %v3675 = vpop.f32.mrb[0].mxu0
      %3676 = vmatprep.mubr.bf16.mxu0 0
      %3677 = vmatmul.mubr.bf16.gmra.mrb[0].mxu0 %v2755
      %v3678 = vpop.f32.mrb[0].mxu0
      %v3679 = vadd.f32 0.0, %v3678
      %v3680 = vpop.f32.mrb[0].mxu0
      %v3681 = vpop.f32.mrb[0].mxu0
      %v3682 = vadd.f32 0.0, %v3681
      %v3683 = vpop.f32.mrb[0].mxu0
      %3684 = vmatprep.mubr.bf16.mxu0 0
      %3685 = vmatmul.mubr.bf16.gmra.mrb[0].mxu0 %v2758
      %v3686 = vpop.f32.mrb[0].mxu0
      %v3687 = vadd.f32 0.0, %v3686
      %v3688 = vpop.f32.mrb[0].mxu0
      %v3689 = vpop.f32.mrb[0].mxu0
      %v3690 = vadd.f32 0.0, %v3689
      %v3691 = vpop.f32.mrb[0].mxu0
      %3692 = vmatprep.mubr.bf16.mxu0 0
      %3693 = vmatmul.mubr.bf16.gmra.mrb[0].mxu0 %v2761
      %v3694 = vpop.f32.mrb[0].mxu0
      %v3695 = vadd.f32 0.0, %v3694
      %v3696 = vpop.f32.mrb[0].mxu0
      %v3697 = vpop.f32.mrb[0].mxu0
      %v3698 = vadd.f32 0.0, %v3697
      %v3699 = vpop.f32.mrb[0].mxu0
      %3700 = vmatprep.mubr.bf16.mxu0 0
      %3701 = vmatmul.mubr.bf16.gmra.mrb[0].mxu0 %v2764
      %v3702 = vpop.f32.mrb[0].mxu0
      %v3703 = vadd.f32 0.0, %v3702
      %v3704 = vpop.f32.mrb[0].mxu0
      %v3705 = vpop.f32.mrb[0].mxu0
      %v3706 = vadd.f32 0.0, %v3705
      %v3707 = vpop.f32.mrb[0].mxu0
      %3708 = vmatprep.mubr.bf16.mxu0 0
      %3709 = vmatmul.mubr.bf16.gmra.mrb[0].mxu0 %v3012
      %v3710 = vpop.f32.mrb[0].mxu0
      %v3711 = vadd.f32 0.0, %v3710
      %v3712 = vpop.f32.mrb[0].mxu0
      %v3713 = vpop.f32.mrb[0].mxu0
      %v3714 = vadd.f32 0.0, %v3713
      %v3715 = vpop.f32.mrb[0].mxu0
      %3716 = vmatprep.mubr.bf16.mxu0 0
      %3717 = vmatmul.mubr.bf16.gmra.mrb[0].mxu0 %v3015
      %v3718 = vpop.f32.mrb[0].mxu0
      %v3719 = vadd.f32 0.0, %v3718
      %v3720 = vpop.f32.mrb[0].mxu0
      %v3721 = vpop.f32.mrb[0].mxu0
      %v3722 = vadd.f32 0.0, %v3721
      %v3723 = vpop.f32.mrb[0].mxu0
      %3724 = vdwg.mxu0
      %v3725 = vadd.f32 %v2804, %v3518
      %v3726 = vadd.f32 %v2807, %v3521
      %v3727 = vadd.f32 %v2812, %v3526
      %v3728 = vadd.f32 %v2815, %v3529
      %v3729 = vadd.f32 %v2820, %v3534
      %v3730 = vadd.f32 %v2823, %v3537
      %v3731 = vadd.f32 %v2828, %v3542
      %v3732 = vadd.f32 %v2831, %v3545
      %v3733 = vadd.f32 %v2836, %v3550
      %v3734 = vadd.f32 %v2839, %v3553
      %v3735 = vadd.f32 %v2844, %v3558
      %v3736 = vadd.f32 %v2847, %v3561
      %v3737 = vadd.f32 %v2852, %v3566
      %v3738 = vadd.f32 %v2855, %v3569
      %v3739 = vadd.f32 %v2860, %v3574
      %v3740 = vadd.f32 %v2863, %v3577
      %v3741 = vadd.f32 %v2949, %v3663
      %v3742 = vadd.f32 %v2952, %v3666
      %v3743 = vadd.f32 %v2957, %v3671
      %v3744 = vadd.f32 %v2960, %v3674
      %v3745 = vadd.f32 %v2965, %v3679
      %v3746 = vadd.f32 %v2968, %v3682
      %v3747 = vadd.f32 %v2973, %v3687
      %v3748 = vadd.f32 %v2976, %v3690
      %v3749 = vadd.f32 %v2981, %v3695
      %v3750 = vadd.f32 %v2984, %v3698
      %v3751 = vadd.f32 %v2989, %v3703
      %v3752 = vadd.f32 %v2992, %v3706
      %v3753 = vadd.f32 %v2997, %v3711
      %v3754 = vadd.f32 %v3000, %v3714
      %v3755 = vadd.f32 %v3005, %v3719
      %v3756 = vadd.f32 %v3008, %v3722
      %v3758 = vsel %vm2426, %v2317, 0
      %v3761 = vsel %vm2426, %v2318, 0
      %3763 = vmatprep.subr.bf16.mxu0 0
      %3764 = vmatpush1.bf16.msra.mxu0 %v3465
      %3765 = vmatprep.subr.bf16.mxu0 0
      %3766 = vmatpush1.bf16.msra.mxu0 %v3466
      %3767 = vmatprep.subr.bf16.mxu0 0
      %3768 = vmatpush1.bf16.msra.mxu0 %v3467
      %3769 = vmatprep.subr.bf16.mxu0 0
      %3770 = vmatpush1.bf16.msra.mxu0 %v3468
      %3771 = vmatprep.subr.bf16.mxu0 0
      %3772 = vmatpush1.bf16.msra.mxu0 %v3469
      %3773 = vmatprep.subr.bf16.mxu0 0
      %3774 = vmatpush1.bf16.msra.mxu0 %v3470
      %3775 = vmatprep.subr.bf16.mxu0 0
      %3776 = vmatpush1.bf16.msra.mxu0 %v3471
      %3777 = vmatprep.subr.bf16.mxu0 0
      %3778 = vmatpush1.bf16.msra.mxu0 %v3481
      %3779 = vmatprep.subr.bf16.mxu0 0
      %3780 = vmatpush1.bf16.msra.mxu0 0
      %3781 = vmatprep.subr.bf16.mxu0 0
      %3782 = vmatpush1.bf16.msra.mxu0 0
      %3783 = vmatprep.subr.bf16.mxu0 0
      %3784 = vmatpush1.bf16.msra.mxu0 0
      %3785 = vmatprep.subr.bf16.mxu0 0
      %3786 = vmatpush1.bf16.msra.mxu0 0
      %3787 = vmatprep.subr.bf16.mxu0 0
      %3788 = vmatpush1.bf16.msra.mxu0 0
      %3789 = vmatprep.subr.bf16.mxu0 0
      %3790 = vmatpush1.bf16.msra.mxu0 0
      %3791 = vmatprep.subr.bf16.mxu0 0
      %3792 = vmatpush1.bf16.msra.mxu0 0
      %3793 = vmatprep.subr.bf16.mxu0 0
      %3794 = vmatpush1.bf16.msra.mxu0 0
      %3795 = vmatprep.mubr.bf16.mxu0 0
      %3796 = vmatmul.mubr.bf16.gmra.mrb[0].mxu0 %v2434
      %v3797 = vpop.f32.mrb[0].mxu0
      %v3798 = vadd.f32 0.0, %v3797
      %v3799 = vpop.f32.mrb[0].mxu0
      %v3800 = vpop.f32.mrb[0].mxu0
      %v3801 = vadd.f32 0.0, %v3800
      %v3802 = vpop.f32.mrb[0].mxu0
      %3803 = vmatprep.mubr.bf16.mxu0 0
      %3804 = vmatmul.mubr.bf16.gmra.mrb[0].mxu0 %v2437
      %v3805 = vpop.f32.mrb[0].mxu0
      %v3806 = vadd.f32 0.0, %v3805
      %v3807 = vpop.f32.mrb[0].mxu0
      %v3808 = vpop.f32.mrb[0].mxu0
      %v3809 = vadd.f32 0.0, %v3808
      %v3810 = vpop.f32.mrb[0].mxu0
      %3811 = vmatprep.mubr.bf16.mxu0 0
      %3812 = vmatmul.mubr.bf16.gmra.mrb[0].mxu0 %v2440
      %v3813 = vpop.f32.mrb[0].mxu0
      %v3814 = vadd.f32 0.0, %v3813
      %v3815 = vpop.f32.mrb[0].mxu0
      %v3816 = vpop.f32.mrb[0].mxu0
      %v3817 = vadd.f32 0.0, %v3816
      %v3818 = vpop.f32.mrb[0].mxu0
      %3819 = vmatprep.mubr.bf16.mxu0 0
      %3820 = vmatmul.mubr.bf16.gmra.mrb[0].mxu0 %v2443
      %v3821 = vpop.f32.mrb[0].mxu0
      %v3822 = vadd.f32 0.0, %v3821
      %v3823 = vpop.f32.mrb[0].mxu0
      %v3824 = vpop.f32.mrb[0].mxu0
      %v3825 = vadd.f32 0.0, %v3824
      %v3826 = vpop.f32.mrb[0].mxu0
      %3827 = vmatprep.mubr.bf16.mxu0 0
      %3828 = vmatmul.mubr.bf16.gmra.mrb[0].mxu0 %v2446
      %v3829 = vpop.f32.mrb[0].mxu0
      %v3830 = vadd.f32 0.0, %v3829
      %v3831 = vpop.f32.mrb[0].mxu0
      %v3832 = vpop.f32.mrb[0].mxu0
      %v3833 = vadd.f32 0.0, %v3832
      %v3834 = vpop.f32.mrb[0].mxu0
      %3835 = vmatprep.mubr.bf16.mxu0 0
      %3836 = vmatmul.mubr.bf16.gmra.mrb[0].mxu0 %v2449
      %v3837 = vpop.f32.mrb[0].mxu0
      %v3838 = vadd.f32 0.0, %v3837
      %v3839 = vpop.f32.mrb[0].mxu0
      %v3840 = vpop.f32.mrb[0].mxu0
      %v3841 = vadd.f32 0.0, %v3840
      %v3842 = vpop.f32.mrb[0].mxu0
      %3843 = vmatprep.mubr.bf16.mxu0 0
      %3844 = vmatmul.mubr.bf16.gmra.mrb[0].mxu0 %v3758
      %v3845 = vpop.f32.mrb[0].mxu0
      %v3846 = vadd.f32 0.0, %v3845
      %v3847 = vpop.f32.mrb[0].mxu0
      %v3848 = vpop.f32.mrb[0].mxu0
      %v3849 = vadd.f32 0.0, %v3848
      %v3850 = vpop.f32.mrb[0].mxu0
      %3851 = vmatprep.mubr.bf16.mxu0 0
      %3852 = vmatmul.mubr.bf16.gmra.mrb[0].mxu0 %v3761
      %v3853 = vpop.f32.mrb[0].mxu0
      %v3854 = vadd.f32 0.0, %v3853
      %v3855 = vpop.f32.mrb[0].mxu0
      %v3856 = vpop.f32.mrb[0].mxu0
      %v3857 = vadd.f32 0.0, %v3856
      %v3858 = vpop.f32.mrb[0].mxu0
      %3859 = vdwg.mxu0
      %3860 = vmatprep.subr.bf16.mxu0 0
      %3861 = vmatpush1.bf16.msra.mxu0 %v3610
      %3862 = vmatprep.subr.bf16.mxu0 0
      %3863 = vmatpush1.bf16.msra.mxu0 %v3611
      %3864 = vmatprep.subr.bf16.mxu0 0
      %3865 = vmatpush1.bf16.msra.mxu0 %v3612
      %3866 = vmatprep.subr.bf16.mxu0 0
      %3867 = vmatpush1.bf16.msra.mxu0 %v3613
      %3868 = vmatprep.subr.bf16.mxu0 0
      %3869 = vmatpush1.bf16.msra.mxu0 %v3614
      %3870 = vmatprep.subr.bf16.mxu0 0
      %3871 = vmatpush1.bf16.msra.mxu0 %v3615
      %3872 = vmatprep.subr.bf16.mxu0 0
      %3873 = vmatpush1.bf16.msra.mxu0 %v3616
      %3874 = vmatprep.subr.bf16.mxu0 0
      %3875 = vmatpush1.bf16.msra.mxu0 %v3626
      %3876 = vmatprep.subr.bf16.mxu0 0
      %3877 = vmatpush1.bf16.msra.mxu0 0
      %3878 = vmatprep.subr.bf16.mxu0 0
      %3879 = vmatpush1.bf16.msra.mxu0 0
      %3880 = vmatprep.subr.bf16.mxu0 0
      %3881 = vmatpush1.bf16.msra.mxu0 0
      %3882 = vmatprep.subr.bf16.mxu0 0
      %3883 = vmatpush1.bf16.msra.mxu0 0
      %3884 = vmatprep.subr.bf16.mxu0 0
      %3885 = vmatpush1.bf16.msra.mxu0 0
      %3886 = vmatprep.subr.bf16.mxu0 0
      %3887 = vmatpush1.bf16.msra.mxu0 0
      %3888 = vmatprep.subr.bf16.mxu0 0
      %3889 = vmatpush1.bf16.msra.mxu0 0
      %3890 = vmatprep.subr.bf16.mxu0 0
      %3891 = vmatpush1.bf16.msra.mxu0 0
      %3892 = vmatprep.mubr.bf16.mxu0 0
      %3893 = vmatmul.mubr.bf16.gmra.mrb[0].mxu0 %v2434
      %v3894 = vpop.f32.mrb[0].mxu0
      %v3895 = vadd.f32 0.0, %v3894
      %v3896 = vpop.f32.mrb[0].mxu0
      %v3897 = vpop.f32.mrb[0].mxu0
      %v3898 = vadd.f32 0.0, %v3897
      %v3899 = vpop.f32.mrb[0].mxu0
      %3900 = vmatprep.mubr.bf16.mxu0 0
      %3901 = vmatmul.mubr.bf16.gmra.mrb[0].mxu0 %v2437
      %v3902 = vpop.f32.mrb[0].mxu0
      %v3903 = vadd.f32 0.0, %v3902
      %v3904 = vpop.f32.mrb[0].mxu0
      %v3905 = vpop.f32.mrb[0].mxu0
      %v3906 = vadd.f32 0.0, %v3905
      %v3907 = vpop.f32.mrb[0].mxu0
      %3908 = vmatprep.mubr.bf16.mxu0 0
      %3909 = vmatmul.mubr.bf16.gmra.mrb[0].mxu0 %v2440
      %v3910 = vpop.f32.mrb[0].mxu0
      %v3911 = vadd.f32 0.0, %v3910
      %v3912 = vpop.f32.mrb[0].mxu0
      %v3913 = vpop.f32.mrb[0].mxu0
      %v3914 = vadd.f32 0.0, %v3913
      %v3915 = vpop.f32.mrb[0].mxu0
      %3916 = vmatprep.mubr.bf16.mxu0 0
      %3917 = vmatmul.mubr.bf16.gmra.mrb[0].mxu0 %v2443
      %v3918 = vpop.f32.mrb[0].mxu0
      %v3919 = vadd.f32 0.0, %v3918
      %v3920 = vpop.f32.mrb[0].mxu0
      %v3921 = vpop.f32.mrb[0].mxu0
      %v3922 = vadd.f32 0.0, %v3921
      %v3923 = vpop.f32.mrb[0].mxu0
      %3924 = vmatprep.mubr.bf16.mxu0 0
      %3925 = vmatmul.mubr.bf16.gmra.mrb[0].mxu0 %v2446
      %v3926 = vpop.f32.mrb[0].mxu0
      %v3927 = vadd.f32 0.0, %v3926
      %v3928 = vpop.f32.mrb[0].mxu0
      %v3929 = vpop.f32.mrb[0].mxu0
      %v3930 = vadd.f32 0.0, %v3929
      %v3931 = vpop.f32.mrb[0].mxu0
      %3932 = vmatprep.mubr.bf16.mxu0 0
      %3933 = vmatmul.mubr.bf16.gmra.mrb[0].mxu0 %v2449
      %v3934 = vpop.f32.mrb[0].mxu0
      %v3935 = vadd.f32 0.0, %v3934
      %v3936 = vpop.f32.mrb[0].mxu0
      %v3937 = vpop.f32.mrb[0].mxu0
      %v3938 = vadd.f32 0.0, %v3937
      %v3939 = vpop.f32.mrb[0].mxu0
      %3940 = vmatprep.mubr.bf16.mxu0 0
      %3941 = vmatmul.mubr.bf16.gmra.mrb[0].mxu0 %v3758
      %v3942 = vpop.f32.mrb[0].mxu0
      %v3943 = vadd.f32 0.0, %v3942
      %v3944 = vpop.f32.mrb[0].mxu0
      %v3945 = vpop.f32.mrb[0].mxu0
      %v3946 = vadd.f32 0.0, %v3945
      %v3947 = vpop.f32.mrb[0].mxu0
      %3948 = vmatprep.mubr.bf16.mxu0 0
      %3949 = vmatmul.mubr.bf16.gmra.mrb[0].mxu0 %v3761
      %v3950 = vpop.f32.mrb[0].mxu0
      %v3951 = vadd.f32 0.0, %v3950
      %v3952 = vpop.f32.mrb[0].mxu0
      %v3953 = vpop.f32.mrb[0].mxu0
      %v3954 = vadd.f32 0.0, %v3953
      %v3955 = vpop.f32.mrb[0].mxu0
      %3956 = vdwg.mxu0
      %v3957 = vadd.f32 %v3246, %v3798
      %v3958 = vadd.f32 %v3249, %v3801
      %v3959 = vadd.f32 %v3254, %v3806
      %v3960 = vadd.f32 %v3257, %v3809
      %v3961 = vadd.f32 %v3262, %v3814
      %v3962 = vadd.f32 %v3265, %v3817
      %v3963 = vadd.f32 %v3270, %v3822
      %v3964 = vadd.f32 %v3273, %v3825
      %v3965 = vadd.f32 %v3278, %v3830
      %v3966 = vadd.f32 %v3281, %v3833
      %v3967 = vadd.f32 %v3286, %v3838
      %v3968 = vadd.f32 %v3289, %v3841
      %v3969 = vadd.f32 %v3294, %v3846
      %v3970 = vadd.f32 %v3297, %v3849
      %v3971 = vadd.f32 %v3302, %v3854
      %v3972 = vadd.f32 %v3305, %v3857
      %v3973 = vadd.f32 %v3343, %v3895
      %v3974 = vadd.f32 %v3346, %v3898
      %v3975 = vadd.f32 %v3351, %v3903
      %v3976 = vadd.f32 %v3354, %v3906
      %v3977 = vadd.f32 %v3359, %v3911
      %v3978 = vadd.f32 %v3362, %v3914
      %v3979 = vadd.f32 %v3367, %v3919
      %v3980 = vadd.f32 %v3370, %v3922
      %v3981 = vadd.f32 %v3375, %v3927
      %v3982 = vadd.f32 %v3378, %v3930
      %v3983 = vadd.f32 %v3383, %v3935
      %v3984 = vadd.f32 %v3386, %v3938
      %v3985 = vadd.f32 %v3391, %v3943
      %v3986 = vadd.f32 %v3394, %v3946
      %v3987 = vadd.f32 %v3399, %v3951
      %v3988 = vadd.f32 %v3402, %v3954
      %v3989 = vld [vmem:[%s4 + $0xb4] sm:$0xf]
      %v3990 = vld [vmem:[%s4 + $0xb8] sm:$0xf]
      %v3991 = vld [vmem:[%s4 + $0xbc] sm:$0xf]
      %v3992 = vld [vmem:[%s4 + $0xc0] sm:$0xf]
      %v3993 = vld [vmem:[%s4 + $0xc4] sm:$0xf]
      %v3994 = vld [vmem:[%s4 + $0xc8] sm:$0xf]
      %v3995 = vld [vmem:[%s4 + $0xcc] sm:$0xf]
      %v3996 = vld [vmem:[%s4 + $0xd0] sm:$0xf]
      %v3997 = vld [vmem:[%s4 + $0xd4] sm:$0xf]
      %v3998 = vld [vmem:[%s4 + $0xd8] sm:$0xf]
      %v3999 = vld [vmem:[%s4 + $0xdc] sm:$0xf]
      %v4000 = vld [vmem:[%s4 + $0xe0] sm:$0xf]
      %v4001 = vld [vmem:[%s4 + $0xe4] sm:$0xf]
      %v4002 = vld [vmem:[%s4 + $0xe8] sm:$0xf]
      %v4003 = vld [vmem:[%s4 + $0xec] sm:$0xf]
      %v4004 = vld [vmem:[%s5 + $0xb4] sm:$0xf]
      %v4005 = vld [vmem:[%s5 + $0xb8] sm:$0xf]
      %v4006 = vld [vmem:[%s5 + $0xbc] sm:$0xf]
      %v4007 = vld [vmem:[%s5 + $0xc0] sm:$0xf]
      %v4008 = vld [vmem:[%s5 + $0xc4] sm:$0xf]
      %v4009 = vld [vmem:[%s5 + $0xc8] sm:$0xf]
      %v4010 = vld [vmem:[%s5 + $0xcc] sm:$0xf]
      %v4011 = vld [vmem:[%s5 + $0xd0] sm:$0xf]
      %v4012 = vld [vmem:[%s5 + $0xd4] sm:$0xf]
      %v4013 = vld [vmem:[%s5 + $0xd8] sm:$0xf]
      %v4014 = vld [vmem:[%s5 + $0xdc] sm:$0xf]
      %v4015 = vld [vmem:[%s5 + $0xe0] sm:$0xf]
      %v4016 = vld [vmem:[%s5 + $0xe4] sm:$0xf]
      %v4017 = vld [vmem:[%s5 + $0xe8] sm:$0xf]
      %v4018 = vld [vmem:[%s5 + $0xec] sm:$0xf]
      %v4034 = vunpack.c.l.b16 %v3989
      %v4035 = vunpack.c.l.b16 %v3990
      %v4036 = vunpack.c.l.b16 %v3991
      %v4037 = vunpack.c.l.b16 %v3992
      %v4038 = vunpack.c.l.b16 %v3993
      %v4039 = vunpack.c.l.b16 %v3994
      %v4040 = vunpack.c.l.b16 %v3995
      %v4041 = vunpack.c.l.b16 %v3996
      %v4042 = vunpack.c.l.b16 %v3997
      %v4043 = vunpack.c.l.b16 %v3998
      %v4044 = vunpack.c.l.b16 %v3999
      %v4045 = vunpack.c.l.b16 %v4000
      %v4046 = vunpack.c.l.b16 %v4001
      %v4047 = vunpack.c.l.b16 %v4002
      %v4048 = vunpack.c.l.b16 %v4003
      %v4049 = vpack.c.b16 %v4035, %v4034
      %v4050 = vpack.c.b16 %v4037, %v4036
      %v4051 = vpack.c.b16 %v4039, %v4038
      %v4052 = vpack.c.b16 %v4041, %v4040
      %v4053 = vpack.c.b16 %v4043, %v4042
      %v4054 = vpack.c.b16 %v4045, %v4044
      %v4055 = vpack.c.b16 %v4047, %v4046
      %v4056 = vpack.c.b16 %v4048, %v4048
      %v4065 = vsel %vm2451, %v4056, 0
      %4067 = vmatprep.subr.bf16.mxu0 0
      %4068 = vmatpush1.bf16.msra.mxu0 %v4049
      %4069 = vmatprep.subr.bf16.mxu0 0
      %4070 = vmatpush1.bf16.msra.mxu0 %v4050
      %4071 = vmatprep.subr.bf16.mxu0 0
      %4072 = vmatpush1.bf16.msra.mxu0 %v4051
      %4073 = vmatprep.subr.bf16.mxu0 0
      %4074 = vmatpush1.bf16.msra.mxu0 %v4052
      %4075 = vmatprep.subr.bf16.mxu0 0
      %4076 = vmatpush1.bf16.msra.mxu0 %v4053
      %4077 = vmatprep.subr.bf16.mxu0 0
      %4078 = vmatpush1.bf16.msra.mxu0 %v4054
      %4079 = vmatprep.subr.bf16.mxu0 0
      %4080 = vmatpush1.bf16.msra.mxu0 %v4055
      %4081 = vmatprep.subr.bf16.mxu0 0
      %4082 = vmatpush1.bf16.msra.mxu0 %v4065
      %4083 = vmatprep.subr.bf16.mxu0 0
      %4084 = vmatpush1.bf16.msra.mxu0 0
      %4085 = vmatprep.subr.bf16.mxu0 0
      %4086 = vmatpush1.bf16.msra.mxu0 0
      %4087 = vmatprep.subr.bf16.mxu0 0
      %4088 = vmatpush1.bf16.msra.mxu0 0
      %4089 = vmatprep.subr.bf16.mxu0 0
      %4090 = vmatpush1.bf16.msra.mxu0 0
      %4091 = vmatprep.subr.bf16.mxu0 0
      %4092 = vmatpush1.bf16.msra.mxu0 0
      %4093 = vmatprep.subr.bf16.mxu0 0
      %4094 = vmatpush1.bf16.msra.mxu0 0
      %4095 = vmatprep.subr.bf16.mxu0 0
      %4096 = vmatpush1.bf16.msra.mxu0 0
      %4097 = vmatprep.subr.bf16.mxu0 0
      %4098 = vmatpush1.bf16.msra.mxu0 0
      %4099 = vmatprep.mubr.bf16.mxu0 0
      %4100 = vmatmul.mubr.bf16.gmra.mrb[0].mxu0 %v2434
      %v4101 = vpop.f32.mrb[0].mxu0
      %v4102 = vadd.f32 0.0, %v4101
      %v4103 = vpop.f32.mrb[0].mxu0
      %v4104 = vpop.f32.mrb[0].mxu0
      %v4105 = vadd.f32 0.0, %v4104
      %v4106 = vpop.f32.mrb[0].mxu0
      %4107 = vmatprep.mubr.bf16.mxu0 0
      %4108 = vmatmul.mubr.bf16.gmra.mrb[0].mxu0 %v2437
      %v4109 = vpop.f32.mrb[0].mxu0
      %v4110 = vadd.f32 0.0, %v4109
      %v4111 = vpop.f32.mrb[0].mxu0
      %v4112 = vpop.f32.mrb[0].mxu0
      %v4113 = vadd.f32 0.0, %v4112
      %v4114 = vpop.f32.mrb[0].mxu0
      %4115 = vmatprep.mubr.bf16.mxu0 0
      %4116 = vmatmul.mubr.bf16.gmra.mrb[0].mxu0 %v2440
      %v4117 = vpop.f32.mrb[0].mxu0
      %v4118 = vadd.f32 0.0, %v4117
      %v4119 = vpop.f32.mrb[0].mxu0
      %v4120 = vpop.f32.mrb[0].mxu0
      %v4121 = vadd.f32 0.0, %v4120
      %v4122 = vpop.f32.mrb[0].mxu0
      %4123 = vmatprep.mubr.bf16.mxu0 0
      %4124 = vmatmul.mubr.bf16.gmra.mrb[0].mxu0 %v2443
      %v4125 = vpop.f32.mrb[0].mxu0
      %v4126 = vadd.f32 0.0, %v4125
      %v4127 = vpop.f32.mrb[0].mxu0
      %v4128 = vpop.f32.mrb[0].mxu0
      %v4129 = vadd.f32 0.0, %v4128
      %v4130 = vpop.f32.mrb[0].mxu0
      %4131 = vmatprep.mubr.bf16.mxu0 0
      %4132 = vmatmul.mubr.bf16.gmra.mrb[0].mxu0 %v2446
      %v4133 = vpop.f32.mrb[0].mxu0
      %v4134 = vadd.f32 0.0, %v4133
      %v4135 = vpop.f32.mrb[0].mxu0
      %v4136 = vpop.f32.mrb[0].mxu0
      %v4137 = vadd.f32 0.0, %v4136
      %v4138 = vpop.f32.mrb[0].mxu0
      %4139 = vmatprep.mubr.bf16.mxu0 0
      %4140 = vmatmul.mubr.bf16.gmra.mrb[0].mxu0 %v2449
      %v4141 = vpop.f32.mrb[0].mxu0
      %v4142 = vadd.f32 0.0, %v4141
      %v4143 = vpop.f32.mrb[0].mxu0
      %v4144 = vpop.f32.mrb[0].mxu0
      %v4145 = vadd.f32 0.0, %v4144
      %v4146 = vpop.f32.mrb[0].mxu0
      %4147 = vmatprep.mubr.bf16.mxu0 0
      %4148 = vmatmul.mubr.bf16.gmra.mrb[0].mxu0 %v3758
      %v4149 = vpop.f32.mrb[0].mxu0
      %v4150 = vadd.f32 0.0, %v4149
      %v4151 = vpop.f32.mrb[0].mxu0
      %v4152 = vpop.f32.mrb[0].mxu0
      %v4153 = vadd.f32 0.0, %v4152
      %v4154 = vpop.f32.mrb[0].mxu0
      %4155 = vmatprep.mubr.bf16.mxu0 0
      %4156 = vmatmul.mubr.bf16.gmra.mrb[0].mxu0 %v3761
      %v4157 = vpop.f32.mrb[0].mxu0
      %v4158 = vadd.f32 0.0, %v4157
      %v4159 = vpop.f32.mrb[0].mxu0
      %v4160 = vpop.f32.mrb[0].mxu0
      %v4161 = vadd.f32 0.0, %v4160
      %v4162 = vpop.f32.mrb[0].mxu0
      %4163 = vdwg.mxu0
      %v4179 = vunpack.c.l.b16 %v4004
      %v4180 = vunpack.c.l.b16 %v4005
      %v4181 = vunpack.c.l.b16 %v4006
      %v4182 = vunpack.c.l.b16 %v4007
      %v4183 = vunpack.c.l.b16 %v4008
      %v4184 = vunpack.c.l.b16 %v4009
      %v4185 = vunpack.c.l.b16 %v4010
      %v4186 = vunpack.c.l.b16 %v4011
      %v4187 = vunpack.c.l.b16 %v4012
      %v4188 = vunpack.c.l.b16 %v4013
      %v4189 = vunpack.c.l.b16 %v4014
      %v4190 = vunpack.c.l.b16 %v4015
      %v4191 = vunpack.c.l.b16 %v4016
      %v4192 = vunpack.c.l.b16 %v4017
      %v4193 = vunpack.c.l.b16 %v4018
      %v4194 = vpack.c.b16 %v4180, %v4179
      %v4195 = vpack.c.b16 %v4182, %v4181
      %v4196 = vpack.c.b16 %v4184, %v4183
      %v4197 = vpack.c.b16 %v4186, %v4185
      %v4198 = vpack.c.b16 %v4188, %v4187
      %v4199 = vpack.c.b16 %v4190, %v4189
      %v4200 = vpack.c.b16 %v4192, %v4191
      %v4201 = vpack.c.b16 %v4193, %v4193
      %v4210 = vsel %vm2451, %v4201, 0
      %4212 = vmatprep.subr.bf16.mxu0 0
      %4213 = vmatpush1.bf16.msra.mxu0 %v4194
      %4214 = vmatprep.subr.bf16.mxu0 0
      %4215 = vmatpush1.bf16.msra.mxu0 %v4195
      %4216 = vmatprep.subr.bf16.mxu0 0
      %4217 = vmatpush1.bf16.msra.mxu0 %v4196
      %4218 = vmatprep.subr.bf16.mxu0 0
      %4219 = vmatpush1.bf16.msra.mxu0 %v4197
      %4220 = vmatprep.subr.bf16.mxu0 0
      %4221 = vmatpush1.bf16.msra.mxu0 %v4198
      %4222 = vmatprep.subr.bf16.mxu0 0
      %4223 = vmatpush1.bf16.msra.mxu0 %v4199
      %4224 = vmatprep.subr.bf16.mxu0 0
      %4225 = vmatpush1.bf16.msra.mxu0 %v4200
      %4226 = vmatprep.subr.bf16.mxu0 0
      %4227 = vmatpush1.bf16.msra.mxu0 %v4210
      %4228 = vmatprep.subr.bf16.mxu0 0
      %4229 = vmatpush1.bf16.msra.mxu0 0
      %4230 = vmatprep.subr.bf16.mxu0 0
      %4231 = vmatpush1.bf16.msra.mxu0 0
      %4232 = vmatprep.subr.bf16.mxu0 0
      %4233 = vmatpush1.bf16.msra.mxu0 0
      %4234 = vmatprep.subr.bf16.mxu0 0
      %4235 = vmatpush1.bf16.msra.mxu0 0
      %4236 = vmatprep.subr.bf16.mxu0 0
      %4237 = vmatpush1.bf16.msra.mxu0 0
      %4238 = vmatprep.subr.bf16.mxu0 0
      %4239 = vmatpush1.bf16.msra.mxu0 0
      %4240 = vmatprep.subr.bf16.mxu0 0
      %4241 = vmatpush1.bf16.msra.mxu0 0
      %4242 = vmatprep.subr.bf16.mxu0 0
      %4243 = vmatpush1.bf16.msra.mxu0 0
      %4244 = vmatprep.mubr.bf16.mxu0 0
      %4245 = vmatmul.mubr.bf16.gmra.mrb[0].mxu0 %v2434
      %v4246 = vpop.f32.mrb[0].mxu0
      %v4247 = vadd.f32 0.0, %v4246
      %v4248 = vpop.f32.mrb[0].mxu0
      %v4249 = vpop.f32.mrb[0].mxu0
      %v4250 = vadd.f32 0.0, %v4249
      %v4251 = vpop.f32.mrb[0].mxu0
      %4252 = vmatprep.mubr.bf16.mxu0 0
      %4253 = vmatmul.mubr.bf16.gmra.mrb[0].mxu0 %v2437
      %v4254 = vpop.f32.mrb[0].mxu0
      %v4255 = vadd.f32 0.0, %v4254
      %v4256 = vpop.f32.mrb[0].mxu0
      %v4257 = vpop.f32.mrb[0].mxu0
      %v4258 = vadd.f32 0.0, %v4257
      %v4259 = vpop.f32.mrb[0].mxu0
      %4260 = vmatprep.mubr.bf16.mxu0 0
      %4261 = vmatmul.mubr.bf16.gmra.mrb[0].mxu0 %v2440
      %v4262 = vpop.f32.mrb[0].mxu0
      %v4263 = vadd.f32 0.0, %v4262
      %v4264 = vpop.f32.mrb[0].mxu0
      %v4265 = vpop.f32.mrb[0].mxu0
      %v4266 = vadd.f32 0.0, %v4265
      %v4267 = vpop.f32.mrb[0].mxu0
      %4268 = vmatprep.mubr.bf16.mxu0 0
      %4269 = vmatmul.mubr.bf16.gmra.mrb[0].mxu0 %v2443
      %v4270 = vpop.f32.mrb[0].mxu0
      %v4271 = vadd.f32 0.0, %v4270
      %v4272 = vpop.f32.mrb[0].mxu0
      %v4273 = vpop.f32.mrb[0].mxu0
      %v4274 = vadd.f32 0.0, %v4273
      %v4275 = vpop.f32.mrb[0].mxu0
      %4276 = vmatprep.mubr.bf16.mxu0 0
      %4277 = vmatmul.mubr.bf16.gmra.mrb[0].mxu0 %v2446
      %v4278 = vpop.f32.mrb[0].mxu0
      %v4279 = vadd.f32 0.0, %v4278
      %v4280 = vpop.f32.mrb[0].mxu0
      %v4281 = vpop.f32.mrb[0].mxu0
      %v4282 = vadd.f32 0.0, %v4281
      %v4283 = vpop.f32.mrb[0].mxu0
      %4284 = vmatprep.mubr.bf16.mxu0 0
      %4285 = vmatmul.mubr.bf16.gmra.mrb[0].mxu0 %v2449
      %v4286 = vpop.f32.mrb[0].mxu0
      %v4287 = vadd.f32 0.0, %v4286
      %v4288 = vpop.f32.mrb[0].mxu0
      %v4289 = vpop.f32.mrb[0].mxu0
      %v4290 = vadd.f32 0.0, %v4289
      %v4291 = vpop.f32.mrb[0].mxu0
      %4292 = vmatprep.mubr.bf16.mxu0 0
      %4293 = vmatmul.mubr.bf16.gmra.mrb[0].mxu0 %v3758
      %v4294 = vpop.f32.mrb[0].mxu0
      %v4295 = vadd.f32 0.0, %v4294
      %v4296 = vpop.f32.mrb[0].mxu0
      %v4297 = vpop.f32.mrb[0].mxu0
      %v4298 = vadd.f32 0.0, %v4297
      %v4299 = vpop.f32.mrb[0].mxu0
      %4300 = vmatprep.mubr.bf16.mxu0 0
      %4301 = vmatmul.mubr.bf16.gmra.mrb[0].mxu0 %v3761
      %v4302 = vpop.f32.mrb[0].mxu0
      %v4303 = vadd.f32 0.0, %v4302
      %v4304 = vpop.f32.mrb[0].mxu0
      %v4305 = vpop.f32.mrb[0].mxu0
      %v4306 = vadd.f32 0.0, %v4305
      %v4307 = vpop.f32.mrb[0].mxu0
      %4308 = vdwg.mxu0
      %v4309 = vadd.f32 %v3725, %v4102
      %v4310 = vadd.f32 %v3726, %v4105
      %v4311 = vadd.f32 %v3727, %v4110
      %v4312 = vadd.f32 %v3728, %v4113
      %v4313 = vadd.f32 %v3729, %v4118
      %v4314 = vadd.f32 %v3730, %v4121
      %v4315 = vadd.f32 %v3731, %v4126
      %v4316 = vadd.f32 %v3732, %v4129
      %v4317 = vadd.f32 %v3733, %v4134
      %v4318 = vadd.f32 %v3734, %v4137
      %v4319 = vadd.f32 %v3735, %v4142
      %v4320 = vadd.f32 %v3736, %v4145
      %v4321 = vadd.f32 %v3737, %v4150
      %v4322 = vadd.f32 %v3738, %v4153
      %v4323 = vadd.f32 %v3739, %v4158
      %v4324 = vadd.f32 %v3740, %v4161
      %v4325 = vadd.f32 %v3741, %v4247
      %v4326 = vadd.f32 %v3742, %v4250
      %v4327 = vadd.f32 %v3743, %v4255
      %v4328 = vadd.f32 %v3744, %v4258
      %v4329 = vadd.f32 %v3745, %v4263
      %v4330 = vadd.f32 %v3746, %v4266
      %v4331 = vadd.f32 %v3747, %v4271
      %v4332 = vadd.f32 %v3748, %v4274
      %v4333 = vadd.f32 %v3749, %v4279
      %v4334 = vadd.f32 %v3750, %v4282
      %v4335 = vadd.f32 %v3751, %v4287
      %v4336 = vadd.f32 %v3752, %v4290
      %v4337 = vadd.f32 %v3753, %v4295
      %v4338 = vadd.f32 %v3754, %v4298
      %v4339 = vadd.f32 %v3755, %v4303
      %v4340 = vadd.f32 %v3756, %v4306
      %v4342 = vsel %vm2426, %v2307, 0
      %v4345 = vsel %vm2426, %v2308, 0
      %4347 = vmatprep.subr.bf16.mxu0 0
      %4348 = vmatpush1.bf16.msra.mxu0 %v4049
      %4349 = vmatprep.subr.bf16.mxu0 0
      %4350 = vmatpush1.bf16.msra.mxu0 %v4050
      %4351 = vmatprep.subr.bf16.mxu0 0
      %4352 = vmatpush1.bf16.msra.mxu0 %v4051
      %4353 = vmatprep.subr.bf16.mxu0 0
      %4354 = vmatpush1.bf16.msra.mxu0 %v4052
      %4355 = vmatprep.subr.bf16.mxu0 0
      %4356 = vmatpush1.bf16.msra.mxu0 %v4053
      %4357 = vmatprep.subr.bf16.mxu0 0
      %4358 = vmatpush1.bf16.msra.mxu0 %v4054
      %4359 = vmatprep.subr.bf16.mxu0 0
      %4360 = vmatpush1.bf16.msra.mxu0 %v4055
      %4361 = vmatprep.subr.bf16.mxu0 0
      %4362 = vmatpush1.bf16.msra.mxu0 %v4065
      %4363 = vmatprep.subr.bf16.mxu0 0
      %4364 = vmatpush1.bf16.msra.mxu0 0
      %4365 = vmatprep.subr.bf16.mxu0 0
      %4366 = vmatpush1.bf16.msra.mxu0 0
      %4367 = vmatprep.subr.bf16.mxu0 0
      %4368 = vmatpush1.bf16.msra.mxu0 0
      %4369 = vmatprep.subr.bf16.mxu0 0
      %4370 = vmatpush1.bf16.msra.mxu0 0
      %4371 = vmatprep.subr.bf16.mxu0 0
      %4372 = vmatpush1.bf16.msra.mxu0 0
      %4373 = vmatprep.subr.bf16.mxu0 0
      %4374 = vmatpush1.bf16.msra.mxu0 0
      %4375 = vmatprep.subr.bf16.mxu0 0
      %4376 = vmatpush1.bf16.msra.mxu0 0
      %4377 = vmatprep.subr.bf16.mxu0 0
      %4378 = vmatpush1.bf16.msra.mxu0 0
      %4379 = vmatprep.mubr.bf16.mxu0 0
      %4380 = vmatmul.mubr.bf16.gmra.mrb[0].mxu0 %v2755
      %v4381 = vpop.f32.mrb[0].mxu0
      %v4382 = vadd.f32 0.0, %v4381
      %v4383 = vpop.f32.mrb[0].mxu0
      %v4384 = vpop.f32.mrb[0].mxu0
      %v4385 = vadd.f32 0.0, %v4384
      %v4386 = vpop.f32.mrb[0].mxu0
      %4387 = vmatprep.mubr.bf16.mxu0 0
      %4388 = vmatmul.mubr.bf16.gmra.mrb[0].mxu0 %v2758
      %v4389 = vpop.f32.mrb[0].mxu0
      %v4390 = vadd.f32 0.0, %v4389
      %v4391 = vpop.f32.mrb[0].mxu0
      %v4392 = vpop.f32.mrb[0].mxu0
      %v4393 = vadd.f32 0.0, %v4392
      %v4394 = vpop.f32.mrb[0].mxu0
      %4395 = vmatprep.mubr.bf16.mxu0 0
      %4396 = vmatmul.mubr.bf16.gmra.mrb[0].mxu0 %v2761
      %v4397 = vpop.f32.mrb[0].mxu0
      %v4398 = vadd.f32 0.0, %v4397
      %v4399 = vpop.f32.mrb[0].mxu0
      %v4400 = vpop.f32.mrb[0].mxu0
      %v4401 = vadd.f32 0.0, %v4400
      %v4402 = vpop.f32.mrb[0].mxu0
      %4403 = vmatprep.mubr.bf16.mxu0 0
      %4404 = vmatmul.mubr.bf16.gmra.mrb[0].mxu0 %v2764
      %v4405 = vpop.f32.mrb[0].mxu0
      %v4406 = vadd.f32 0.0, %v4405
      %v4407 = vpop.f32.mrb[0].mxu0
      %v4408 = vpop.f32.mrb[0].mxu0
      %v4409 = vadd.f32 0.0, %v4408
      %v4410 = vpop.f32.mrb[0].mxu0
      %4411 = vmatprep.mubr.bf16.mxu0 0
      %4412 = vmatmul.mubr.bf16.gmra.mrb[0].mxu0 %v3012
      %v4413 = vpop.f32.mrb[0].mxu0
      %v4414 = vadd.f32 0.0, %v4413
      %v4415 = vpop.f32.mrb[0].mxu0
      %v4416 = vpop.f32.mrb[0].mxu0
      %v4417 = vadd.f32 0.0, %v4416
      %v4418 = vpop.f32.mrb[0].mxu0
      %4419 = vmatprep.mubr.bf16.mxu0 0
      %4420 = vmatmul.mubr.bf16.gmra.mrb[0].mxu0 %v3015
      %v4421 = vpop.f32.mrb[0].mxu0
      %v4422 = vadd.f32 0.0, %v4421
      %v4423 = vpop.f32.mrb[0].mxu0
      %v4424 = vpop.f32.mrb[0].mxu0
      %v4425 = vadd.f32 0.0, %v4424
      %v4426 = vpop.f32.mrb[0].mxu0
      %4427 = vmatprep.mubr.bf16.mxu0 0
      %4428 = vmatmul.mubr.bf16.gmra.mrb[0].mxu0 %v4342
      %v4429 = vpop.f32.mrb[0].mxu0
      %v4430 = vadd.f32 0.0, %v4429
      %v4431 = vpop.f32.mrb[0].mxu0
      %v4432 = vpop.f32.mrb[0].mxu0
      %v4433 = vadd.f32 0.0, %v4432
      %v4434 = vpop.f32.mrb[0].mxu0
      %4435 = vmatprep.mubr.bf16.mxu0 0
      %4436 = vmatmul.mubr.bf16.gmra.mrb[0].mxu0 %v4345
      %v4437 = vpop.f32.mrb[0].mxu0
      %v4438 = vadd.f32 0.0, %v4437
      %v4439 = vpop.f32.mrb[0].mxu0
      %v4440 = vpop.f32.mrb[0].mxu0
      %v4441 = vadd.f32 0.0, %v4440
      %v4442 = vpop.f32.mrb[0].mxu0
      %4443 = vdwg.mxu0
      %4444 = vmatprep.subr.bf16.mxu0 0
      %4445 = vmatpush1.bf16.msra.mxu0 %v4194
      %4446 = vmatprep.subr.bf16.mxu0 0
      %4447 = vmatpush1.bf16.msra.mxu0 %v4195
      %4448 = vmatprep.subr.bf16.mxu0 0
      %4449 = vmatpush1.bf16.msra.mxu0 %v4196
      %4450 = vmatprep.subr.bf16.mxu0 0
      %4451 = vmatpush1.bf16.msra.mxu0 %v4197
      %4452 = vmatprep.subr.bf16.mxu0 0
      %4453 = vmatpush1.bf16.msra.mxu0 %v4198
      %4454 = vmatprep.subr.bf16.mxu0 0
      %4455 = vmatpush1.bf16.msra.mxu0 %v4199
      %4456 = vmatprep.subr.bf16.mxu0 0
      %4457 = vmatpush1.bf16.msra.mxu0 %v4200
      %4458 = vmatprep.subr.bf16.mxu0 0
      %4459 = vmatpush1.bf16.msra.mxu0 %v4210
      %4460 = vmatprep.subr.bf16.mxu0 0
      %4461 = vmatpush1.bf16.msra.mxu0 0
      %4462 = vmatprep.subr.bf16.mxu0 0
      %4463 = vmatpush1.bf16.msra.mxu0 0
      %4464 = vmatprep.subr.bf16.mxu0 0
      %4465 = vmatpush1.bf16.msra.mxu0 0
      %4466 = vmatprep.subr.bf16.mxu0 0
      %4467 = vmatpush1.bf16.msra.mxu0 0
      %4468 = vmatprep.subr.bf16.mxu0 0
      %4469 = vmatpush1.bf16.msra.mxu0 0
      %4470 = vmatprep.subr.bf16.mxu0 0
      %4471 = vmatpush1.bf16.msra.mxu0 0
      %4472 = vmatprep.subr.bf16.mxu0 0
      %4473 = vmatpush1.bf16.msra.mxu0 0
      %4474 = vmatprep.subr.bf16.mxu0 0
      %4475 = vmatpush1.bf16.msra.mxu0 0
      %4476 = vmatprep.mubr.bf16.mxu0 0
      %4477 = vmatmul.mubr.bf16.gmra.mrb[0].mxu0 %v2755
      %v4478 = vpop.f32.mrb[0].mxu0
      %v4479 = vadd.f32 0.0, %v4478
      %v4480 = vpop.f32.mrb[0].mxu0
      %v4481 = vpop.f32.mrb[0].mxu0
      %v4482 = vadd.f32 0.0, %v4481
      %v4483 = vpop.f32.mrb[0].mxu0
      %4484 = vmatprep.mubr.bf16.mxu0 0
      %4485 = vmatmul.mubr.bf16.gmra.mrb[0].mxu0 %v2758
      %v4486 = vpop.f32.mrb[0].mxu0
      %v4487 = vadd.f32 0.0, %v4486
      %v4488 = vpop.f32.mrb[0].mxu0
      %v4489 = vpop.f32.mrb[0].mxu0
      %v4490 = vadd.f32 0.0, %v4489
      %v4491 = vpop.f32.mrb[0].mxu0
      %4492 = vmatprep.mubr.bf16.mxu0 0
      %4493 = vmatmul.mubr.bf16.gmra.mrb[0].mxu0 %v2761
      %v4494 = vpop.f32.mrb[0].mxu0
      %v4495 = vadd.f32 0.0, %v4494
      %v4496 = vpop.f32.mrb[0].mxu0
      %v4497 = vpop.f32.mrb[0].mxu0
      %v4498 = vadd.f32 0.0, %v4497
      %v4499 = vpop.f32.mrb[0].mxu0
      %4500 = vmatprep.mubr.bf16.mxu0 0
      %4501 = vmatmul.mubr.bf16.gmra.mrb[0].mxu0 %v2764
      %v4502 = vpop.f32.mrb[0].mxu0
      %v4503 = vadd.f32 0.0, %v4502
      %v4504 = vpop.f32.mrb[0].mxu0
      %v4505 = vpop.f32.mrb[0].mxu0
      %v4506 = vadd.f32 0.0, %v4505
      %v4507 = vpop.f32.mrb[0].mxu0
      %4508 = vmatprep.mubr.bf16.mxu0 0
      %4509 = vmatmul.mubr.bf16.gmra.mrb[0].mxu0 %v3012
      %v4510 = vpop.f32.mrb[0].mxu0
      %v4511 = vadd.f32 0.0, %v4510
      %v4512 = vpop.f32.mrb[0].mxu0
      %v4513 = vpop.f32.mrb[0].mxu0
      %v4514 = vadd.f32 0.0, %v4513
      %v4515 = vpop.f32.mrb[0].mxu0
      %4516 = vmatprep.mubr.bf16.mxu0 0
      %4517 = vmatmul.mubr.bf16.gmra.mrb[0].mxu0 %v3015
      %v4518 = vpop.f32.mrb[0].mxu0
      %v4519 = vadd.f32 0.0, %v4518
      %v4520 = vpop.f32.mrb[0].mxu0
      %v4521 = vpop.f32.mrb[0].mxu0
      %v4522 = vadd.f32 0.0, %v4521
      %v4523 = vpop.f32.mrb[0].mxu0
      %4524 = vmatprep.mubr.bf16.mxu0 0
      %4525 = vmatmul.mubr.bf16.gmra.mrb[0].mxu0 %v4342
      %v4526 = vpop.f32.mrb[0].mxu0
      %v4527 = vadd.f32 0.0, %v4526
      %v4528 = vpop.f32.mrb[0].mxu0
      %v4529 = vpop.f32.mrb[0].mxu0
      %v4530 = vadd.f32 0.0, %v4529
      %v4531 = vpop.f32.mrb[0].mxu0
      %4532 = vmatprep.mubr.bf16.mxu0 0
      %4533 = vmatmul.mubr.bf16.gmra.mrb[0].mxu0 %v4345
      %v4534 = vpop.f32.mrb[0].mxu0
      %v4535 = vadd.f32 0.0, %v4534
      %v4536 = vpop.f32.mrb[0].mxu0
      %v4537 = vpop.f32.mrb[0].mxu0
      %v4538 = vadd.f32 0.0, %v4537
      %v4539 = vpop.f32.mrb[0].mxu0
      %4540 = vdwg.mxu0
      %v4541 = vadd.f32 %v3957, %v4382
      %v4542 = vadd.f32 %v3958, %v4385
      %v4543 = vadd.f32 %v3959, %v4390
      %v4544 = vadd.f32 %v3960, %v4393
      %v4545 = vadd.f32 %v3961, %v4398
      %v4546 = vadd.f32 %v3962, %v4401
      %v4547 = vadd.f32 %v3963, %v4406
      %v4548 = vadd.f32 %v3964, %v4409
      %v4549 = vadd.f32 %v3965, %v4414
      %v4550 = vadd.f32 %v3966, %v4417
      %v4551 = vadd.f32 %v3967, %v4422
      %v4552 = vadd.f32 %v3968, %v4425
      %v4553 = vadd.f32 %v3969, %v4430
      %v4554 = vadd.f32 %v3970, %v4433
      %v4555 = vadd.f32 %v3971, %v4438
      %v4556 = vadd.f32 %v3972, %v4441
      %v4557 = vadd.f32 %v3973, %v4479
      %v4558 = vadd.f32 %v3974, %v4482
      %v4559 = vadd.f32 %v3975, %v4487
      %v4560 = vadd.f32 %v3976, %v4490
      %v4561 = vadd.f32 %v3977, %v4495
      %v4562 = vadd.f32 %v3978, %v4498
      %v4563 = vadd.f32 %v3979, %v4503
      %v4564 = vadd.f32 %v3980, %v4506
      %v4565 = vadd.f32 %v3981, %v4511
      %v4566 = vadd.f32 %v3982, %v4514
      %v4567 = vadd.f32 %v3983, %v4519
      %v4568 = vadd.f32 %v3984, %v4522
      %v4569 = vadd.f32 %v3985, %v4527
      %v4570 = vadd.f32 %v3986, %v4530
      %v4571 = vadd.f32 %v3987, %v4535
      %v4572 = vadd.f32 %v3988, %v4538
      %v4573 = vld [vmem:[%s4 + $0xf0] sm:$0xf]
      %v4574 = vld [vmem:[%s4 + $0xf4] sm:$0xf]
      %v4575 = vld [vmem:[%s4 + $0xf8] sm:$0xf]
      %v4576 = vld [vmem:[%s4 + $0xfc] sm:$0xf]
      %v4577 = vld [vmem:[%s4 + $0x100] sm:$0xf]
      %v4578 = vld [vmem:[%s4 + $0x104] sm:$0xf]
      %v4579 = vld [vmem:[%s4 + $0x108] sm:$0xf]
      %v4580 = vld [vmem:[%s4 + $0x10c] sm:$0xf]
      %v4581 = vld [vmem:[%s4 + $0x110] sm:$0xf]
      %v4582 = vld [vmem:[%s4 + $0x114] sm:$0xf]
      %v4583 = vld [vmem:[%s4 + $0x118] sm:$0xf]
      %v4584 = vld [vmem:[%s4 + $0x11c] sm:$0xf]
      %v4585 = vld [vmem:[%s4 + $0x120] sm:$0xf]
      %v4586 = vld [vmem:[%s4 + $0x124] sm:$0xf]
      %v4587 = vld [vmem:[%s4 + $0x128] sm:$0xf]
      %v4588 = vld [vmem:[%s5 + $0xf0] sm:$0xf]
      %v4589 = vld [vmem:[%s5 + $0xf4] sm:$0xf]
      %v4590 = vld [vmem:[%s5 + $0xf8] sm:$0xf]
      %v4591 = vld [vmem:[%s5 + $0xfc] sm:$0xf]
      %v4592 = vld [vmem:[%s5 + $0x100] sm:$0xf]
      %v4593 = vld [vmem:[%s5 + $0x104] sm:$0xf]
      %v4594 = vld [vmem:[%s5 + $0x108] sm:$0xf]
      %v4595 = vld [vmem:[%s5 + $0x10c] sm:$0xf]
      %v4596 = vld [vmem:[%s5 + $0x110] sm:$0xf]
      %v4597 = vld [vmem:[%s5 + $0x114] sm:$0xf]
      %v4598 = vld [vmem:[%s5 + $0x118] sm:$0xf]
      %v4599 = vld [vmem:[%s5 + $0x11c] sm:$0xf]
      %v4600 = vld [vmem:[%s5 + $0x120] sm:$0xf]
      %v4601 = vld [vmem:[%s5 + $0x124] sm:$0xf]
      %v4602 = vld [vmem:[%s5 + $0x128] sm:$0xf]
      %v4618 = vunpack.c.l.b16 %v4573
      %v4619 = vunpack.c.l.b16 %v4574
      %v4620 = vunpack.c.l.b16 %v4575
      %v4621 = vunpack.c.l.b16 %v4576
      %v4622 = vunpack.c.l.b16 %v4577
      %v4623 = vunpack.c.l.b16 %v4578
      %v4624 = vunpack.c.l.b16 %v4579
      %v4625 = vunpack.c.l.b16 %v4580
      %v4626 = vunpack.c.l.b16 %v4581
      %v4627 = vunpack.c.l.b16 %v4582
      %v4628 = vunpack.c.l.b16 %v4583
      %v4629 = vunpack.c.l.b16 %v4584
      %v4630 = vunpack.c.l.b16 %v4585
      %v4631 = vunpack.c.l.b16 %v4586
      %v4632 = vunpack.c.l.b16 %v4587
      %v4633 = vpack.c.b16 %v4619, %v4618
      %v4634 = vpack.c.b16 %v4621, %v4620
      %v4635 = vpack.c.b16 %v4623, %v4622
      %v4636 = vpack.c.b16 %v4625, %v4624
      %v4637 = vpack.c.b16 %v4627, %v4626
      %v4638 = vpack.c.b16 %v4629, %v4628
      %v4639 = vpack.c.b16 %v4631, %v4630
      %v4640 = vpack.c.b16 %v4632, %v4632
      %v4649 = vsel %vm2451, %v4640, 0
      %4651 = vmatprep.subr.bf16.mxu0 0
      %4652 = vmatpush1.bf16.msra.mxu0 %v4633
      %4653 = vmatprep.subr.bf16.mxu0 0
      %4654 = vmatpush1.bf16.msra.mxu0 %v4634
      %4655 = vmatprep.subr.bf16.mxu0 0
      %4656 = vmatpush1.bf16.msra.mxu0 %v4635
      %4657 = vmatprep.subr.bf16.mxu0 0
      %4658 = vmatpush1.bf16.msra.mxu0 %v4636
      %4659 = vmatprep.subr.bf16.mxu0 0
      %4660 = vmatpush1.bf16.msra.mxu0 %v4637
      %4661 = vmatprep.subr.bf16.mxu0 0
      %4662 = vmatpush1.bf16.msra.mxu0 %v4638
      %4663 = vmatprep.subr.bf16.mxu0 0
      %4664 = vmatpush1.bf16.msra.mxu0 %v4639
      %4665 = vmatprep.subr.bf16.mxu0 0
      %4666 = vmatpush1.bf16.msra.mxu0 %v4649
      %4667 = vmatprep.subr.bf16.mxu0 0
      %4668 = vmatpush1.bf16.msra.mxu0 0
      %4669 = vmatprep.subr.bf16.mxu0 0
      %4670 = vmatpush1.bf16.msra.mxu0 0
      %4671 = vmatprep.subr.bf16.mxu0 0
      %4672 = vmatpush1.bf16.msra.mxu0 0
      %4673 = vmatprep.subr.bf16.mxu0 0
      %4674 = vmatpush1.bf16.msra.mxu0 0
      %4675 = vmatprep.subr.bf16.mxu0 0
      %4676 = vmatpush1.bf16.msra.mxu0 0
      %4677 = vmatprep.subr.bf16.mxu0 0
      %4678 = vmatpush1.bf16.msra.mxu0 0
      %4679 = vmatprep.subr.bf16.mxu0 0
      %4680 = vmatpush1.bf16.msra.mxu0 0
      %4681 = vmatprep.subr.bf16.mxu0 0
      %4682 = vmatpush1.bf16.msra.mxu0 0
      %4683 = vmatprep.mubr.bf16.mxu0 0
      %4684 = vmatmul.mubr.bf16.gmra.mrb[0].mxu0 %v2755
      %v4685 = vpop.f32.mrb[0].mxu0
      %v4686 = vadd.f32 0.0, %v4685
      %v4687 = vpop.f32.mrb[0].mxu0
      %v4688 = vpop.f32.mrb[0].mxu0
      %v4689 = vadd.f32 0.0, %v4688
      %v4690 = vpop.f32.mrb[0].mxu0
      %4691 = vmatprep.mubr.bf16.mxu0 0
      %4692 = vmatmul.mubr.bf16.gmra.mrb[0].mxu0 %v2758
      %v4693 = vpop.f32.mrb[0].mxu0
      %v4694 = vadd.f32 0.0, %v4693
      %v4695 = vpop.f32.mrb[0].mxu0
      %v4696 = vpop.f32.mrb[0].mxu0
      %v4697 = vadd.f32 0.0, %v4696
      %v4698 = vpop.f32.mrb[0].mxu0
      %4699 = vmatprep.mubr.bf16.mxu0 0
      %4700 = vmatmul.mubr.bf16.gmra.mrb[0].mxu0 %v2761
      %v4701 = vpop.f32.mrb[0].mxu0
      %v4702 = vadd.f32 0.0, %v4701
      %v4703 = vpop.f32.mrb[0].mxu0
      %v4704 = vpop.f32.mrb[0].mxu0
      %v4705 = vadd.f32 0.0, %v4704
      %v4706 = vpop.f32.mrb[0].mxu0
      %4707 = vmatprep.mubr.bf16.mxu0 0
      %4708 = vmatmul.mubr.bf16.gmra.mrb[0].mxu0 %v2764
      %v4709 = vpop.f32.mrb[0].mxu0
      %v4710 = vadd.f32 0.0, %v4709
      %v4711 = vpop.f32.mrb[0].mxu0
      %v4712 = vpop.f32.mrb[0].mxu0
      %v4713 = vadd.f32 0.0, %v4712
      %v4714 = vpop.f32.mrb[0].mxu0
      %4715 = vmatprep.mubr.bf16.mxu0 0
      %4716 = vmatmul.mubr.bf16.gmra.mrb[0].mxu0 %v3012
      %v4717 = vpop.f32.mrb[0].mxu0
      %v4718 = vadd.f32 0.0, %v4717
      %v4719 = vpop.f32.mrb[0].mxu0
      %v4720 = vpop.f32.mrb[0].mxu0
      %v4721 = vadd.f32 0.0, %v4720
      %v4722 = vpop.f32.mrb[0].mxu0
      %4723 = vmatprep.mubr.bf16.mxu0 0
      %4724 = vmatmul.mubr.bf16.gmra.mrb[0].mxu0 %v3015
      %v4725 = vpop.f32.mrb[0].mxu0
      %v4726 = vadd.f32 0.0, %v4725
      %v4727 = vpop.f32.mrb[0].mxu0
      %v4728 = vpop.f32.mrb[0].mxu0
      %v4729 = vadd.f32 0.0, %v4728
      %v4730 = vpop.f32.mrb[0].mxu0
      %4731 = vmatprep.mubr.bf16.mxu0 0
      %4732 = vmatmul.mubr.bf16.gmra.mrb[0].mxu0 %v4342
      %v4733 = vpop.f32.mrb[0].mxu0
      %v4734 = vadd.f32 0.0, %v4733
      %v4735 = vpop.f32.mrb[0].mxu0
      %v4736 = vpop.f32.mrb[0].mxu0
      %v4737 = vadd.f32 0.0, %v4736
      %v4738 = vpop.f32.mrb[0].mxu0
      %4739 = vmatprep.mubr.bf16.mxu0 0
      %4740 = vmatmul.mubr.bf16.gmra.mrb[0].mxu0 %v4345
      %v4741 = vpop.f32.mrb[0].mxu0
      %v4742 = vadd.f32 0.0, %v4741
      %v4743 = vpop.f32.mrb[0].mxu0
      %v4744 = vpop.f32.mrb[0].mxu0
      %v4745 = vadd.f32 0.0, %v4744
      %v4746 = vpop.f32.mrb[0].mxu0
      %4747 = vdwg.mxu0
      %v4763 = vunpack.c.l.b16 %v4588
      %v4764 = vunpack.c.l.b16 %v4589
      %v4765 = vunpack.c.l.b16 %v4590
      %v4766 = vunpack.c.l.b16 %v4591
      %v4767 = vunpack.c.l.b16 %v4592
      %v4768 = vunpack.c.l.b16 %v4593
      %v4769 = vunpack.c.l.b16 %v4594
      %v4770 = vunpack.c.l.b16 %v4595
      %v4771 = vunpack.c.l.b16 %v4596
      %v4772 = vunpack.c.l.b16 %v4597
      %v4773 = vunpack.c.l.b16 %v4598
      %v4774 = vunpack.c.l.b16 %v4599
      %v4775 = vunpack.c.l.b16 %v4600
      %v4776 = vunpack.c.l.b16 %v4601
      %v4777 = vunpack.c.l.b16 %v4602
      %v4778 = vpack.c.b16 %v4764, %v4763
      %v4779 = vpack.c.b16 %v4766, %v4765
      %v4780 = vpack.c.b16 %v4768, %v4767
      %v4781 = vpack.c.b16 %v4770, %v4769
      %v4782 = vpack.c.b16 %v4772, %v4771
      %v4783 = vpack.c.b16 %v4774, %v4773
      %v4784 = vpack.c.b16 %v4776, %v4775
      %v4785 = vpack.c.b16 %v4777, %v4777
      %v4794 = vsel %vm2451, %v4785, 0
      %4796 = vmatprep.subr.bf16.mxu0 0
      %4797 = vmatpush1.bf16.msra.mxu0 %v4778
      %4798 = vmatprep.subr.bf16.mxu0 0
      %4799 = vmatpush1.bf16.msra.mxu0 %v4779
      %4800 = vmatprep.subr.bf16.mxu0 0
      %4801 = vmatpush1.bf16.msra.mxu0 %v4780
      %4802 = vmatprep.subr.bf16.mxu0 0
      %4803 = vmatpush1.bf16.msra.mxu0 %v4781
      %4804 = vmatprep.subr.bf16.mxu0 0
      %4805 = vmatpush1.bf16.msra.mxu0 %v4782
      %4806 = vmatprep.subr.bf16.mxu0 0
      %4807 = vmatpush1.bf16.msra.mxu0 %v4783
      %4808 = vmatprep.subr.bf16.mxu0 0
      %4809 = vmatpush1.bf16.msra.mxu0 %v4784
      %4810 = vmatprep.subr.bf16.mxu0 0
      %4811 = vmatpush1.bf16.msra.mxu0 %v4794
      %4812 = vmatprep.subr.bf16.mxu0 0
      %4813 = vmatpush1.bf16.msra.mxu0 0
      %4814 = vmatprep.subr.bf16.mxu0 0
      %4815 = vmatpush1.bf16.msra.mxu0 0
      %4816 = vmatprep.subr.bf16.mxu0 0
      %4817 = vmatpush1.bf16.msra.mxu0 0
      %4818 = vmatprep.subr.bf16.mxu0 0
      %4819 = vmatpush1.bf16.msra.mxu0 0
      %4820 = vmatprep.subr.bf16.mxu0 0
      %4821 = vmatpush1.bf16.msra.mxu0 0
      %4822 = vmatprep.subr.bf16.mxu0 0
      %4823 = vmatpush1.bf16.msra.mxu0 0
      %4824 = vmatprep.subr.bf16.mxu0 0
      %4825 = vmatpush1.bf16.msra.mxu0 0
      %4826 = vmatprep.subr.bf16.mxu0 0
      %4827 = vmatpush1.bf16.msra.mxu0 0
      %4828 = vmatprep.mubr.bf16.mxu0 0
      %4829 = vmatmul.mubr.bf16.gmra.mrb[0].mxu0 %v2755
      %v4830 = vpop.f32.mrb[0].mxu0
      %v4831 = vadd.f32 0.0, %v4830
      %v4832 = vpop.f32.mrb[0].mxu0
      %v4833 = vpop.f32.mrb[0].mxu0
      %v4834 = vadd.f32 0.0, %v4833
      %v4835 = vpop.f32.mrb[0].mxu0
      %4836 = vmatprep.mubr.bf16.mxu0 0
      %4837 = vmatmul.mubr.bf16.gmra.mrb[0].mxu0 %v2758
      %v4838 = vpop.f32.mrb[0].mxu0
      %v4839 = vadd.f32 0.0, %v4838
      %v4840 = vpop.f32.mrb[0].mxu0
      %v4841 = vpop.f32.mrb[0].mxu0
      %v4842 = vadd.f32 0.0, %v4841
      %v4843 = vpop.f32.mrb[0].mxu0
      %4844 = vmatprep.mubr.bf16.mxu0 0
      %4845 = vmatmul.mubr.bf16.gmra.mrb[0].mxu0 %v2761
      %v4846 = vpop.f32.mrb[0].mxu0
      %v4847 = vadd.f32 0.0, %v4846
      %v4848 = vpop.f32.mrb[0].mxu0
      %v4849 = vpop.f32.mrb[0].mxu0
      %v4850 = vadd.f32 0.0, %v4849
      %v4851 = vpop.f32.mrb[0].mxu0
      %4852 = vmatprep.mubr.bf16.mxu0 0
      %4853 = vmatmul.mubr.bf16.gmra.mrb[0].mxu0 %v2764
      %v4854 = vpop.f32.mrb[0].mxu0
      %v4855 = vadd.f32 0.0, %v4854
      %v4856 = vpop.f32.mrb[0].mxu0
      %v4857 = vpop.f32.mrb[0].mxu0
      %v4858 = vadd.f32 0.0, %v4857
      %v4859 = vpop.f32.mrb[0].mxu0
      %4860 = vmatprep.mubr.bf16.mxu0 0
      %4861 = vmatmul.mubr.bf16.gmra.mrb[0].mxu0 %v3012
      %v4862 = vpop.f32.mrb[0].mxu0
      %v4863 = vadd.f32 0.0, %v4862
      %v4864 = vpop.f32.mrb[0].mxu0
      %v4865 = vpop.f32.mrb[0].mxu0
      %v4866 = vadd.f32 0.0, %v4865
      %v4867 = vpop.f32.mrb[0].mxu0
      %4868 = vmatprep.mubr.bf16.mxu0 0
      %4869 = vmatmul.mubr.bf16.gmra.mrb[0].mxu0 %v3015
      %v4870 = vpop.f32.mrb[0].mxu0
      %v4871 = vadd.f32 0.0, %v4870
      %v4872 = vpop.f32.mrb[0].mxu0
      %v4873 = vpop.f32.mrb[0].mxu0
      %v4874 = vadd.f32 0.0, %v4873
      %v4875 = vpop.f32.mrb[0].mxu0
      %4876 = vmatprep.mubr.bf16.mxu0 0
      %4877 = vmatmul.mubr.bf16.gmra.mrb[0].mxu0 %v4342
      %v4878 = vpop.f32.mrb[0].mxu0
      %v4879 = vadd.f32 0.0, %v4878
      %v4880 = vpop.f32.mrb[0].mxu0
      %v4881 = vpop.f32.mrb[0].mxu0
      %v4882 = vadd.f32 0.0, %v4881
      %v4883 = vpop.f32.mrb[0].mxu0
      %4884 = vmatprep.mubr.bf16.mxu0 0
      %4885 = vmatmul.mubr.bf16.gmra.mrb[0].mxu0 %v4345
      %v4886 = vpop.f32.mrb[0].mxu0
      %v4887 = vadd.f32 0.0, %v4886
      %v4888 = vpop.f32.mrb[0].mxu0
      %v4889 = vpop.f32.mrb[0].mxu0
      %v4890 = vadd.f32 0.0, %v4889
      %v4891 = vpop.f32.mrb[0].mxu0
      %4892 = vdwg.mxu0
      %v4893 = vadd.f32 %v4309, %v4686
      %v4894 = vadd.f32 %v4310, %v4689
      %v4895 = vadd.f32 %v4311, %v4694
      %v4896 = vadd.f32 %v4312, %v4697
      %v4897 = vadd.f32 %v4313, %v4702
      %v4898 = vadd.f32 %v4314, %v4705
      %v4899 = vadd.f32 %v4315, %v4710
      %v4900 = vadd.f32 %v4316, %v4713
      %v4901 = vadd.f32 %v4317, %v4718
      %v4902 = vadd.f32 %v4318, %v4721
      %v4903 = vadd.f32 %v4319, %v4726
      %v4904 = vadd.f32 %v4320, %v4729
      %v4905 = vadd.f32 %v4321, %v4734
      %v4906 = vadd.f32 %v4322, %v4737
      %v4907 = vadd.f32 %v4323, %v4742
      %v4908 = vadd.f32 %v4324, %v4745
      %v4909 = vadd.f32 %v4325, %v4831
      %v4910 = vadd.f32 %v4326, %v4834
      %v4911 = vadd.f32 %v4327, %v4839
      %v4912 = vadd.f32 %v4328, %v4842
      %v4913 = vadd.f32 %v4329, %v4847
      %v4914 = vadd.f32 %v4330, %v4850
      %v4915 = vadd.f32 %v4331, %v4855
      %v4916 = vadd.f32 %v4332, %v4858
      %v4917 = vadd.f32 %v4333, %v4863
      %v4918 = vadd.f32 %v4334, %v4866
      %v4919 = vadd.f32 %v4335, %v4871
      %v4920 = vadd.f32 %v4336, %v4874
      %v4921 = vadd.f32 %v4337, %v4879
      %v4922 = vadd.f32 %v4338, %v4882
      %v4923 = vadd.f32 %v4339, %v4887
      %v4924 = vadd.f32 %v4340, %v4890
      %v4926 = vsel %vm2426, %v2319, 0
      %v4929 = vsel %vm2426, %v2320, 0
      %4931 = vmatprep.subr.bf16.mxu0 0
      %4932 = vmatpush1.bf16.msra.mxu0 %v4633
      %4933 = vmatprep.subr.bf16.mxu0 0
      %4934 = vmatpush1.bf16.msra.mxu0 %v4634
      %4935 = vmatprep.subr.bf16.mxu0 0
      %4936 = vmatpush1.bf16.msra.mxu0 %v4635
      %4937 = vmatprep.subr.bf16.mxu0 0
      %4938 = vmatpush1.bf16.msra.mxu0 %v4636
      %4939 = vmatprep.subr.bf16.mxu0 0
      %4940 = vmatpush1.bf16.msra.mxu0 %v4637
      %4941 = vmatprep.subr.bf16.mxu0 0
      %4942 = vmatpush1.bf16.msra.mxu0 %v4638
      %4943 = vmatprep.subr.bf16.mxu0 0
      %4944 = vmatpush1.bf16.msra.mxu0 %v4639
      %4945 = vmatprep.subr.bf16.mxu0 0
      %4946 = vmatpush1.bf16.msra.mxu0 %v4649
      %4947 = vmatprep.subr.bf16.mxu0 0
      %4948 = vmatpush1.bf16.msra.mxu0 0
      %4949 = vmatprep.subr.bf16.mxu0 0
      %4950 = vmatpush1.bf16.msra.mxu0 0
      %4951 = vmatprep.subr.bf16.mxu0 0
      %4952 = vmatpush1.bf16.msra.mxu0 0
      %4953 = vmatprep.subr.bf16.mxu0 0
      %4954 = vmatpush1.bf16.msra.mxu0 0
      %4955 = vmatprep.subr.bf16.mxu0 0
      %4956 = vmatpush1.bf16.msra.mxu0 0
      %4957 = vmatprep.subr.bf16.mxu0 0
      %4958 = vmatpush1.bf16.msra.mxu0 0
      %4959 = vmatprep.subr.bf16.mxu0 0
      %4960 = vmatpush1.bf16.msra.mxu0 0
      %4961 = vmatprep.subr.bf16.mxu0 0
      %4962 = vmatpush1.bf16.msra.mxu0 0
      %4963 = vmatprep.mubr.bf16.mxu0 0
      %4964 = vmatmul.mubr.bf16.gmra.mrb[0].mxu0 %v2440
      %v4965 = vpop.f32.mrb[0].mxu0
      %v4966 = vadd.f32 0.0, %v4965
      %v4967 = vpop.f32.mrb[0].mxu0
      %v4968 = vpop.f32.mrb[0].mxu0
      %v4969 = vadd.f32 0.0, %v4968
      %v4970 = vpop.f32.mrb[0].mxu0
      %4971 = vmatprep.mubr.bf16.mxu0 0
      %4972 = vmatmul.mubr.bf16.gmra.mrb[0].mxu0 %v2443
      %v4973 = vpop.f32.mrb[0].mxu0
      %v4974 = vadd.f32 0.0, %v4973
      %v4975 = vpop.f32.mrb[0].mxu0
      %v4976 = vpop.f32.mrb[0].mxu0
      %v4977 = vadd.f32 0.0, %v4976
      %v4978 = vpop.f32.mrb[0].mxu0
      %4979 = vmatprep.mubr.bf16.mxu0 0
      %4980 = vmatmul.mubr.bf16.gmra.mrb[0].mxu0 %v2446
      %v4981 = vpop.f32.mrb[0].mxu0
      %v4982 = vadd.f32 0.0, %v4981
      %v4983 = vpop.f32.mrb[0].mxu0
      %v4984 = vpop.f32.mrb[0].mxu0
      %v4985 = vadd.f32 0.0, %v4984
      %v4986 = vpop.f32.mrb[0].mxu0
      %4987 = vmatprep.mubr.bf16.mxu0 0
      %4988 = vmatmul.mubr.bf16.gmra.mrb[0].mxu0 %v2449
      %v4989 = vpop.f32.mrb[0].mxu0
      %v4990 = vadd.f32 0.0, %v4989
      %v4991 = vpop.f32.mrb[0].mxu0
      %v4992 = vpop.f32.mrb[0].mxu0
      %v4993 = vadd.f32 0.0, %v4992
      %v4994 = vpop.f32.mrb[0].mxu0
      %4995 = vmatprep.mubr.bf16.mxu0 0
      %4996 = vmatmul.mubr.bf16.gmra.mrb[0].mxu0 %v3758
      %v4997 = vpop.f32.mrb[0].mxu0
      %v4998 = vadd.f32 0.0, %v4997
      %v4999 = vpop.f32.mrb[0].mxu0
      %v5000 = vpop.f32.mrb[0].mxu0
      %v5001 = vadd.f32 0.0, %v5000
      %v5002 = vpop.f32.mrb[0].mxu0
      %5003 = vmatprep.mubr.bf16.mxu0 0
      %5004 = vmatmul.mubr.bf16.gmra.mrb[0].mxu0 %v3761
      %v5005 = vpop.f32.mrb[0].mxu0
      %v5006 = vadd.f32 0.0, %v5005
      %v5007 = vpop.f32.mrb[0].mxu0
      %v5008 = vpop.f32.mrb[0].mxu0
      %v5009 = vadd.f32 0.0, %v5008
      %v5010 = vpop.f32.mrb[0].mxu0
      %5011 = vmatprep.mubr.bf16.mxu0 0
      %5012 = vmatmul.mubr.bf16.gmra.mrb[0].mxu0 %v4926
      %v5013 = vpop.f32.mrb[0].mxu0
      %v5014 = vadd.f32 0.0, %v5013
      %v5015 = vpop.f32.mrb[0].mxu0
      %v5016 = vpop.f32.mrb[0].mxu0
      %v5017 = vadd.f32 0.0, %v5016
      %v5018 = vpop.f32.mrb[0].mxu0
      %5019 = vmatprep.mubr.bf16.mxu0 0
      %5020 = vmatmul.mubr.bf16.gmra.mrb[0].mxu0 %v4929
      %v5021 = vpop.f32.mrb[0].mxu0
      %v5022 = vadd.f32 0.0, %v5021
      %v5023 = vpop.f32.mrb[0].mxu0
      %v5024 = vpop.f32.mrb[0].mxu0
      %v5025 = vadd.f32 0.0, %v5024
      %v5026 = vpop.f32.mrb[0].mxu0
      %5027 = vdwg.mxu0
      %5028 = vmatprep.subr.bf16.mxu0 0
      %5029 = vmatpush1.bf16.msra.mxu0 %v4778
      %5030 = vmatprep.subr.bf16.mxu0 0
      %5031 = vmatpush1.bf16.msra.mxu0 %v4779
      %5032 = vmatprep.subr.bf16.mxu0 0
      %5033 = vmatpush1.bf16.msra.mxu0 %v4780
      %5034 = vmatprep.subr.bf16.mxu0 0
      %5035 = vmatpush1.bf16.msra.mxu0 %v4781
      %5036 = vmatprep.subr.bf16.mxu0 0
      %5037 = vmatpush1.bf16.msra.mxu0 %v4782
      %5038 = vmatprep.subr.bf16.mxu0 0
      %5039 = vmatpush1.bf16.msra.mxu0 %v4783
      %5040 = vmatprep.subr.bf16.mxu0 0
      %5041 = vmatpush1.bf16.msra.mxu0 %v4784
      %5042 = vmatprep.subr.bf16.mxu0 0
      %5043 = vmatpush1.bf16.msra.mxu0 %v4794
      %5044 = vmatprep.subr.bf16.mxu0 0
      %5045 = vmatpush1.bf16.msra.mxu0 0
      %5046 = vmatprep.subr.bf16.mxu0 0
      %5047 = vmatpush1.bf16.msra.mxu0 0
      %5048 = vmatprep.subr.bf16.mxu0 0
      %5049 = vmatpush1.bf16.msra.mxu0 0
      %5050 = vmatprep.subr.bf16.mxu0 0
      %5051 = vmatpush1.bf16.msra.mxu0 0
      %5052 = vmatprep.subr.bf16.mxu0 0
      %5053 = vmatpush1.bf16.msra.mxu0 0
      %5054 = vmatprep.subr.bf16.mxu0 0
      %5055 = vmatpush1.bf16.msra.mxu0 0
      %5056 = vmatprep.subr.bf16.mxu0 0
      %5057 = vmatpush1.bf16.msra.mxu0 0
      %5058 = vmatprep.subr.bf16.mxu0 0
      %5059 = vmatpush1.bf16.msra.mxu0 0
      %5060 = vmatprep.mubr.bf16.mxu0 0
      %5061 = vmatmul.mubr.bf16.gmra.mrb[0].mxu0 %v2440
      %v5062 = vpop.f32.mrb[0].mxu0
      %v5063 = vadd.f32 0.0, %v5062
      %v5064 = vpop.f32.mrb[0].mxu0
      %v5065 = vpop.f32.mrb[0].mxu0
      %v5066 = vadd.f32 0.0, %v5065
      %v5067 = vpop.f32.mrb[0].mxu0
      %5068 = vmatprep.mubr.bf16.mxu0 0
      %5069 = vmatmul.mubr.bf16.gmra.mrb[0].mxu0 %v2443
      %v5070 = vpop.f32.mrb[0].mxu0
      %v5071 = vadd.f32 0.0, %v5070
      %v5072 = vpop.f32.mrb[0].mxu0
      %v5073 = vpop.f32.mrb[0].mxu0
      %v5074 = vadd.f32 0.0, %v5073
      %v5075 = vpop.f32.mrb[0].mxu0
      %5076 = vmatprep.mubr.bf16.mxu0 0
      %5077 = vmatmul.mubr.bf16.gmra.mrb[0].mxu0 %v2446
      %v5078 = vpop.f32.mrb[0].mxu0
      %v5079 = vadd.f32 0.0, %v5078
      %v5080 = vpop.f32.mrb[0].mxu0
      %v5081 = vpop.f32.mrb[0].mxu0
      %v5082 = vadd.f32 0.0, %v5081
      %v5083 = vpop.f32.mrb[0].mxu0
      %5084 = vmatprep.mubr.bf16.mxu0 0
      %5085 = vmatmul.mubr.bf16.gmra.mrb[0].mxu0 %v2449
      %v5086 = vpop.f32.mrb[0].mxu0
      %v5087 = vadd.f32 0.0, %v5086
      %v5088 = vpop.f32.mrb[0].mxu0
      %v5089 = vpop.f32.mrb[0].mxu0
      %v5090 = vadd.f32 0.0, %v5089
      %v5091 = vpop.f32.mrb[0].mxu0
      %5092 = vmatprep.mubr.bf16.mxu0 0
      %5093 = vmatmul.mubr.bf16.gmra.mrb[0].mxu0 %v3758
      %v5094 = vpop.f32.mrb[0].mxu0
      %v5095 = vadd.f32 0.0, %v5094
      %v5096 = vpop.f32.mrb[0].mxu0
      %v5097 = vpop.f32.mrb[0].mxu0
      %v5098 = vadd.f32 0.0, %v5097
      %v5099 = vpop.f32.mrb[0].mxu0
      %5100 = vmatprep.mubr.bf16.mxu0 0
      %5101 = vmatmul.mubr.bf16.gmra.mrb[0].mxu0 %v3761
      %v5102 = vpop.f32.mrb[0].mxu0
      %v5103 = vadd.f32 0.0, %v5102
      %v5104 = vpop.f32.mrb[0].mxu0
      %v5105 = vpop.f32.mrb[0].mxu0
      %v5106 = vadd.f32 0.0, %v5105
      %v5107 = vpop.f32.mrb[0].mxu0
      %5108 = vmatprep.mubr.bf16.mxu0 0
      %5109 = vmatmul.mubr.bf16.gmra.mrb[0].mxu0 %v4926
      %v5110 = vpop.f32.mrb[0].mxu0
      %v5111 = vadd.f32 0.0, %v5110
      %v5112 = vpop.f32.mrb[0].mxu0
      %v5113 = vpop.f32.mrb[0].mxu0
      %v5114 = vadd.f32 0.0, %v5113
      %v5115 = vpop.f32.mrb[0].mxu0
      %5116 = vmatprep.mubr.bf16.mxu0 0
      %5117 = vmatmul.mubr.bf16.gmra.mrb[0].mxu0 %v4929
      %v5118 = vpop.f32.mrb[0].mxu0
      %v5119 = vadd.f32 0.0, %v5118
      %v5120 = vpop.f32.mrb[0].mxu0
      %v5121 = vpop.f32.mrb[0].mxu0
      %v5122 = vadd.f32 0.0, %v5121
      %v5123 = vpop.f32.mrb[0].mxu0
      %5124 = vdwg.mxu0
      %v5125 = vadd.f32 %v4541, %v4966
      %v5126 = vadd.f32 %v4542, %v4969
      %v5127 = vadd.f32 %v4543, %v4974
      %v5128 = vadd.f32 %v4544, %v4977
      %v5129 = vadd.f32 %v4545, %v4982
      %v5130 = vadd.f32 %v4546, %v4985
      %v5131 = vadd.f32 %v4547, %v4990
      %v5132 = vadd.f32 %v4548, %v4993
      %v5133 = vadd.f32 %v4549, %v4998
      %v5134 = vadd.f32 %v4550, %v5001
      %v5135 = vadd.f32 %v4551, %v5006
      %v5136 = vadd.f32 %v4552, %v5009
      %v5137 = vadd.f32 %v4553, %v5014
      %v5138 = vadd.f32 %v4554, %v5017
      %v5139 = vadd.f32 %v4555, %v5022
      %v5140 = vadd.f32 %v4556, %v5025
      %v5141 = vadd.f32 %v4557, %v5063
      %v5142 = vadd.f32 %v4558, %v5066
      %v5143 = vadd.f32 %v4559, %v5071
      %v5144 = vadd.f32 %v4560, %v5074
      %v5145 = vadd.f32 %v4561, %v5079
      %v5146 = vadd.f32 %v4562, %v5082
      %v5147 = vadd.f32 %v4563, %v5087
      %v5148 = vadd.f32 %v4564, %v5090
      %v5149 = vadd.f32 %v4565, %v5095
      %v5150 = vadd.f32 %v4566, %v5098
      %v5151 = vadd.f32 %v4567, %v5103
      %v5152 = vadd.f32 %v4568, %v5106
      %v5153 = vadd.f32 %v4569, %v5111
      %v5154 = vadd.f32 %v4570, %v5114
      %v5155 = vadd.f32 %v4571, %v5119
      %v5156 = vadd.f32 %v4572, %v5122
      %v5157 = vmax.f32 %v4893, %v4909
      %v5158 = vmax.f32 %v4894, %v4910
      %v5159 = vmax.f32 %v4895, %v4911
      %v5160 = vmax.f32 %v4896, %v4912
      %v5161 = vmax.f32 %v4897, %v4913
      %v5162 = vmax.f32 %v4898, %v4914
      %v5163 = vmax.f32 %v4899, %v4915
      %v5164 = vmax.f32 %v4900, %v4916
      %v5165 = vmax.f32 %v4901, %v4917
      %v5166 = vmax.f32 %v4902, %v4918
      %v5167 = vmax.f32 %v4903, %v4919
      %v5168 = vmax.f32 %v4904, %v4920
      %v5169 = vmax.f32 %v4905, %v4921
      %v5170 = vmax.f32 %v4906, %v4922
      %v5171 = vmax.f32 %v4907, %v4923
      %v5172 = vmax.f32 %v4908, %v4924
      %v5173 = vmax.f32 %v5125, %v5141
      %v5174 = vmax.f32 %v5126, %v5142
      %v5175 = vmax.f32 %v5127, %v5143
      %v5176 = vmax.f32 %v5128, %v5144
      %v5177 = vmax.f32 %v5129, %v5145
      %v5178 = vmax.f32 %v5130, %v5146
      %v5179 = vmax.f32 %v5131, %v5147
      %v5180 = vmax.f32 %v5132, %v5148
      %v5181 = vmax.f32 %v5133, %v5149
      %v5182 = vmax.f32 %v5134, %v5150
      %v5183 = vmax.f32 %v5135, %v5151
      %v5184 = vmax.f32 %v5136, %v5152
      %v5185 = vmax.f32 %v5137, %v5153
      %v5186 = vmax.f32 %v5138, %v5154
      %v5187 = vmax.f32 %v5139, %v5155
      %v5188 = vmax.f32 %v5140, %v5156
      %v5189 = vmax.f32 %v5157, %v5173
      %v5190 = vmax.f32 %v5158, %v5174
      %v5191 = vmax.f32 %v5159, %v5175
      %v5192 = vmax.f32 %v5160, %v5176
      %v5193 = vmax.f32 %v5161, %v5177
      %v5194 = vmax.f32 %v5162, %v5178
      %v5195 = vmax.f32 %v5163, %v5179
      %v5196 = vmax.f32 %v5164, %v5180
      %v5197 = vmax.f32 %v5165, %v5181
      %v5198 = vmax.f32 %v5166, %v5182
      %v5199 = vmax.f32 %v5167, %v5183
      %v5200 = vmax.f32 %v5168, %v5184
      %v5201 = vmax.f32 %v5169, %v5185
      %v5202 = vmax.f32 %v5170, %v5186
      %v5203 = vmax.f32 %v5171, %v5187
      %v5204 = vmax.f32 %v5172, %v5188
      %v5205 = vld [vmem:[%s6] sm:$0x1]
      %v5207 = vlaneseq
      %v5208 = vshrl.u32 %v5207, 7
      %v5209 = vsub.s32 0, %v5208
      %v5210 = vrot.slane %v5205, %v5209
      %v5212 = vadd.f32 %v5189, %v5210
      %v5213 = vadd.f32 %v5190, %v5210
      %v5214 = vadd.f32 %v5191, %v5210
      %v5215 = vadd.f32 %v5192, %v5210
      %v5216 = vadd.f32 %v5193, %v5210
      %v5217 = vadd.f32 %v5194, %v5210
      %v5218 = vadd.f32 %v5195, %v5210
      %v5219 = vadd.f32 %v5196, %v5210
      %v5220 = vadd.f32 %v5197, %v5210
      %v5221 = vadd.f32 %v5198, %v5210
      %v5222 = vadd.f32 %v5199, %v5210
      %v5223 = vadd.f32 %v5200, %v5210
      %v5224 = vadd.f32 %v5201, %v5210
      %v5225 = vadd.f32 %v5202, %v5210
      %v5226 = vadd.f32 %v5203, %v5210
      %v5227 = vadd.f32 %v5204, %v5210
      %v5228 = vmax.f32 %v5212, 0.0
      %v5229 = vmax.f32 %v5213, 0.0
      %v5230 = vmax.f32 %v5214, 0.0
      %v5231 = vmax.f32 %v5215, 0.0
      %v5232 = vmax.f32 %v5216, 0.0
      %v5233 = vmax.f32 %v5217, 0.0
      %v5234 = vmax.f32 %v5218, 0.0
      %v5235 = vmax.f32 %v5219, 0.0
      %v5236 = vmax.f32 %v5220, 0.0
      %v5237 = vmax.f32 %v5221, 0.0
      %v5238 = vmax.f32 %v5222, 0.0
      %v5239 = vmax.f32 %v5223, 0.0
      %v5240 = vmax.f32 %v5224, 0.0
      %v5241 = vmax.f32 %v5225, 0.0
      %v5242 = vmax.f32 %v5226, 0.0
      %v5243 = vmax.f32 %v5227, 0.0
      %v5244 = vld [vmem:[%s7] sm:$0xff]
      %v5245 = vld [vmem:[%s7 + $0x8] sm:$0xff]
      %v5246 = vld [vmem:[%s7 + $0x10] sm:$0xff]
      %v5247 = vld [vmem:[%s7 + $0x18] sm:$0xff]
      %v5248 = vld [vmem:[%s7 + $0x20] sm:$0xff]
      %v5249 = vld [vmem:[%s7 + $0x28] sm:$0xff]
      %v5250 = vld [vmem:[%s7 + $0x30] sm:$0xff]
      %v5251 = vld [vmem:[%s7 + $0x38] sm:$0xff]
      %v5252 = vld [vmem:[%s7 + $0x40] sm:$0xff]
      %v5253 = vld [vmem:[%s7 + $0x48] sm:$0xff]
      %v5254 = vld [vmem:[%s7 + $0x50] sm:$0xff]
      %v5255 = vld [vmem:[%s7 + $0x58] sm:$0xff]
      %v5256 = vld [vmem:[%s7 + $0x60] sm:$0xff]
      %v5257 = vld [vmem:[%s7 + $0x68] sm:$0xff]
      %v5258 = vld [vmem:[%s7 + $0x70] sm:$0xff]
      %v5259 = vld [vmem:[%s7 + $0x78] sm:$0xff]
      %v5260 = vld [vmem:[%s7 + $0x80] sm:$0xff]
      %v5261 = vld [vmem:[%s7 + $0x88] sm:$0xff]
      %v5262 = vld [vmem:[%s7 + $0x90] sm:$0xff]
      %v5263 = vld [vmem:[%s7 + $0x98] sm:$0xff]
      %vm5264 = vcmask 654336
      %v5266 = vsel %vm5264, %v5232, 0
      %v5269 = vsel %vm5264, %v5233, 0
      %v5272 = vsel %vm5264, %v5234, 0
      %v5275 = vsel %vm5264, %v5235, 0
      %5277 = vmatprep.subr.mxu0 0.0
      %5278 = vmatpush1.msra.mxu0 %v5254
      %5279 = vmatprep.subr.mxu0 0.0
      %5280 = vmatpush1.msra.mxu0 %v5255
      %5281 = vmatprep.subr.mxu0 0.0
      %5282 = vmatpush1.msra.mxu0 %v5256
      %5283 = vmatprep.subr.mxu0 0.0
      %5284 = vmatpush1.msra.mxu0 %v5257
      %5285 = vmatprep.subr.mxu0 0.0
      %5286 = vmatpush1.msra.mxu0 %v5258
      %5287 = vmatprep.subr.mxu0 0.0
      %5288 = vmatpush1.msra.mxu0 %v5259
      %5289 = vmatprep.subr.mxu0 0.0
      %5290 = vmatpush1.msra.mxu0 %v5260
      %5291 = vmatprep.subr.mxu0 0.0
      %5292 = vmatpush1.msra.mxu0 %v5261
      %5293 = vmatprep.subr.mxu0 0.0
      %5294 = vmatpush1.msra.mxu0 %v5262
      %5295 = vmatprep.subr.mxu0 0.0
      %5296 = vmatpush1.msra.mxu0 %v5263
      %5297 = vmatprep.subr.mxu0 0.0
      %5298 = vmatpush1.msra.mxu0 0.0
      %5299 = vmatprep.subr.mxu0 0.0
      %5300 = vmatpush1.msra.mxu0 0.0
      %5301 = vmatprep.subr.mxu0 0.0
      %5302 = vmatpush1.msra.mxu0 0.0
      %5303 = vmatprep.subr.mxu0 0.0
      %5304 = vmatpush1.msra.mxu0 0.0
      %5305 = vmatprep.subr.mxu0 0.0
      %5306 = vmatpush1.msra.mxu0 0.0
      %5307 = vmatprep.subr.mxu0 0.0
      %5308 = vmatpush1.msra.mxu0 0.0
      %5309 = vmatprep.subr.mxu0 0.0
      %5310 = vmatpush1.msra.mxu0 0.0
      %5311 = vmatprep.subr.mxu0 0.0
      %5312 = vmatpush1.msra.mxu0 0.0
      %5313 = vmatprep.subr.mxu0 0.0
      %5314 = vmatpush1.msra.mxu0 0.0
      %5315 = vmatprep.subr.mxu0 0.0
      %5316 = vmatpush1.msra.mxu0 0.0
      %5317 = vmatprep.subr.mxu0 0.0
      %5318 = vmatpush1.msra.mxu0 0.0
      %5319 = vmatprep.subr.mxu0 0.0
      %5320 = vmatpush1.msra.mxu0 0.0
      %5321 = vmatprep.subr.mxu0 0.0
      %5322 = vmatpush1.msra.mxu0 0.0
      %5323 = vmatprep.subr.mxu0 0.0
      %5324 = vmatpush1.msra.mxu0 0.0
      %5325 = vmatprep.subr.mxu0 0.0
      %5326 = vmatpush1.msra.mxu0 0.0
      %5327 = vmatprep.subr.mxu0 0.0
      %5328 = vmatpush1.msra.mxu0 0.0
      %5329 = vmatprep.subr.mxu0 0.0
      %5330 = vmatpush1.msra.mxu0 0.0
      %5331 = vmatprep.subr.mxu0 0.0
      %5332 = vmatpush1.msra.mxu0 0.0
      %5333 = vmatprep.subr.mxu0 0.0
      %5334 = vmatpush1.msra.mxu0 0.0
      %5335 = vmatprep.subr.mxu0 0.0
      %5336 = vmatpush1.msra.mxu0 0.0
      %5337 = vmatprep.subr.mxu0 0.0
      %5338 = vmatpush1.msra.mxu0 0.0
      %5339 = vmatprep.subr.mxu0 0.0
      %5340 = vmatpush1.msra.mxu0 0.0
      %5341 = vmatprep.mubr.f32.mxu0 0.0
      %5342 = vmatmul.mubr.f32.gmra.mrb[0].mxu0 %v5266
      %v5343 = vpop.f32.mrb[0].mxu0
      %v5344 = vadd.f32 0.0, %v5343
      %v5345 = vpop.f32.mrb[0].mxu0
      %5346 = vmatprep.mubr.f32.mxu0 0.0
      %5347 = vmatmul.mubr.f32.gmra.mrb[0].mxu0 %v5269
      %v5348 = vpop.f32.mrb[0].mxu0
      %v5349 = vadd.f32 0.0, %v5348
      %v5350 = vpop.f32.mrb[0].mxu0
      %5351 = vmatprep.mubr.f32.mxu0 0.0
      %5352 = vmatmul.mubr.f32.gmra.mrb[0].mxu0 %v5272
      %v5353 = vpop.f32.mrb[0].mxu0
      %v5354 = vadd.f32 0.0, %v5353
      %v5355 = vpop.f32.mrb[0].mxu0
      %5356 = vmatprep.mubr.f32.mxu0 0.0
      %5357 = vmatmul.mubr.f32.gmra.mrb[0].mxu0 %v5275
      %v5358 = vpop.f32.mrb[0].mxu0
      %v5359 = vadd.f32 0.0, %v5358
      %v5360 = vpop.f32.mrb[0].mxu0
      %5361 = vdwg.mxu0
      %v5363 = vsel %vm5264, %v5228, 0
      %v5366 = vsel %vm5264, %v5229, 0
      %v5369 = vsel %vm5264, %v5230, 0
      %v5372 = vsel %vm5264, %v5231, 0
      %5374 = vmatprep.subr.mxu0 0.0
      %5375 = vmatpush1.msra.mxu0 %v5244
      %5376 = vmatprep.subr.mxu0 0.0
      %5377 = vmatpush1.msra.mxu0 %v5245
      %5378 = vmatprep.subr.mxu0 0.0
      %5379 = vmatpush1.msra.mxu0 %v5246
      %5380 = vmatprep.subr.mxu0 0.0
      %5381 = vmatpush1.msra.mxu0 %v5247
      %5382 = vmatprep.subr.mxu0 0.0
      %5383 = vmatpush1.msra.mxu0 %v5248
      %5384 = vmatprep.subr.mxu0 0.0
      %5385 = vmatpush1.msra.mxu0 %v5249
      %5386 = vmatprep.subr.mxu0 0.0
      %5387 = vmatpush1.msra.mxu0 %v5250
      %5388 = vmatprep.subr.mxu0 0.0
      %5389 = vmatpush1.msra.mxu0 %v5251
      %5390 = vmatprep.subr.mxu0 0.0
      %5391 = vmatpush1.msra.mxu0 %v5252
      %5392 = vmatprep.subr.mxu0 0.0
      %5393 = vmatpush1.msra.mxu0 %v5253
      %5394 = vmatprep.subr.mxu0 0.0
      %5395 = vmatpush1.msra.mxu0 0.0
      %5396 = vmatprep.subr.mxu0 0.0
      %5397 = vmatpush1.msra.mxu0 0.0
      %5398 = vmatprep.subr.mxu0 0.0
      %5399 = vmatpush1.msra.mxu0 0.0
      %5400 = vmatprep.subr.mxu0 0.0
      %5401 = vmatpush1.msra.mxu0 0.0
      %5402 = vmatprep.subr.mxu0 0.0
      %5403 = vmatpush1.msra.mxu0 0.0
      %5404 = vmatprep.subr.mxu0 0.0
      %5405 = vmatpush1.msra.mxu0 0.0
      %5406 = vmatprep.subr.mxu0 0.0
      %5407 = vmatpush1.msra.mxu0 0.0
      %5408 = vmatprep.subr.mxu0 0.0
      %5409 = vmatpush1.msra.mxu0 0.0
      %5410 = vmatprep.subr.mxu0 0.0
      %5411 = vmatpush1.msra.mxu0 0.0
      %5412 = vmatprep.subr.mxu0 0.0
      %5413 = vmatpush1.msra.mxu0 0.0
      %5414 = vmatprep.subr.mxu0 0.0
      %5415 = vmatpush1.msra.mxu0 0.0
      %5416 = vmatprep.subr.mxu0 0.0
      %5417 = vmatpush1.msra.mxu0 0.0
      %5418 = vmatprep.subr.mxu0 0.0
      %5419 = vmatpush1.msra.mxu0 0.0
      %5420 = vmatprep.subr.mxu0 0.0
      %5421 = vmatpush1.msra.mxu0 0.0
      %5422 = vmatprep.subr.mxu0 0.0
      %5423 = vmatpush1.msra.mxu0 0.0
      %5424 = vmatprep.subr.mxu0 0.0
      %5425 = vmatpush1.msra.mxu0 0.0
      %5426 = vmatprep.subr.mxu0 0.0
      %5427 = vmatpush1.msra.mxu0 0.0
      %5428 = vmatprep.subr.mxu0 0.0
      %5429 = vmatpush1.msra.mxu0 0.0
      %5430 = vmatprep.subr.mxu0 0.0
      %5431 = vmatpush1.msra.mxu0 0.0
      %5432 = vmatprep.subr.mxu0 0.0
      %5433 = vmatpush1.msra.mxu0 0.0
      %5434 = vmatprep.subr.mxu0 0.0
      %5435 = vmatpush1.msra.mxu0 0.0
      %5436 = vmatprep.subr.mxu0 0.0
      %5437 = vmatpush1.msra.mxu0 0.0
      %5438 = vmatprep.mubr.f32.mxu0 0.0
      %5439 = vmatmul.mubr.f32.gmra.mrb[0].mxu0 %v5363
      %v5440 = vpop.f32.mrb[0].mxu0
      %v5441 = vadd.f32 %v5344, %v5440
      %v5442 = vpop.f32.mrb[0].mxu0
      %5443 = vmatprep.mubr.f32.mxu0 0.0
      %5444 = vmatmul.mubr.f32.gmra.mrb[0].mxu0 %v5366
      %v5445 = vpop.f32.mrb[0].mxu0
      %v5446 = vadd.f32 %v5349, %v5445
      %v5447 = vpop.f32.mrb[0].mxu0
      %5448 = vmatprep.mubr.f32.mxu0 0.0
      %5449 = vmatmul.mubr.f32.gmra.mrb[0].mxu0 %v5369
      %v5450 = vpop.f32.mrb[0].mxu0
      %v5451 = vadd.f32 %v5354, %v5450
      %v5452 = vpop.f32.mrb[0].mxu0
      %5453 = vmatprep.mubr.f32.mxu0 0.0
      %5454 = vmatmul.mubr.f32.gmra.mrb[0].mxu0 %v5372
      %v5455 = vpop.f32.mrb[0].mxu0
      %v5456 = vadd.f32 %v5359, %v5455
      %v5457 = vpop.f32.mrb[0].mxu0
      %5458 = vdwg.mxu0
      %v5459 = vld [vmem:[%s7 + $0xa0] sm:$0xff]
      %v5460 = vld [vmem:[%s7 + $0xa8] sm:$0xff]
      %v5461 = vld [vmem:[%s7 + $0xb0] sm:$0xff]
      %v5462 = vld [vmem:[%s7 + $0xb8] sm:$0xff]
      %v5463 = vld [vmem:[%s7 + $0xc0] sm:$0xff]
      %v5464 = vld [vmem:[%s7 + $0xc8] sm:$0xff]
      %v5465 = vld [vmem:[%s7 + $0xd0] sm:$0xff]
      %v5466 = vld [vmem:[%s7 + $0xd8] sm:$0xff]
      %v5467 = vld [vmem:[%s7 + $0xe0] sm:$0xff]
      %v5468 = vld [vmem:[%s7 + $0xe8] sm:$0xff]
      %v5470 = vsel %vm5264, %v5236, 0
      %v5473 = vsel %vm5264, %v5237, 0
      %v5476 = vsel %vm5264, %v5238, 0
      %v5479 = vsel %vm5264, %v5239, 0
      %5481 = vmatprep.subr.mxu0 0.0
      %5482 = vmatpush1.msra.mxu0 %v5459
      %5483 = vmatprep.subr.mxu0 0.0
      %5484 = vmatpush1.msra.mxu0 %v5460
      %5485 = vmatprep.subr.mxu0 0.0
      %5486 = vmatpush1.msra.mxu0 %v5461
      %5487 = vmatprep.subr.mxu0 0.0
      %5488 = vmatpush1.msra.mxu0 %v5462
      %5489 = vmatprep.subr.mxu0 0.0
      %5490 = vmatpush1.msra.mxu0 %v5463
      %5491 = vmatprep.subr.mxu0 0.0
      %5492 = vmatpush1.msra.mxu0 %v5464
      %5493 = vmatprep.subr.mxu0 0.0
      %5494 = vmatpush1.msra.mxu0 %v5465
      %5495 = vmatprep.subr.mxu0 0.0
      %5496 = vmatpush1.msra.mxu0 %v5466
      %5497 = vmatprep.subr.mxu0 0.0
      %5498 = vmatpush1.msra.mxu0 %v5467
      %5499 = vmatprep.subr.mxu0 0.0
      %5500 = vmatpush1.msra.mxu0 %v5468
      %5501 = vmatprep.subr.mxu0 0.0
      %5502 = vmatpush1.msra.mxu0 0.0
      %5503 = vmatprep.subr.mxu0 0.0
      %5504 = vmatpush1.msra.mxu0 0.0
      %5505 = vmatprep.subr.mxu0 0.0
      %5506 = vmatpush1.msra.mxu0 0.0
      %5507 = vmatprep.subr.mxu0 0.0
      %5508 = vmatpush1.msra.mxu0 0.0
      %5509 = vmatprep.subr.mxu0 0.0
      %5510 = vmatpush1.msra.mxu0 0.0
      %5511 = vmatprep.subr.mxu0 0.0
      %5512 = vmatpush1.msra.mxu0 0.0
      %5513 = vmatprep.subr.mxu0 0.0
      %5514 = vmatpush1.msra.mxu0 0.0
      %5515 = vmatprep.subr.mxu0 0.0
      %5516 = vmatpush1.msra.mxu0 0.0
      %5517 = vmatprep.subr.mxu0 0.0
      %5518 = vmatpush1.msra.mxu0 0.0
      %5519 = vmatprep.subr.mxu0 0.0
      %5520 = vmatpush1.msra.mxu0 0.0
      %5521 = vmatprep.subr.mxu0 0.0
      %5522 = vmatpush1.msra.mxu0 0.0
      %5523 = vmatprep.subr.mxu0 0.0
      %5524 = vmatpush1.msra.mxu0 0.0
      %5525 = vmatprep.subr.mxu0 0.0
      %5526 = vmatpush1.msra.mxu0 0.0
      %5527 = vmatprep.subr.mxu0 0.0
      %5528 = vmatpush1.msra.mxu0 0.0
      %5529 = vmatprep.subr.mxu0 0.0
      %5530 = vmatpush1.msra.mxu0 0.0
      %5531 = vmatprep.subr.mxu0 0.0
      %5532 = vmatpush1.msra.mxu0 0.0
      %5533 = vmatprep.subr.mxu0 0.0
      %5534 = vmatpush1.msra.mxu0 0.0
      %5535 = vmatprep.subr.mxu0 0.0
      %5536 = vmatpush1.msra.mxu0 0.0
      %5537 = vmatprep.subr.mxu0 0.0
      %5538 = vmatpush1.msra.mxu0 0.0
      %5539 = vmatprep.subr.mxu0 0.0
      %5540 = vmatpush1.msra.mxu0 0.0
      %5541 = vmatprep.subr.mxu0 0.0
      %5542 = vmatpush1.msra.mxu0 0.0
      %5543 = vmatprep.subr.mxu0 0.0
      %5544 = vmatpush1.msra.mxu0 0.0
      %5545 = vmatprep.mubr.f32.mxu0 0.0
      %5546 = vmatmul.mubr.f32.gmra.mrb[0].mxu0 %v5470
      %v5547 = vpop.f32.mrb[0].mxu0
      %v5548 = vadd.f32 0.0, %v5547
      %v5549 = vpop.f32.mrb[0].mxu0
      %5550 = vmatprep.mubr.f32.mxu0 0.0
      %5551 = vmatmul.mubr.f32.gmra.mrb[0].mxu0 %v5473
      %v5552 = vpop.f32.mrb[0].mxu0
      %v5553 = vadd.f32 0.0, %v5552
      %v5554 = vpop.f32.mrb[0].mxu0
      %5555 = vmatprep.mubr.f32.mxu0 0.0
      %5556 = vmatmul.mubr.f32.gmra.mrb[0].mxu0 %v5476
      %v5557 = vpop.f32.mrb[0].mxu0
      %v5558 = vadd.f32 0.0, %v5557
      %v5559 = vpop.f32.mrb[0].mxu0
      %5560 = vmatprep.mubr.f32.mxu0 0.0
      %5561 = vmatmul.mubr.f32.gmra.mrb[0].mxu0 %v5479
      %v5562 = vpop.f32.mrb[0].mxu0
      %v5563 = vadd.f32 0.0, %v5562
      %v5564 = vpop.f32.mrb[0].mxu0
      %5565 = vdwg.mxu0
      %v5566 = vadd.f32 %v5441, %v5548
      %v5567 = vadd.f32 %v5446, %v5553
      %v5568 = vadd.f32 %v5451, %v5558
      %v5569 = vadd.f32 %v5456, %v5563
      %v5570 = vld [vmem:[%s7 + $0xf0] sm:$0xff]
      %v5571 = vld [vmem:[%s7 + $0xf8] sm:$0xff]
      %v5572 = vld [vmem:[%s7 + $0x100] sm:$0xff]
      %v5573 = vld [vmem:[%s7 + $0x108] sm:$0xff]
      %v5574 = vld [vmem:[%s7 + $0x110] sm:$0xff]
      %v5575 = vld [vmem:[%s7 + $0x118] sm:$0xff]
      %v5576 = vld [vmem:[%s7 + $0x120] sm:$0xff]
      %v5577 = vld [vmem:[%s7 + $0x128] sm:$0xff]
      %v5578 = vld [vmem:[%s7 + $0x130] sm:$0xff]
      %v5579 = vld [vmem:[%s7 + $0x138] sm:$0xff]
      %v5581 = vsel %vm5264, %v5240, 0
      %v5584 = vsel %vm5264, %v5241, 0
      %v5587 = vsel %vm5264, %v5242, 0
      %v5590 = vsel %vm5264, %v5243, 0
      %5592 = vmatprep.subr.mxu0 0.0
      %5593 = vmatpush1.msra.mxu0 %v5570
      %5594 = vmatprep.subr.mxu0 0.0
      %5595 = vmatpush1.msra.mxu0 %v5571
      %5596 = vmatprep.subr.mxu0 0.0
      %5597 = vmatpush1.msra.mxu0 %v5572
      %5598 = vmatprep.subr.mxu0 0.0
      %5599 = vmatpush1.msra.mxu0 %v5573
      %5600 = vmatprep.subr.mxu0 0.0
      %5601 = vmatpush1.msra.mxu0 %v5574
      %5602 = vmatprep.subr.mxu0 0.0
      %5603 = vmatpush1.msra.mxu0 %v5575
      %5604 = vmatprep.subr.mxu0 0.0
      %5605 = vmatpush1.msra.mxu0 %v5576
      %5606 = vmatprep.subr.mxu0 0.0
      %5607 = vmatpush1.msra.mxu0 %v5577
      %5608 = vmatprep.subr.mxu0 0.0
      %5609 = vmatpush1.msra.mxu0 %v5578
      %5610 = vmatprep.subr.mxu0 0.0
      %5611 = vmatpush1.msra.mxu0 %v5579
      %5612 = vmatprep.subr.mxu0 0.0
      %5613 = vmatpush1.msra.mxu0 0.0
      %5614 = vmatprep.subr.mxu0 0.0
      %5615 = vmatpush1.msra.mxu0 0.0
      %5616 = vmatprep.subr.mxu0 0.0
      %5617 = vmatpush1.msra.mxu0 0.0
      %5618 = vmatprep.subr.mxu0 0.0
      %5619 = vmatpush1.msra.mxu0 0.0
      %5620 = vmatprep.subr.mxu0 0.0
      %5621 = vmatpush1.msra.mxu0 0.0
      %5622 = vmatprep.subr.mxu0 0.0
      %5623 = vmatpush1.msra.mxu0 0.0
      %5624 = vmatprep.subr.mxu0 0.0
      %5625 = vmatpush1.msra.mxu0 0.0
      %5626 = vmatprep.subr.mxu0 0.0
      %5627 = vmatpush1.msra.mxu0 0.0
      %5628 = vmatprep.subr.mxu0 0.0
      %5629 = vmatpush1.msra.mxu0 0.0
      %5630 = vmatprep.subr.mxu0 0.0
      %5631 = vmatpush1.msra.mxu0 0.0
      %5632 = vmatprep.subr.mxu0 0.0
      %5633 = vmatpush1.msra.mxu0 0.0
      %5634 = vmatprep.subr.mxu0 0.0
      %5635 = vmatpush1.msra.mxu0 0.0
      %5636 = vmatprep.subr.mxu0 0.0
      %5637 = vmatpush1.msra.mxu0 0.0
      %5638 = vmatprep.subr.mxu0 0.0
      %5639 = vmatpush1.msra.mxu0 0.0
      %5640 = vmatprep.subr.mxu0 0.0
      %5641 = vmatpush1.msra.mxu0 0.0
      %5642 = vmatprep.subr.mxu0 0.0
      %5643 = vmatpush1.msra.mxu0 0.0
      %5644 = vmatprep.subr.mxu0 0.0
      %5645 = vmatpush1.msra.mxu0 0.0
      %5646 = vmatprep.subr.mxu0 0.0
      %5647 = vmatpush1.msra.mxu0 0.0
      %5648 = vmatprep.subr.mxu0 0.0
      %5649 = vmatpush1.msra.mxu0 0.0
      %5650 = vmatprep.subr.mxu0 0.0
      %5651 = vmatpush1.msra.mxu0 0.0
      %5652 = vmatprep.subr.mxu0 0.0
      %5653 = vmatpush1.msra.mxu0 0.0
      %5654 = vmatprep.subr.mxu0 0.0
      %5655 = vmatpush1.msra.mxu0 0.0
      %5656 = vmatprep.mubr.f32.mxu0 0.0
      %5657 = vmatmul.mubr.f32.gmra.mrb[0].mxu0 %v5581
      %v5658 = vpop.f32.mrb[0].mxu0
      %v5659 = vadd.f32 0.0, %v5658
      %v5660 = vpop.f32.mrb[0].mxu0
      %5661 = vmatprep.mubr.f32.mxu0 0.0
      %5662 = vmatmul.mubr.f32.gmra.mrb[0].mxu0 %v5584
      %v5663 = vpop.f32.mrb[0].mxu0
      %v5664 = vadd.f32 0.0, %v5663
      %v5665 = vpop.f32.mrb[0].mxu0
      %5666 = vmatprep.mubr.f32.mxu0 0.0
      %5667 = vmatmul.mubr.f32.gmra.mrb[0].mxu0 %v5587
      %v5668 = vpop.f32.mrb[0].mxu0
      %v5669 = vadd.f32 0.0, %v5668
      %v5670 = vpop.f32.mrb[0].mxu0
      %5671 = vmatprep.mubr.f32.mxu0 0.0
      %5672 = vmatmul.mubr.f32.gmra.mrb[0].mxu0 %v5590
      %v5673 = vpop.f32.mrb[0].mxu0
      %v5674 = vadd.f32 0.0, %v5673
      %v5675 = vpop.f32.mrb[0].mxu0
      %5676 = vdwg.mxu0
      %v5677 = vadd.f32 %v5566, %v5659
      %v5678 = vadd.f32 %v5567, %v5664
      %v5679 = vadd.f32 %v5568, %v5669
      %v5680 = vadd.f32 %v5569, %v5674
      %v5681 = vld [vmem:[%s8] sm:$0x1]
      %v5683 = vlaneseq
      %v5684 = vshrl.u32 %v5683, 7
      %v5685 = vsub.s32 0, %v5684
      %v5686 = vrot.slane %v5681, %v5685
      %v5688 = vadd.f32 %v5677, %v5686
      %v5689 = vadd.f32 %v5678, %v5686
      %v5690 = vadd.f32 %v5679, %v5686
      %v5691 = vadd.f32 %v5680, %v5686
      %v5692 = vmax.f32 %v5688, 0.0
      %v5693 = vmax.f32 %v5689, 0.0
      %v5694 = vmax.f32 %v5690, 0.0
      %v5695 = vmax.f32 %v5691, 0.0
      %v5696 = vld [vmem:[%s9] sm:$0xff]
      %v5697 = vld [vmem:[%s9 + $0x8] sm:$0xff]
      %v5698 = vld [vmem:[%s9 + $0x10] sm:$0xff]
      %v5699 = vld [vmem:[%s9 + $0x18] sm:$0xff]
      %v5700 = vld [vmem:[%s9 + $0x20] sm:$0xff]
      %v5701 = vld [vmem:[%s9 + $0x28] sm:$0xff]
      %v5702 = vld [vmem:[%s9 + $0x30] sm:$0x3]
      %v5703 = vld [vmem:[%s10] sm:$0x1]
      %v5705 = vlaneseq
      %v5706 = vshrl.u32 %v5705, 7
      %v5707 = vsub.s32 0, %v5706
      %v5708 = vrot.slane %v5703, %v5707
      %vm5710 = vcmask 408576
      %v5712 = vsel %vm5710, %v5692, 0
      %v5715 = vsel %vm5710, %v5693, 0
      %v5718 = vsel %vm5710, %v5694, 0
      %v5721 = vsel %vm5710, %v5695, 0
      %vm5723 = vcmask 1041408
      %v5725 = vsel %vm5723, %v5702, 0
      %5727 = vmatprep.subr.mxu0 0.0
      %5728 = vmatpush1.msra.mxu0 %v5696
      %5729 = vmatprep.subr.mxu0 0.0
      %5730 = vmatpush1.msra.mxu0 %v5697
      %5731 = vmatprep.subr.mxu0 0.0
      %5732 = vmatpush1.msra.mxu0 %v5698
      %5733 = vmatprep.subr.mxu0 0.0
      %5734 = vmatpush1.msra.mxu0 %v5699
      %5735 = vmatprep.subr.mxu0 0.0
      %5736 = vmatpush1.msra.mxu0 %v5700
      %5737 = vmatprep.subr.mxu0 0.0
      %5738 = vmatpush1.msra.mxu0 %v5701
      %5739 = vmatprep.subr.mxu0 0.0
      %5740 = vmatpush1.msra.mxu0 %v5725
      %5741 = vmatprep.subr.mxu0 0.0
      %5742 = vmatpush1.msra.mxu0 0.0
      %5743 = vmatprep.subr.mxu0 0.0
      %5744 = vmatpush1.msra.mxu0 0.0
      %5745 = vmatprep.subr.mxu0 0.0
      %5746 = vmatpush1.msra.mxu0 0.0
      %5747 = vmatprep.subr.mxu0 0.0
      %5748 = vmatpush1.msra.mxu0 0.0
      %5749 = vmatprep.subr.mxu0 0.0
      %5750 = vmatpush1.msra.mxu0 0.0
      %5751 = vmatprep.subr.mxu0 0.0
      %5752 = vmatpush1.msra.mxu0 0.0
      %5753 = vmatprep.subr.mxu0 0.0
      %5754 = vmatpush1.msra.mxu0 0.0
      %5755 = vmatprep.subr.mxu0 0.0
      %5756 = vmatpush1.msra.mxu0 0.0
      %5757 = vmatprep.subr.mxu0 0.0
      %5758 = vmatpush1.msra.mxu0 0.0
      %5759 = vmatprep.subr.mxu0 0.0
      %5760 = vmatpush1.msra.mxu0 0.0
      %5761 = vmatprep.subr.mxu0 0.0
      %5762 = vmatpush1.msra.mxu0 0.0
      %5763 = vmatprep.subr.mxu0 0.0
      %5764 = vmatpush1.msra.mxu0 0.0
      %5765 = vmatprep.subr.mxu0 0.0
      %5766 = vmatpush1.msra.mxu0 0.0
      %5767 = vmatprep.subr.mxu0 0.0
      %5768 = vmatpush1.msra.mxu0 0.0
      %5769 = vmatprep.subr.mxu0 0.0
      %5770 = vmatpush1.msra.mxu0 0.0
      %5771 = vmatprep.subr.mxu0 0.0
      %5772 = vmatpush1.msra.mxu0 0.0
      %5773 = vmatprep.subr.mxu0 0.0
      %5774 = vmatpush1.msra.mxu0 0.0
      %5775 = vmatprep.subr.mxu0 0.0
      %5776 = vmatpush1.msra.mxu0 0.0
      %5777 = vmatprep.subr.mxu0 0.0
      %5778 = vmatpush1.msra.mxu0 0.0
      %5779 = vmatprep.subr.mxu0 0.0
      %5780 = vmatpush1.msra.mxu0 0.0
      %5781 = vmatprep.subr.mxu0 0.0
      %5782 = vmatpush1.msra.mxu0 0.0
      %5783 = vmatprep.subr.mxu0 0.0
      %5784 = vmatpush1.msra.mxu0 0.0
      %5785 = vmatprep.subr.mxu0 0.0
      %5786 = vmatpush1.msra.mxu0 0.0
      %5787 = vmatprep.subr.mxu0 0.0
      %5788 = vmatpush1.msra.mxu0 0.0
      %5789 = vmatprep.subr.mxu0 0.0
      %5790 = vmatpush1.msra.mxu0 0.0
      %5791 = vmatprep.mubr.f32.mxu0 0.0
      %5792 = vmatmul.mubr.f32.gmra.mrb[0].mxu0 %v5712
      %v5793 = vpop.f32.mrb[0].mxu0
      %v5794 = vadd.f32 %v5708, %v5793
      %v5795 = vpop.f32.mrb[0].mxu0
      %5796 = vmatprep.mubr.f32.mxu0 0.0
      %5797 = vmatmul.mubr.f32.gmra.mrb[0].mxu0 %v5715
      %v5798 = vpop.f32.mrb[0].mxu0
      %v5799 = vadd.f32 %v5708, %v5798
      %v5800 = vpop.f32.mrb[0].mxu0
      %5801 = vmatprep.mubr.f32.mxu0 0.0
      %5802 = vmatmul.mubr.f32.gmra.mrb[0].mxu0 %v5718
      %v5803 = vpop.f32.mrb[0].mxu0
      %v5804 = vadd.f32 %v5708, %v5803
      %v5805 = vpop.f32.mrb[0].mxu0
      %5806 = vmatprep.mubr.f32.mxu0 0.0
      %5807 = vmatmul.mubr.f32.gmra.mrb[0].mxu0 %v5721
      %v5808 = vpop.f32.mrb[0].mxu0
      %v5809 = vadd.f32 %v5708, %v5808
      %v5810 = vpop.f32.mrb[0].mxu0
      %5811 = vdwg.mxu0
      %5812 = vmax.xlane.f32.xlu0 %v5794
      %v5813 = vpop.xlane.xlu0 %5812
      %5814 = vmax.xlane.f32.xlu0 %v5799
      %v5815 = vpop.xlane.xlu0 %5814
      %5816 = vmax.xlane.f32.xlu0 %v5804
      %v5817 = vpop.xlane.xlu0 %5816
      %5818 = vmax.xlane.f32.xlu0 %v5809
      %v5819 = vpop.xlane.xlu0 %5818
      %v5820 = vsub.f32 %v5794, %v5813
      %v5821 = vsub.f32 %v5799, %v5815
      %v5822 = vsub.f32 %v5804, %v5817
      %v5823 = vsub.f32 %v5809, %v5819
      %v5824 = vmul.f32 %v5820, 1.442695
      %v5825 = vpow.pop %v5824
      %v5826 = vmul.f32 %v5821, 1.442695
      %v5827 = vpow.pop %v5826
      %v5828 = vmul.f32 %v5822, 1.442695
      %v5829 = vpow.pop %v5828
      %v5830 = vmul.f32 %v5823, 1.442695
      %v5831 = vpow.pop %v5830
      %5832 = vadd.xlane.f32.xlu0 %v5825
      %v5833 = vpop.xlane.xlu0 %5832
      %5834 = vadd.xlane.f32.xlu0 %v5827
      %v5835 = vpop.xlane.xlu0 %5834
      %5836 = vadd.xlane.f32.xlu0 %v5829
      %v5837 = vpop.xlane.xlu0 %5836
      %5838 = vadd.xlane.f32.xlu0 %v5831
      %v5839 = vpop.xlane.xlu0 %5838
      %v5840 = vlog2.pop %v5833
      %v5841 = vmul.f32 %v5840, 0.6931472
      %v5842 = vlog2.pop %v5835
      %v5843 = vmul.f32 %v5842, 0.6931472
      %v5844 = vlog2.pop %v5837
      %v5845 = vmul.f32 %v5844, 0.6931472
      %v5846 = vlog2.pop %v5839
      %v5847 = vmul.f32 %v5846, 0.6931472
      %v5848 = vsub.f32 %v5820, %v5841
      %v5849 = vsub.f32 %v5821, %v5843
      %v5850 = vsub.f32 %v5822, %v5845
      %v5851 = vsub.f32 %v5823, %v5847
      %5852 = vst [vmem:[%s391] sm:$0xff] %v5848
      %5853 = vst [vmem:[%s391 + $0x8] sm:$0xff] %v5849
      %5854 = vst [vmem:[%s391 + $0x10] sm:$0xff] %v5850
      %5855 = vst [vmem:[%s391 + $0x18] sm:$0xff] %v5851
      %s5856 = smul.u32 4, %s22
      %p5857 = scmp.lt.s32.totalorder %s5856, 7
      %s5858 = scalar_select %p5857, %s5856, 7
      %s5859 = smul.addr %s5858, 8
      %s5860 = scalar_lea.vmem %s11, %s5859
      // Predicated region
      $region65: #{net_forward.1} parent=63 // pred_check
        %p5861 = pneg %p276
      $region66: #{net_forward.1} parent=63 // pred_check_branch
        %5863 = sbr.rel (%p5861) target = $region68
      $region67: #{net_forward.1} parent=63 // pred_region
        %s5864 = smul.u32 4, %s22
      $region68: #{net_forward.1} parent=63 // pred_fallthru
        _
    $region64: #{net_forward.1} parent=5 // pred_fallthru
      _
    %p5865 = scmp.le.s32.totalorder 2, %s17
    // Predicated region
    $region69: #{net_forward.1} parent=5 // pred_check
      %p5866 = pneg %p5865
    $region70: #{net_forward.1} parent=5 // pred_check_branch
      %5868 = sbr.rel (%p5866) target = $region72
    $region71: #{net_forward.1} parent=5 // pred_region
      %s5869 = ssub.s32 %s17, 2
      // Predicated region
      $region73: #{net_forward.1} parent=71 // pred_check
        %p5870 = pneg %p282
      $region74: #{net_forward.1} parent=71 // pred_check_branch
        %5872 = sbr.rel (%p5870) target = $region76
      $region75: #{net_forward.1} parent=71 // pred_region
        %s5873 = smul.u32 4, %s23
        %p5874 = scmp.lt.s32.totalorder %s5873, 7
        %s5875 = scalar_select %p5874, %s5873, 7
        %s5876 = smul.addr %s5875, 8
        %s5877 = scalar_lea.vmem %s11, %s5876
      $region76: #{net_forward.1} parent=71 // pred_fallthru
        _
    $region72: #{net_forward.1} parent=5 // pred_fallthru
      _
  $region6: #{net_forward.1} parent=0 // loop_footer
    %s21 = sadd.s32 1, %s17
  $region7: #{net_forward.1} parent=0 // loop_footer_branch
    %16 = sbr.rel target = $region3
  $region8: #{net_forward.1} parent=0 // loop_exit
    _

</llo_original>
